<compile_context>
chip_gen: v5e
topology: v5e:2x2
jax: 0.10.0
libtpu: 0.0.40
codegen_flags: <defaults>
</compile_context>

<pallas_src>
import functools

import jax
import jax.numpy as jnp
from jax.experimental import pallas as pl
from jax.experimental.pallas import tpu as pltpu

D_IN, H1, H2, H3, D_OUT = 429, 1024, 512, 128, 39
D_IN_PAD = 512      # 429 -> 512 : aligned K for the first matmul
D_OUT_PAD = 128     # 39  -> 128 : lane-dense output stores
BN_EPS = 1e-5


@functools.lru_cache(maxsize=None)
def _supports_bf16_act():
    """bf16 VPU/EUP activation math only on v6e/v7x; v5e (and unknown) use f32."""
    try:
        kind = jax.devices()[0].device_kind.lower()
    except Exception:
        return False
    return ("v6" in kind) or ("v7" in kind)


def _mlp_kernel(x_ref,
                w1_ref, b1_ref,
                w2_ref, b2_ref,
                w3_ref, b3_ref,
                w4_ref, b4_ref,
                o_ref, *, act_dtype):
    """Whole forward pass for one batch tile; all weights VMEM-resident."""

    def sigmoid(v):
        # EUP-friendly sigmoid: tanh runs on the otherwise-idle EUP slot and
        # avoids XLA's logistic lowering (exp + exact divide on the VPU).
        return 0.5 * jnp.tanh(0.5 * v) + 0.5

    def hidden_layer(h_in, w_ref, b_ref):
        acc = jnp.dot(h_in, w_ref[...], preferred_element_type=jnp.float32)
        acc = acc.astype(act_dtype) + b_ref[...].astype(act_dtype)
        return sigmoid(acc)

    # layer1 (eval-mode BatchNorm folded into w1/b1) + sigmoid; dropout = identity
    h = hidden_layer(x_ref[...], w1_ref, b1_ref)               # (TB, 1024)
    # layer2 + sigmoid
    h = hidden_layer(h.astype(jnp.bfloat16), w2_ref, b2_ref)   # (TB, 512)
    # layer3 + sigmoid
    h = hidden_layer(h.astype(jnp.bfloat16), w3_ref, b3_ref)   # (TB, 128)
    # output layer (no activation), padded to 128 lanes -> unmasked lane-dense stores
    o_ref[...] = (jnp.dot(h.astype(jnp.bfloat16), w4_ref[...],
                          preferred_element_type=jnp.float32) + b4_ref[...])


def prepare_kernel_params(p):
    """Fold eval-mode BN into layer1, pad to aligned shapes, cast weights to bf16."""
    scale = p["bn_gamma"] * jax.lax.rsqrt(p["bn_var"] + BN_EPS)   # (1, 429)
    shift = p["bn_beta"] - p["bn_mean"] * scale                   # (1, 429)

    w1 = scale.reshape(-1, 1) * p["w1"]                           # (429, 1024)
    b1 = p["b1"] + shift @ p["w1"]                                # (1, 1024)

    w1 = jnp.pad(w1, ((0, D_IN_PAD - D_IN), (0, 0)))              # (512, 1024)
    w4 = jnp.pad(p["w4"], ((0, 0), (0, D_OUT_PAD - D_OUT)))       # (128, 128)
    b4 = jnp.pad(p["b4"], ((0, 0), (0, D_OUT_PAD - D_OUT)))       # (1, 128)

    bf16 = lambda a: a.astype(jnp.bfloat16)
    return dict(
        w1=bf16(w1), b1=b1,
        w2=bf16(p["w2"]), b2=p["b2"],
        w3=bf16(p["w3"]), b3=p["b3"],
        w4=bf16(w4), b4=b4,
    )


def _round_up(x, m):
    return -(-x // m) * m


def _pick_tile_b(batch):
    """Batch-aware tile: amortize per-step overhead, keep >=2 steps for v7x."""
    if batch >= 4096:
        return 1024
    if batch >= 1024:
        return 512
    if batch >= 256:
        return 128          # guarantees >= 2 grid steps for 256 <= B < 1024
    if batch >= 16:
        # small batches: split into two grid steps so both v7x TCs get work
        return max(8, _round_up(_round_up(batch, 2) // 2, 8))
    return max(8, _round_up(batch, 8))


@functools.partial(jax.jit, static_argnames=("tile_b", "bf16_act"))
def _forward_impl(x, kp, *, tile_b, bf16_act):
    B = x.shape[0]
    b_pad = _round_up(B, tile_b)
    grid_steps = b_pad // tile_b

    # Pad + f32->bf16 cast fused into this jit: kernel reads bf16 x directly.
    x_pad = jnp.pad(x.astype(jnp.bfloat16),
                    ((0, b_pad - B), (0, D_IN_PAD - D_IN)))

    # Replicated (weight) spec: constant index_map -> fetched once, stays in VMEM.
    def rep(shape):
        return pl.BlockSpec(shape, lambda i: tuple(0 for _ in shape))

    in_specs = [
        pl.BlockSpec((tile_b, D_IN_PAD), lambda i: (i, 0)),   # x, tiled over batch
        rep((D_IN_PAD, H1)), rep((1, H1)),
        rep((H1, H2)), rep((1, H2)),
        rep((H2, H3)), rep((1, H3)),
        rep((H3, D_OUT_PAD)), rep((1, D_OUT_PAD)),
    ]
    out_spec = pl.BlockSpec((tile_b, D_OUT_PAD), lambda i: (i, 0))

    # Advisory cost hint so XLA overlaps the surrounding pad/slice with the call.
    mm_terms = D_IN_PAD * H1 + H1 * H2 + H2 * H3 + H3 * D_OUT_PAD
    weight_bytes = 2 * mm_terms                              # bf16 weights
    bias_bytes = 4 * (H1 + H2 + H3 + D_OUT_PAD)
    cost = pl.CostEstimate(
        flops=2 * b_pad * mm_terms,
        transcendentals=b_pad * (H1 + H2 + H3),
        bytes_accessed=(b_pad * D_IN_PAD * 2 + b_pad * D_OUT_PAD * 4
                        + weight_bytes + bias_bytes),
    )

    act_dtype = jnp.bfloat16 if bf16_act else jnp.float32

    out = pl.pallas_call(
        functools.partial(_mlp_kernel, act_dtype=act_dtype),
        out_shape=jax.ShapeDtypeStruct((b_pad, D_OUT_PAD), jnp.float32),
        grid_spec=pltpu.PrefetchScalarGridSpec(
            num_scalar_prefetch=0,
            grid=(grid_steps,),
            in_specs=in_specs,
            out_specs=out_spec,
        ),
        compiler_params=pltpu.CompilerParams(
            dimension_semantics=("parallel",),
            vmem_limit_bytes=32 << 20,
        ),
        cost_estimate=cost,
    )(x_pad,
      kp["w1"], kp["b1"], kp["w2"], kp["b2"],
      kp["w3"], kp["b3"], kp["w4"], kp["b4"])

    # Slice back to (B, 39) inside the same jit (no extra eager dispatch).
    return out[:B, :D_OUT]


def classifier_forward(x, kernel_params, *, tile_b=None):
    """x: (B, 429) float32; kernel_params: output of prepare_kernel_params."""
    if tile_b is None:
        tile_b = _pick_tile_b(x.shape[0])
    return _forward_impl(x, kernel_params, tile_b=tile_b,
                         bf16_act=_supports_bf16_act())


def init_params(key):
    """Deterministic synthetic parameters (PyTorch-style uniform ±1/sqrt(fan_in))."""
    ks = jax.random.split(key, 8)

    def linear(kw, kb, fan_in, fan_out):
        bound = 1.0 / jnp.sqrt(fan_in)
        # stored as (in, out) so the kernel computes x @ W
        w = jax.random.uniform(kw, (fan_in, fan_out), jnp.float32, -bound, bound)
        b = jax.random.uniform(kb, (1, fan_out), jnp.float32, -bound, bound)
        return w, b

    w1, b1 = linear(ks[0], ks[1], D_IN, H1)
    w2, b2 = linear(ks[2], ks[3], H1, H2)
    w3, b3 = linear(ks[4], ks[5], H2, H3)
    w4, b4 = linear(ks[6], ks[7], H3, D_OUT)

    return dict(
        # BatchNorm1d(429): default affine init gamma=1, beta=0; fresh running stats
        bn_gamma=jnp.ones((1, D_IN), jnp.float32),
        bn_beta=jnp.zeros((1, D_IN), jnp.float32),
        bn_mean=jnp.zeros((1, D_IN), jnp.float32),
        bn_var=jnp.ones((1, D_IN), jnp.float32),
        w1=w1, b1=b1, w2=w2, b2=b2, w3=w3, b3=b3, w4=w4, b4=b4,
    )


def reference_forward(x, p):
    """Plain-JAX f32 reference of the same (eval-mode) forward pass."""
    xn = (x - p["bn_mean"]) * jax.lax.rsqrt(p["bn_var"] + BN_EPS) * p["bn_gamma"] + p["bn_beta"]
    h = jax.nn.sigmoid(xn @ p["w1"] + p["b1"])
    h = jax.nn.sigmoid(h @ p["w2"] + p["b2"])
    h = jax.nn.sigmoid(h @ p["w3"] + p["b3"])
    return h @ p["w4"] + p["b4"]


if __name__ == "__main__":
    key = jax.random.PRNGKey(0)
    k_param, k_x = jax.random.split(key)

    params = init_params(k_param)
    kernel_params = prepare_kernel_params(params)

    batch = 16
    x = jax.random.normal(k_x, (batch, D_IN), jnp.float32)

    out = classifier_forward(x, kernel_params)
    out = jax.block_until_ready(out)

    ref = reference_forward(x, params)
    assert out.shape == (batch, D_OUT)
    # bf16 matmul inputs (and bf16 activation math on v6e/v7x) with f32
    # accumulation -> compare at a loosened tolerance
    assert jnp.allclose(out, ref, atol=3e-2, rtol=3e-2), (
        "mismatch vs reference; max abs err = "
        f"{float(jnp.max(jnp.abs(out - ref)))}")

    print("KERNEL_OK")
</pallas_src>

<mosaic_0001>
module attributes {stable_mosaic.version = 11 : i64} {
  func.func @_mlp_kernel(%arg0: i32, %arg1: memref<8x512xbf16, #tpu.memory_space<vmem>>, %arg2: memref<512x1024xbf16, #tpu.memory_space<vmem>>, %arg3: memref<1x1024xf32, #tpu.memory_space<vmem>>, %arg4: memref<1024x512xbf16, #tpu.memory_space<vmem>>, %arg5: memref<1x512xf32, #tpu.memory_space<vmem>>, %arg6: memref<512x128xbf16, #tpu.memory_space<vmem>>, %arg7: memref<1x128xf32, #tpu.memory_space<vmem>>, %arg8: memref<128x128xbf16, #tpu.memory_space<vmem>>, %arg9: memref<1x128xf32, #tpu.memory_space<vmem>>, %arg10: memref<8x128xf32, #tpu.memory_space<vmem>>) attributes {dimension_semantics = [#tpu.dimension_semantics<parallel>], iteration_bounds = array<i64: 2>, scalar_prefetch = 0 : i64, scratch_operands = 0 : i64, tpu.core_type = #tpu.core_type<tc>, window_params = [{transform_indices = @transform_0, window_bounds = array<i64: 8, 512>}, {pipeline_mode = #tpu.pipeline_mode<synchronous>, transform_indices = @transform_1, window_bounds = array<i64: 512, 1024>}, {pipeline_mode = #tpu.pipeline_mode<synchronous>, transform_indices = @transform_2, window_bounds = array<i64: 1, 1024>}, {pipeline_mode = #tpu.pipeline_mode<synchronous>, transform_indices = @transform_3, window_bounds = array<i64: 1024, 512>}, {pipeline_mode = #tpu.pipeline_mode<synchronous>, transform_indices = @transform_4, window_bounds = array<i64: 1, 512>}, {pipeline_mode = #tpu.pipeline_mode<synchronous>, transform_indices = @transform_5, window_bounds = array<i64: 512, 128>}, {pipeline_mode = #tpu.pipeline_mode<synchronous>, transform_indices = @transform_6, window_bounds = array<i64: 1, 128>}, {pipeline_mode = #tpu.pipeline_mode<synchronous>, transform_indices = @transform_7, window_bounds = array<i64: 128, 128>}, {pipeline_mode = #tpu.pipeline_mode<synchronous>, transform_indices = @transform_8, window_bounds = array<i64: 1, 128>}, {transform_indices = @transform_9, window_bounds = array<i64: 8, 128>}]} {
    %c0 = arith.constant 0 : index
    %c0_0 = arith.constant 0 : index
    %0 = vector.load %arg1[%c0, %c0_0] : memref<8x512xbf16, #tpu.memory_space<vmem>>, vector<8x512xbf16>
    %c0_1 = arith.constant 0 : index
    %c0_2 = arith.constant 0 : index
    %1 = vector.load %arg2[%c0_1, %c0_2] : memref<512x1024xbf16, #tpu.memory_space<vmem>>, vector<512x1024xbf16>
    %cst = arith.constant dense<0.000000e+00> : vector<8x1024xf32>
    %2 = tpu.matmul %0, %1, %cst {dimension_numbers = #tpu.dot_dimension_numbers<[1], [0], [0], [1], [0, 0, 1, 1], [], []>} : vector<8x512xbf16>, vector<512x1024xbf16>, vector<8x1024xf32> -> vector<8x1024xf32>
    %c0_3 = arith.constant 0 : index
    %c0_4 = arith.constant 0 : index
    %3 = vector.load %arg3[%c0_3, %c0_4] : memref<1x1024xf32, #tpu.memory_space<vmem>>, vector<1x1024xf32>
    %4 = vector.broadcast %3 : vector<1x1024xf32> to vector<8x1024xf32>
    %5 = arith.addf %2, %4 : vector<8x1024xf32>
    %cst_5 = arith.constant 5.000000e-01 : f32
    %6 = vector.broadcast %cst_5 : f32 to vector<8x1024xf32>
    %7 = arith.mulf %6, %5 : vector<8x1024xf32>
    %8 = math.tanh %7 : vector<8x1024xf32>
    %cst_6 = arith.constant 5.000000e-01 : f32
    %9 = vector.broadcast %cst_6 : f32 to vector<8x1024xf32>
    %10 = arith.mulf %9, %8 : vector<8x1024xf32>
    %cst_7 = arith.constant 5.000000e-01 : f32
    %11 = vector.broadcast %cst_7 : f32 to vector<8x1024xf32>
    %12 = arith.addf %10, %11 : vector<8x1024xf32>
    %13 = arith.truncf %12 : vector<8x1024xf32> to vector<8x1024xbf16>
    %c0_8 = arith.constant 0 : index
    %c0_9 = arith.constant 0 : index
    %14 = vector.load %arg4[%c0_8, %c0_9] : memref<1024x512xbf16, #tpu.memory_space<vmem>>, vector<1024x512xbf16>
    %cst_10 = arith.constant dense<0.000000e+00> : vector<8x512xf32>
    %15 = tpu.matmul %13, %14, %cst_10 {dimension_numbers = #tpu.dot_dimension_numbers<[1], [0], [0], [1], [0, 0, 1, 1], [], []>} : vector<8x1024xbf16>, vector<1024x512xbf16>, vector<8x512xf32> -> vector<8x512xf32>
    %c0_11 = arith.constant 0 : index
    %c0_12 = arith.constant 0 : index
    %16 = vector.load %arg5[%c0_11, %c0_12] : memref<1x512xf32, #tpu.memory_space<vmem>>, vector<1x512xf32>
    %17 = vector.broadcast %16 : vector<1x512xf32> to vector<8x512xf32>
    %18 = arith.addf %15, %17 : vector<8x512xf32>
    %cst_13 = arith.constant 5.000000e-01 : f32
    %19 = vector.broadcast %cst_13 : f32 to vector<8x512xf32>
    %20 = arith.mulf %19, %18 : vector<8x512xf32>
    %21 = math.tanh %20 : vector<8x512xf32>
    %cst_14 = arith.constant 5.000000e-01 : f32
    %22 = vector.broadcast %cst_14 : f32 to vector<8x512xf32>
    %23 = arith.mulf %22, %21 : vector<8x512xf32>
    %cst_15 = arith.constant 5.000000e-01 : f32
    %24 = vector.broadcast %cst_15 : f32 to vector<8x512xf32>
    %25 = arith.addf %23, %24 : vector<8x512xf32>
    %26 = arith.truncf %25 : vector<8x512xf32> to vector<8x512xbf16>
    %c0_16 = arith.constant 0 : index
    %c0_17 = arith.constant 0 : index
    %27 = vector.load %arg6[%c0_16, %c0_17] : memref<512x128xbf16, #tpu.memory_space<vmem>>, vector<512x128xbf16>
    %cst_18 = arith.constant dense<0.000000e+00> : vector<8x128xf32>
    %28 = tpu.matmul %26, %27, %cst_18 {dimension_numbers = #tpu.dot_dimension_numbers<[1], [0], [0], [1], [0, 0, 1, 1], [], []>} : vector<8x512xbf16>, vector<512x128xbf16>, vector<8x128xf32> -> vector<8x128xf32>
    %c0_19 = arith.constant 0 : index
    %c0_20 = arith.constant 0 : index
    %29 = vector.load %arg7[%c0_19, %c0_20] : memref<1x128xf32, #tpu.memory_space<vmem>>, vector<1x128xf32>
    %30 = vector.broadcast %29 : vector<1x128xf32> to vector<8x128xf32>
    %31 = arith.addf %28, %30 : vector<8x128xf32>
    %cst_21 = arith.constant 5.000000e-01 : f32
    %32 = vector.broadcast %cst_21 : f32 to vector<8x128xf32>
    %33 = arith.mulf %32, %31 : vector<8x128xf32>
    %34 = math.tanh %33 : vector<8x128xf32>
    %cst_22 = arith.constant 5.000000e-01 : f32
    %35 = vector.broadcast %cst_22 : f32 to vector<8x128xf32>
    %36 = arith.mulf %35, %34 : vector<8x128xf32>
    %cst_23 = arith.constant 5.000000e-01 : f32
    %37 = vector.broadcast %cst_23 : f32 to vector<8x128xf32>
    %38 = arith.addf %36, %37 : vector<8x128xf32>
    %39 = arith.truncf %38 : vector<8x128xf32> to vector<8x128xbf16>
    %c0_24 = arith.constant 0 : index
    %c0_25 = arith.constant 0 : index
    %40 = vector.load %arg8[%c0_24, %c0_25] : memref<128x128xbf16, #tpu.memory_space<vmem>>, vector<128x128xbf16>
    %cst_26 = arith.constant dense<0.000000e+00> : vector<8x128xf32>
    %41 = tpu.matmul %39, %40, %cst_26 {dimension_numbers = #tpu.dot_dimension_numbers<[1], [0], [0], [1], [0, 0, 1, 1], [], []>} : vector<8x128xbf16>, vector<128x128xbf16>, vector<8x128xf32> -> vector<8x128xf32>
    %c0_27 = arith.constant 0 : index
    %c0_28 = arith.constant 0 : index
    %42 = vector.load %arg9[%c0_27, %c0_28] : memref<1x128xf32, #tpu.memory_space<vmem>>, vector<1x128xf32>
    %43 = vector.broadcast %42 : vector<1x128xf32> to vector<8x128xf32>
    %44 = arith.addf %41, %43 : vector<8x128xf32>
    %c0_29 = arith.constant 0 : index
    %c0_30 = arith.constant 0 : index
    %45 = vector.load %arg10[%c0_29, %c0_30] : memref<8x128xf32, #tpu.memory_space<vmem>>, vector<8x128xf32>
    tpu.vector_store %arg10[%c0_29, %c0_30], %44 {strides = array<i32>} : memref<8x128xf32, #tpu.memory_space<vmem>>, vector<8x128xf32>,
    return
  }
  func.func @transform_0(%arg0: i32) -> (i32, i32) {
    %c0_i32 = arith.constant 0 : i32
    %c0_i32_0 = arith.constant 0 : i32
    return %arg0, %c0_i32 : i32, i32
  }
  func.func @transform_1(%arg0: i32) -> (i32, i32) {
    %c0_i32 = arith.constant 0 : i32
    %c0_i32_0 = arith.constant 0 : i32
    %c0_i32_1 = arith.constant 0 : i32
    return %c0_i32, %c0_i32_0 : i32, i32
  }
  func.func @transform_2(%arg0: i32) -> (i32, i32) {
    %c0_i32 = arith.constant 0 : i32
    %c0_i32_0 = arith.constant 0 : i32
    %c0_i32_1 = arith.constant 0 : i32
    return %c0_i32, %c0_i32_0 : i32, i32
  }
  func.func @transform_3(%arg0: i32) -> (i32, i32) {
    %c0_i32 = arith.constant 0 : i32
    %c0_i32_0 = arith.constant 0 : i32
    %c0_i32_1 = arith.constant 0 : i32
    return %c0_i32, %c0_i32_0 : i32, i32
  }
  func.func @transform_4(%arg0: i32) -> (i32, i32) {
    %c0_i32 = arith.constant 0 : i32
    %c0_i32_0 = arith.constant 0 : i32
    %c0_i32_1 = arith.constant 0 : i32
    return %c0_i32, %c0_i32_0 : i32, i32
  }
  func.func @transform_5(%arg0: i32) -> (i32, i32) {
    %c0_i32 = arith.constant 0 : i32
    %c0_i32_0 = arith.constant 0 : i32
    %c0_i32_1 = arith.constant 0 : i32
    return %c0_i32, %c0_i32_0 : i32, i32
  }
  func.func @transform_6(%arg0: i32) -> (i32, i32) {
    %c0_i32 = arith.constant 0 : i32
    %c0_i32_0 = arith.constant 0 : i32
    %c0_i32_1 = arith.constant 0 : i32
    return %c0_i32, %c0_i32_0 : i32, i32
  }
  func.func @transform_7(%arg0: i32) -> (i32, i32) {
    %c0_i32 = arith.constant 0 : i32
    %c0_i32_0 = arith.constant 0 : i32
    %c0_i32_1 = arith.constant 0 : i32
    return %c0_i32, %c0_i32_0 : i32, i32
  }
  func.func @transform_8(%arg0: i32) -> (i32, i32) {
    %c0_i32 = arith.constant 0 : i32
    %c0_i32_0 = arith.constant 0 : i32
    %c0_i32_1 = arith.constant 0 : i32
    return %c0_i32, %c0_i32_0 : i32, i32
  }
  func.func @transform_9(%arg0: i32) -> (i32, i32) {
    %c0_i32 = arith.constant 0 : i32
    %c0_i32_0 = arith.constant 0 : i32
    return %arg0, %c0_i32 : i32, i32
  }
}

</mosaic_0001>

<llo_original>
// kernel: _forward_impl.1
$region0: #{_forward_impl.1}
  #allocation0 [shape = 'u32[]', space=smem, size = 0x4, offset = 0x4, fixed_abs, tag = 'smem constant byte address 0x4 - core index']
  #allocation1 [shape = 'u32[72,128]{1,0:T(1,128)}', space=vmem, size = 0x9000, scoped, tag = 'internal scratch']
  %s0 = inlined_call_operand.vmem [shape: bf16[16,512], index: 0, kind: input, shape index: {}]
  %s1 = inlined_call_operand.hbm [shape: bf16[512,1024], index: 1, kind: input, shape index: {}]
  %s2 = inlined_call_operand.vmem [shape: f32[1,1024], index: 2, kind: input, shape index: {}]
  %s3 = inlined_call_operand.hbm [shape: bf16[1024,512], index: 3, kind: input, shape index: {}]
  %s4 = inlined_call_operand.vmem [shape: f32[1,512], index: 4, kind: input, shape index: {}]
  %s5 = inlined_call_operand.hbm [shape: bf16[512,128], index: 5, kind: input, shape index: {}]
  %s6 = inlined_call_operand.vmem [shape: f32[1,128], index: 6, kind: input, shape index: {}]
  %s7 = inlined_call_operand.vmem [shape: bf16[128,128], index: 7, kind: input, shape index: {}]
  %s8 = inlined_call_operand.vmem [shape: f32[1,128], index: 8, kind: input, shape index: {}]
  %s9 = inlined_call_operand.hbm [shape: f32[16,128], index: 9, kind: output, shape index: {}]
  %s10 = sld [smem:[#allocation0]]
  $region81: #{_forward_impl.1} parent=0
    _
  %s12 = ssub.s32 1, %s10
  %s13 = scalar_select 0, %s12, %s10
  $region1: #{_forward_impl.1} parent=0
    #allocation2 [shape = 'u8[1048576]{0}', space=vmem, size = 0x100000, scoped, tag = 'input window, operand 1, single buffered']
    #allocation3 [shape = 's32[2]{0}', space=sflag, size = 0x8, scoped, tag = 'scoped memory for _forward_impl.1']
    #allocation4 [shape = 's32[2]{0}', space=sflag, size = 0x8, scoped, tag = 'scoped memory for _forward_impl.1']
    #allocation5 [shape = 'u8[1048576]{0}', space=vmem, size = 0x100000, scoped, tag = 'input window, operand 3, single buffered']
    #allocation6 [shape = 's32[1]{0}', space=sflag, size = 0x4, scoped, tag = 'scoped memory for _forward_impl.1']
    #allocation7 [shape = 'u8[131072]{0}', space=vmem, size = 0x20000, scoped, tag = 'input window, operand 5, single buffered']
    #allocation8 [shape = 'u8[8192]{0}', space=vmem, size = 0x2000, scoped, tag = 'output window, operand 0']
    %14 = vsyncpa [#allocation3], 0
    %15 = vsyncpa [#allocation6], 0
    %16 = vsyncpa [#allocation4], 0
    %s17 = scalar_lea.sflag [#allocation4], 1
    %18 = vsyncpa %s17, 0
    loop: start=0, step=1, limit=4
    $region2: #{_forward_impl.1} parent=1 // loop_pre_header
      _
    $region3: #{_forward_impl.1} parent=1 // loop_header
      %s20 = sphi 0, %s24
      %p21 = scmp.ge.s32.totalorder %s20, 4
      %s30 = sphi 0, %s32
      %s33 = sphi 0, %s30
      %s34 = sphi 0, %s33
      %s50 = sphi 0, %s34
      %s54 = sphi 0, %s54
      %s56 = sphi 0, %s54
      %s57 = sphi 0, %s56
      %s71 = sphi 0, %s57
      %s75 = sphi 0, %s75
      %s77 = sphi 0, %s75
      %s78 = sphi 0, %s77
      %s92 = sphi 0, %s78
      %s96 = sphi 0, %s96
      %s98 = sphi 0, %s96
      %s99 = sphi 0, %s98
      %s113 = sphi 0, %s99
      %s117 = sphi 0, %s117
      %s119 = sphi 0, %s117
      %s120 = sphi 0, %s119
      %s134 = sphi 0, %s120
      %s138 = sphi 0, %s138
      %s140 = sphi 0, %s138
      %s141 = sphi 0, %s140
      %s155 = sphi 0, %s141
      %s159 = sphi 0, %s159
      %s161 = sphi 0, %s159
      %s162 = sphi 0, %s161
      %s176 = sphi 0, %s162
      %s180 = sphi 0, %s180
      %s182 = sphi 0, %s180
      %s183 = sphi 0, %s182
      %s197 = sphi 0, %s183
      %s201 = sphi 0, %s201
      %s203 = sphi 0, %s201
      %s204 = sphi 0, %s203
      %s218 = sphi 0, %s204
      %s224 = sphi 0, %s226
      %s227 = sphi 0, %s224
      %s228 = sphi 0, %s227
      %s244 = sphi 0, %s228
    $region4: #{_forward_impl.1} parent=1 // loop_header_branch
      %23 = sbr.rel (%p21) target = $region8
    $region5: #{_forward_impl.1} parent=1 // loop_body
      %s25 = ssub.s32 %s20, 1
      %s26 = ssub.s32 %s20, 2
      %s27 = sadd.s32 %s20, 1
      %s28 = ssub.s32 %s20, %s27
      %p29 = scmp.eq.s32.totalorder %s28, 0
      %s31 = sadd.s32 %s30, 1
      %s32 = scalar_select %p29, %s30, %s31
      %p35 = pneg %p29
      %p36 = scmp.eq.s32.totalorder %s20, 1
      %p37 = por %p35, %p36
      %p38 = scmp.ne.s32.totalorder %s30, %s33
      %p39 = scmp.eq.s32.totalorder %s20, 0
      %p40 = por %p38, %p39
      %p41 = scmp.ne.s32.totalorder %s30, %s33
      %p42 = scmp.eq.s32.totalorder %s25, 1
      %p43 = por %p41, %p42
      %p44 = scmp.ne.s32.totalorder %s33, %s34
      %p45 = scmp.eq.s32.totalorder %s25, 0
      %p46 = por %p44, %p45
      %p47 = scmp.ne.s32.totalorder %s33, %s34
      %p48 = scmp.eq.s32.totalorder %s26, 1
      %p49 = por %p47, %p48
      %p51 = scmp.ne.s32.totalorder %s34, %s50
      %p52 = scmp.eq.s32.totalorder %s26, 0
      %p53 = por %p51, %p52
      %s55 = sadd.s32 %s54, 1
      %p58 = scmp.eq.s32.totalorder %s20, 1
      %p59 = scmp.ne.s32.totalorder %s54, %s56
      %p60 = scmp.eq.s32.totalorder %s20, 0
      %p61 = por %p59, %p60
      %p62 = scmp.ne.s32.totalorder %s54, %s56
      %p63 = scmp.eq.s32.totalorder %s25, 1
      %p64 = por %p62, %p63
      %p65 = scmp.ne.s32.totalorder %s56, %s57
      %p66 = scmp.eq.s32.totalorder %s25, 0
      %p67 = por %p65, %p66
      %p68 = scmp.ne.s32.totalorder %s56, %s57
      %p69 = scmp.eq.s32.totalorder %s26, 1
      %p70 = por %p68, %p69
      %p72 = scmp.ne.s32.totalorder %s57, %s71
      %p73 = scmp.eq.s32.totalorder %s26, 0
      %p74 = por %p72, %p73
      %s76 = sadd.s32 %s75, 1
      %p79 = scmp.eq.s32.totalorder %s20, 1
      %p80 = scmp.ne.s32.totalorder %s75, %s77
      %p81 = scmp.eq.s32.totalorder %s20, 0
      %p82 = por %p80, %p81
      %p83 = scmp.ne.s32.totalorder %s75, %s77
      %p84 = scmp.eq.s32.totalorder %s25, 1
      %p85 = por %p83, %p84
      %p86 = scmp.ne.s32.totalorder %s77, %s78
      %p87 = scmp.eq.s32.totalorder %s25, 0
      %p88 = por %p86, %p87
      %p89 = scmp.ne.s32.totalorder %s77, %s78
      %p90 = scmp.eq.s32.totalorder %s26, 1
      %p91 = por %p89, %p90
      %p93 = scmp.ne.s32.totalorder %s78, %s92
      %p94 = scmp.eq.s32.totalorder %s26, 0
      %p95 = por %p93, %p94
      %s97 = sadd.s32 %s96, 1
      %p100 = scmp.eq.s32.totalorder %s20, 1
      %p101 = scmp.ne.s32.totalorder %s96, %s98
      %p102 = scmp.eq.s32.totalorder %s20, 0
      %p103 = por %p101, %p102
      %p104 = scmp.ne.s32.totalorder %s96, %s98
      %p105 = scmp.eq.s32.totalorder %s25, 1
      %p106 = por %p104, %p105
      %p107 = scmp.ne.s32.totalorder %s98, %s99
      %p108 = scmp.eq.s32.totalorder %s25, 0
      %p109 = por %p107, %p108
      %p110 = scmp.ne.s32.totalorder %s98, %s99
      %p111 = scmp.eq.s32.totalorder %s26, 1
      %p112 = por %p110, %p111
      %p114 = scmp.ne.s32.totalorder %s99, %s113
      %p115 = scmp.eq.s32.totalorder %s26, 0
      %p116 = por %p114, %p115
      %s118 = sadd.s32 %s117, 1
      %p121 = scmp.eq.s32.totalorder %s20, 1
      %p122 = scmp.ne.s32.totalorder %s117, %s119
      %p123 = scmp.eq.s32.totalorder %s20, 0
      %p124 = por %p122, %p123
      %p125 = scmp.ne.s32.totalorder %s117, %s119
      %p126 = scmp.eq.s32.totalorder %s25, 1
      %p127 = por %p125, %p126
      %p128 = scmp.ne.s32.totalorder %s119, %s120
      %p129 = scmp.eq.s32.totalorder %s25, 0
      %p130 = por %p128, %p129
      %p131 = scmp.ne.s32.totalorder %s119, %s120
      %p132 = scmp.eq.s32.totalorder %s26, 1
      %p133 = por %p131, %p132
      %p135 = scmp.ne.s32.totalorder %s120, %s134
      %p136 = scmp.eq.s32.totalorder %s26, 0
      %p137 = por %p135, %p136
      %s139 = sadd.s32 %s138, 1
      %p142 = scmp.eq.s32.totalorder %s20, 1
      %p143 = scmp.ne.s32.totalorder %s138, %s140
      %p144 = scmp.eq.s32.totalorder %s20, 0
      %p145 = por %p143, %p144
      %p146 = scmp.ne.s32.totalorder %s138, %s140
      %p147 = scmp.eq.s32.totalorder %s25, 1
      %p148 = por %p146, %p147
      %p149 = scmp.ne.s32.totalorder %s140, %s141
      %p150 = scmp.eq.s32.totalorder %s25, 0
      %p151 = por %p149, %p150
      %p152 = scmp.ne.s32.totalorder %s140, %s141
      %p153 = scmp.eq.s32.totalorder %s26, 1
      %p154 = por %p152, %p153
      %p156 = scmp.ne.s32.totalorder %s141, %s155
      %p157 = scmp.eq.s32.totalorder %s26, 0
      %p158 = por %p156, %p157
      %s160 = sadd.s32 %s159, 1
      %p163 = scmp.eq.s32.totalorder %s20, 1
      %p164 = scmp.ne.s32.totalorder %s159, %s161
      %p165 = scmp.eq.s32.totalorder %s20, 0
      %p166 = por %p164, %p165
      %p167 = scmp.ne.s32.totalorder %s159, %s161
      %p168 = scmp.eq.s32.totalorder %s25, 1
      %p169 = por %p167, %p168
      %p170 = scmp.ne.s32.totalorder %s161, %s162
      %p171 = scmp.eq.s32.totalorder %s25, 0
      %p172 = por %p170, %p171
      %p173 = scmp.ne.s32.totalorder %s161, %s162
      %p174 = scmp.eq.s32.totalorder %s26, 1
      %p175 = por %p173, %p174
      %p177 = scmp.ne.s32.totalorder %s162, %s176
      %p178 = scmp.eq.s32.totalorder %s26, 0
      %p179 = por %p177, %p178
      %s181 = sadd.s32 %s180, 1
      %p184 = scmp.eq.s32.totalorder %s20, 1
      %p185 = scmp.ne.s32.totalorder %s180, %s182
      %p186 = scmp.eq.s32.totalorder %s20, 0
      %p187 = por %p185, %p186
      %p188 = scmp.ne.s32.totalorder %s180, %s182
      %p189 = scmp.eq.s32.totalorder %s25, 1
      %p190 = por %p188, %p189
      %p191 = scmp.ne.s32.totalorder %s182, %s183
      %p192 = scmp.eq.s32.totalorder %s25, 0
      %p193 = por %p191, %p192
      %p194 = scmp.ne.s32.totalorder %s182, %s183
      %p195 = scmp.eq.s32.totalorder %s26, 1
      %p196 = por %p194, %p195
      %p198 = scmp.ne.s32.totalorder %s183, %s197
      %p199 = scmp.eq.s32.totalorder %s26, 0
      %p200 = por %p198, %p199
      %s202 = sadd.s32 %s201, 1
      %p205 = scmp.eq.s32.totalorder %s20, 1
      %p206 = scmp.ne.s32.totalorder %s201, %s203
      %p207 = scmp.eq.s32.totalorder %s20, 0
      %p208 = por %p206, %p207
      %p209 = scmp.ne.s32.totalorder %s201, %s203
      %p210 = scmp.eq.s32.totalorder %s25, 1
      %p211 = por %p209, %p210
      %p212 = scmp.ne.s32.totalorder %s203, %s204
      %p213 = scmp.eq.s32.totalorder %s25, 0
      %p214 = por %p212, %p213
      %p215 = scmp.ne.s32.totalorder %s203, %s204
      %p216 = scmp.eq.s32.totalorder %s26, 1
      %p217 = por %p215, %p216
      %p219 = scmp.ne.s32.totalorder %s204, %s218
      %p220 = scmp.eq.s32.totalorder %s26, 0
      %p221 = por %p219, %p220
      %s222 = ssub.s32 %s20, %s27
      %p223 = scmp.eq.s32.totalorder %s222, 0
      %s225 = sadd.s32 %s224, 1
      %s226 = scalar_select %p223, %s224, %s225
      %p229 = pneg %p223
      %p230 = scmp.eq.s32.totalorder %s20, 1
      %p231 = por %p229, %p230
      %p232 = scmp.ne.s32.totalorder %s224, %s227
      %p233 = scmp.eq.s32.totalorder %s20, 0
      %p234 = por %p232, %p233
      %p235 = scmp.ne.s32.totalorder %s224, %s227
      %p236 = scmp.eq.s32.totalorder %s25, 1
      %p237 = por %p235, %p236
      %p238 = scmp.ne.s32.totalorder %s227, %s228
      %p239 = scmp.eq.s32.totalorder %s25, 0
      %p240 = por %p238, %p239
      %p241 = scmp.ne.s32.totalorder %s227, %s228
      %p242 = scmp.eq.s32.totalorder %s26, 1
      %p243 = por %p241, %p242
      %p245 = scmp.ne.s32.totalorder %s228, %s244
      %p246 = scmp.eq.s32.totalorder %s26, 0
      %p247 = por %p245, %p246
      %p248 = scmp.le.s32.totalorder 1, %s20
      %p249 = scmp.lt.s32.totalorder %s20, 3
      %p250 = pnand %p248, %p249
      %p251 = pneg %p250
      // Predicated region
      $region9: #{_forward_impl.1} parent=5 // pred_check
        _
      $region10: #{_forward_impl.1} parent=5 // pred_check_branch
        %253 = sbr.rel (%p250) target = $region12
      $region11: #{_forward_impl.1} parent=5 // pred_region
        %s254 = ssub.s32 %s20, 1
        // Predicated region
        $region13: #{_forward_impl.1} parent=11 // pred_check
          %p255 = pneg %p67
        $region14: #{_forward_impl.1} parent=11 // pred_check_branch
          %257 = sbr.rel (%p255) target = $region16
        $region15: #{_forward_impl.1} parent=11 // pred_region
          %259 = vsyncadd [#allocation3], 0
          %s260 = sshll.u32 %s1, 4
          %s261 = int_to_ptr.hbm [resolvable:$true] %s260
          %s262 = sshll.u32 [#allocation2], 4
          %s263 = int_to_ptr.vmem [resolvable:$true] %s262
          %268 = dma.hbm_to_vmem [thread:$0]  %s261, 32768, %s263, [#allocation3], 512, 512, 32
        $region16: #{_forward_impl.1} parent=11 // pred_fallthru
          _
        // Predicated region
        $region17: #{_forward_impl.1} parent=11 // pred_check
          %p269 = pneg %p88
        $region18: #{_forward_impl.1} parent=11 // pred_check_branch
          %271 = sbr.rel (%p269) target = $region20
        $region19: #{_forward_impl.1} parent=11 // pred_region
          _
        $region20: #{_forward_impl.1} parent=11 // pred_fallthru
          _
        // Predicated region
        $region21: #{_forward_impl.1} parent=11 // pred_check
          %p272 = pneg %p109
        $region22: #{_forward_impl.1} parent=11 // pred_check_branch
          %274 = sbr.rel (%p272) target = $region24
        $region23: #{_forward_impl.1} parent=11 // pred_region
          %276 = vsyncadd [#allocation6], 0
          %s277 = sshll.u32 %s3, 4
          %s278 = int_to_ptr.hbm [resolvable:$true] %s277
          %s279 = sshll.u32 [#allocation5], 4
          %s280 = int_to_ptr.vmem [resolvable:$true] %s279
          %285 = dma.hbm_to_vmem [thread:$0]  %s278, 32768, %s280, [#allocation6], 256, 256, 16
        $region24: #{_forward_impl.1} parent=11 // pred_fallthru
          _
        // Predicated region
        $region25: #{_forward_impl.1} parent=11 // pred_check
          %p286 = pneg %p130
        $region26: #{_forward_impl.1} parent=11 // pred_check_branch
          %288 = sbr.rel (%p286) target = $region28
        $region27: #{_forward_impl.1} parent=11 // pred_region
          _
        $region28: #{_forward_impl.1} parent=11 // pred_fallthru
          _
        // Predicated region
        $region29: #{_forward_impl.1} parent=11 // pred_check
          %p289 = pneg %p151
        $region30: #{_forward_impl.1} parent=11 // pred_check_branch
          %291 = sbr.rel (%p289) target = $region32
        $region31: #{_forward_impl.1} parent=11 // pred_region
          %293 = vsyncadd [#allocation6], 0
          %s294 = sshll.u32 %s5, 4
          %s295 = int_to_ptr.hbm [resolvable:$true] %s294
          %s296 = sshll.u32 [#allocation7], 4
          %s297 = int_to_ptr.vmem [resolvable:$true] %s296
          %302 = dma.hbm_to_vmem [thread:$0]  %s295, 4096, %s297, [#allocation6], 64, 64, 4
        $region32: #{_forward_impl.1} parent=11 // pred_fallthru
          _
        // Predicated region
        $region33: #{_forward_impl.1} parent=11 // pred_check
          %p303 = pneg %p172
        $region34: #{_forward_impl.1} parent=11 // pred_check_branch
          %305 = sbr.rel (%p303) target = $region36
        $region35: #{_forward_impl.1} parent=11 // pred_region
          _
        $region36: #{_forward_impl.1} parent=11 // pred_fallthru
          _
        // Predicated region
        $region37: #{_forward_impl.1} parent=11 // pred_check
          %p306 = pneg %p193
        $region38: #{_forward_impl.1} parent=11 // pred_check_branch
          %308 = sbr.rel (%p306) target = $region40
        $region39: #{_forward_impl.1} parent=11 // pred_region
          _
        $region40: #{_forward_impl.1} parent=11 // pred_fallthru
          _
        // Predicated region
        $region41: #{_forward_impl.1} parent=11 // pred_check
          %p309 = pneg %p214
        $region42: #{_forward_impl.1} parent=11 // pred_check_branch
          %311 = sbr.rel (%p309) target = $region44
        $region43: #{_forward_impl.1} parent=11 // pred_region
          _
        $region44: #{_forward_impl.1} parent=11 // pred_fallthru
          _
      $region12: #{_forward_impl.1} parent=5 // pred_fallthru
        _
      %p312 = scmp.lt.s32.totalorder %s20, 2
      // Predicated region
      $region45: #{_forward_impl.1} parent=5 // pred_check
        %p313 = pneg %p312
      $region46: #{_forward_impl.1} parent=5 // pred_check_branch
        %315 = sbr.rel (%p313) target = $region48
      $region47: #{_forward_impl.1} parent=5 // pred_region
        // Predicated region
        $region49: #{_forward_impl.1} parent=47 // pred_check
          %p316 = pneg %p40
        $region50: #{_forward_impl.1} parent=47 // pred_check_branch
          %318 = sbr.rel (%p316) target = $region52
        $region51: #{_forward_impl.1} parent=47 // pred_region
          %p319 = scmp.lt.s32.totalorder %s20, 1
          %s320 = scalar_select %p319, %s20, 1
          %s321 = smul.addr %s320, 4
          %s322 = smul.addr %s321, 4
          %s323 = scalar_lea.vmem %s0, %s322
        $region52: #{_forward_impl.1} parent=47 // pred_fallthru
          _
      $region48: #{_forward_impl.1} parent=5 // pred_fallthru
        _
      %p324 = scmp.le.s32.totalorder 1, %s20
      %p325 = scmp.lt.s32.totalorder %s20, 3
      %p326 = pnand %p324, %p325
      %p327 = pneg %p326
      // Predicated region
      $region53: #{_forward_impl.1} parent=5 // pred_check
        _
      $region54: #{_forward_impl.1} parent=5 // pred_check_branch
        %329 = sbr.rel (%p326) target = $region56
      $region55: #{_forward_impl.1} parent=5 // pred_region
        %s330 = ssub.s32 %s20, 1
        // Predicated region
        $region57: #{_forward_impl.1} parent=55 // pred_check
          %p331 = pneg %p67
        $region58: #{_forward_impl.1} parent=55 // pred_check_branch
          %333 = sbr.rel (%p331) target = $region60
        $region59: #{_forward_impl.1} parent=55 // pred_region
          %335 = dma.done [#allocation3], 32768
        $region60: #{_forward_impl.1} parent=55 // pred_fallthru
          _
        // Predicated region
        $region61: #{_forward_impl.1} parent=55 // pred_check
          %p336 = pneg %p109
        $region62: #{_forward_impl.1} parent=55 // pred_check_branch
          %338 = sbr.rel (%p336) target = $region64
        $region63: #{_forward_impl.1} parent=55 // pred_region
          %340 = dma.done [#allocation6], 32768
        $region64: #{_forward_impl.1} parent=55 // pred_fallthru
          _
        // Predicated region
        $region65: #{_forward_impl.1} parent=55 // pred_check
          %p341 = pneg %p151
        $region66: #{_forward_impl.1} parent=55 // pred_check_branch
          %343 = sbr.rel (%p341) target = $region68
        $region67: #{_forward_impl.1} parent=55 // pred_region
          %345 = dma.done [#allocation6], 4096
        $region68: #{_forward_impl.1} parent=55 // pred_fallthru
          _
        %p346 = scmp.lt.s32.totalorder %s25, 1
        %s347 = scalar_select %p346, %s25, 1
        %s348 = smul.addr %s347, 4
        %s349 = smul.addr %s348, 4
        %s350 = scalar_lea.vmem %s0, %s349
        %p351 = pneg %p46
        %p352 = pneg %p43
        %p353 = pneg %p67
        %p354 = pneg %p64
        %p355 = pneg %p88
        %p356 = pneg %p85
        %p357 = pneg %p109
        %p358 = pneg %p106
        %p359 = pneg %p130
        %p360 = pneg %p127
        %p361 = pneg %p151
        %p362 = pneg %p148
        %p363 = pneg %p172
        %p364 = pneg %p169
        %p365 = pneg %p193
        %p366 = pneg %p190
        %p367 = pneg %p214
        %p368 = pneg %p211
        %p369 = pneg %p240
        %p370 = pneg %p237
        %s371 = sand.u32 %s227, 1
        %s372 = scalar_lea.sflag [#allocation4], %s371
        %s373 = sand.u32 %s227, 1
        %s374 = smul.addr %s373, 8
        %s375 = scalar_lea.vmem [#allocation8], %s374
        %p376 = scmp.lt.s32.totalorder %s25, 1
        %s377 = scalar_select %p376, %s25, 1
        %s378 = smul.addr %s377, 4
        %s379 = smul.addr %s378, 4
        %s380 = scalar_lea.vmem %s0, %s379
        %v381 = vld [vmem:[%s380] sm:$0xff]
        %v382 = vld [vmem:[%s380 + $0x8] sm:$0xff]
        %v383 = vld [vmem:[#allocation2] sm:$0xff]
        %v384 = vld [vmem:[#allocation2 + $0x8] sm:$0xff]
        %v385 = vld [vmem:[#allocation2 + $0x10] sm:$0xff]
        %v386 = vld [vmem:[#allocation2 + $0x18] sm:$0xff]
        %v387 = vld [vmem:[#allocation2 + $0x20] sm:$0xff]
        %v388 = vld [vmem:[#allocation2 + $0x28] sm:$0xff]
        %v389 = vld [vmem:[#allocation2 + $0x30] sm:$0xff]
        %v390 = vld [vmem:[#allocation2 + $0x38] sm:$0xff]
        %v391 = vld [vmem:[#allocation2 + $0x40] sm:$0xff]
        %v392 = vld [vmem:[#allocation2 + $0x48] sm:$0xff]
        %v393 = vld [vmem:[#allocation2 + $0x50] sm:$0xff]
        %v394 = vld [vmem:[#allocation2 + $0x58] sm:$0xff]
        %v395 = vld [vmem:[#allocation2 + $0x60] sm:$0xff]
        %v396 = vld [vmem:[#allocation2 + $0x68] sm:$0xff]
        %v397 = vld [vmem:[#allocation2 + $0x70] sm:$0xff]
        %v398 = vld [vmem:[#allocation2 + $0x78] sm:$0xff]
        %v399 = vld [vmem:[#allocation2 + $0x80] sm:$0xff]
        %v400 = vld [vmem:[#allocation2 + $0x88] sm:$0xff]
        %v401 = vld [vmem:[#allocation2 + $0x90] sm:$0xff]
        %v402 = vld [vmem:[#allocation2 + $0x98] sm:$0xff]
        %v403 = vld [vmem:[#allocation2 + $0xa0] sm:$0xff]
        %v404 = vld [vmem:[#allocation2 + $0xa8] sm:$0xff]
        %v405 = vld [vmem:[#allocation2 + $0xb0] sm:$0xff]
        %v406 = vld [vmem:[#allocation2 + $0xb8] sm:$0xff]
        %v407 = vld [vmem:[#allocation2 + $0xc0] sm:$0xff]
        %v408 = vld [vmem:[#allocation2 + $0xc8] sm:$0xff]
        %v409 = vld [vmem:[#allocation2 + $0xd0] sm:$0xff]
        %v410 = vld [vmem:[#allocation2 + $0xd8] sm:$0xff]
        %v411 = vld [vmem:[#allocation2 + $0xe0] sm:$0xff]
        %v412 = vld [vmem:[#allocation2 + $0xe8] sm:$0xff]
        %v413 = vld [vmem:[#allocation2 + $0xf0] sm:$0xff]
        %v414 = vld [vmem:[#allocation2 + $0xf8] sm:$0xff]
        %v415 = vld [vmem:[#allocation2 + $0x100] sm:$0xff]
        %v416 = vld [vmem:[#allocation2 + $0x108] sm:$0xff]
        %v417 = vld [vmem:[#allocation2 + $0x110] sm:$0xff]
        %v418 = vld [vmem:[#allocation2 + $0x118] sm:$0xff]
        %v419 = vld [vmem:[#allocation2 + $0x120] sm:$0xff]
        %v420 = vld [vmem:[#allocation2 + $0x128] sm:$0xff]
        %v421 = vld [vmem:[#allocation2 + $0x130] sm:$0xff]
        %v422 = vld [vmem:[#allocation2 + $0x138] sm:$0xff]
        %v423 = vld [vmem:[#allocation2 + $0x140] sm:$0xff]
        %v424 = vld [vmem:[#allocation2 + $0x148] sm:$0xff]
        %v425 = vld [vmem:[#allocation2 + $0x150] sm:$0xff]
        %v426 = vld [vmem:[#allocation2 + $0x158] sm:$0xff]
        %v427 = vld [vmem:[#allocation2 + $0x160] sm:$0xff]
        %v428 = vld [vmem:[#allocation2 + $0x168] sm:$0xff]
        %v429 = vld [vmem:[#allocation2 + $0x170] sm:$0xff]
        %v430 = vld [vmem:[#allocation2 + $0x178] sm:$0xff]
        %v431 = vld [vmem:[#allocation2 + $0x180] sm:$0xff]
        %v432 = vld [vmem:[#allocation2 + $0x188] sm:$0xff]
        %v433 = vld [vmem:[#allocation2 + $0x190] sm:$0xff]
        %v434 = vld [vmem:[#allocation2 + $0x198] sm:$0xff]
        %v435 = vld [vmem:[#allocation2 + $0x1a0] sm:$0xff]
        %v436 = vld [vmem:[#allocation2 + $0x1a8] sm:$0xff]
        %v437 = vld [vmem:[#allocation2 + $0x1b0] sm:$0xff]
        %v438 = vld [vmem:[#allocation2 + $0x1b8] sm:$0xff]
        %v439 = vld [vmem:[#allocation2 + $0x1c0] sm:$0xff]
        %v440 = vld [vmem:[#allocation2 + $0x1c8] sm:$0xff]
        %v441 = vld [vmem:[#allocation2 + $0x1d0] sm:$0xff]
        %v442 = vld [vmem:[#allocation2 + $0x1d8] sm:$0xff]
        %v443 = vld [vmem:[#allocation2 + $0x1e0] sm:$0xff]
        %v444 = vld [vmem:[#allocation2 + $0x1e8] sm:$0xff]
        %v445 = vld [vmem:[#allocation2 + $0x1f0] sm:$0xff]
        %v446 = vld [vmem:[#allocation2 + $0x1f8] sm:$0xff]
        %v447 = vld [vmem:[#allocation2 + $0x200] sm:$0xff]
        %v448 = vld [vmem:[#allocation2 + $0x208] sm:$0xff]
        %v449 = vld [vmem:[#allocation2 + $0x210] sm:$0xff]
        %v450 = vld [vmem:[#allocation2 + $0x218] sm:$0xff]
        %v451 = vld [vmem:[#allocation2 + $0x220] sm:$0xff]
        %v452 = vld [vmem:[#allocation2 + $0x228] sm:$0xff]
        %v453 = vld [vmem:[#allocation2 + $0x230] sm:$0xff]
        %v454 = vld [vmem:[#allocation2 + $0x238] sm:$0xff]
        %v455 = vld [vmem:[#allocation2 + $0x240] sm:$0xff]
        %v456 = vld [vmem:[#allocation2 + $0x248] sm:$0xff]
        %v457 = vld [vmem:[#allocation2 + $0x250] sm:$0xff]
        %v458 = vld [vmem:[#allocation2 + $0x258] sm:$0xff]
        %v459 = vld [vmem:[#allocation2 + $0x260] sm:$0xff]
        %v460 = vld [vmem:[#allocation2 + $0x268] sm:$0xff]
        %v461 = vld [vmem:[#allocation2 + $0x270] sm:$0xff]
        %v462 = vld [vmem:[#allocation2 + $0x278] sm:$0xff]
        %v463 = vld [vmem:[#allocation2 + $0x280] sm:$0xff]
        %v464 = vld [vmem:[#allocation2 + $0x288] sm:$0xff]
        %v465 = vld [vmem:[#allocation2 + $0x290] sm:$0xff]
        %v466 = vld [vmem:[#allocation2 + $0x298] sm:$0xff]
        %v467 = vld [vmem:[#allocation2 + $0x2a0] sm:$0xff]
        %v468 = vld [vmem:[#allocation2 + $0x2a8] sm:$0xff]
        %v469 = vld [vmem:[#allocation2 + $0x2b0] sm:$0xff]
        %v470 = vld [vmem:[#allocation2 + $0x2b8] sm:$0xff]
        %v471 = vld [vmem:[#allocation2 + $0x2c0] sm:$0xff]
        %v472 = vld [vmem:[#allocation2 + $0x2c8] sm:$0xff]
        %v473 = vld [vmem:[#allocation2 + $0x2d0] sm:$0xff]
        %v474 = vld [vmem:[#allocation2 + $0x2d8] sm:$0xff]
        %v475 = vld [vmem:[#allocation2 + $0x2e0] sm:$0xff]
        %v476 = vld [vmem:[#allocation2 + $0x2e8] sm:$0xff]
        %v477 = vld [vmem:[#allocation2 + $0x2f0] sm:$0xff]
        %v478 = vld [vmem:[#allocation2 + $0x2f8] sm:$0xff]
        %v479 = vld [vmem:[#allocation2 + $0x300] sm:$0xff]
        %v480 = vld [vmem:[#allocation2 + $0x308] sm:$0xff]
        %v481 = vld [vmem:[#allocation2 + $0x310] sm:$0xff]
        %v482 = vld [vmem:[#allocation2 + $0x318] sm:$0xff]
        %v483 = vld [vmem:[#allocation2 + $0x320] sm:$0xff]
        %v484 = vld [vmem:[#allocation2 + $0x328] sm:$0xff]
        %v485 = vld [vmem:[#allocation2 + $0x330] sm:$0xff]
        %v486 = vld [vmem:[#allocation2 + $0x338] sm:$0xff]
        %v487 = vld [vmem:[#allocation2 + $0x340] sm:$0xff]
        %v488 = vld [vmem:[#allocation2 + $0x348] sm:$0xff]
        %v489 = vld [vmem:[#allocation2 + $0x350] sm:$0xff]
        %v490 = vld [vmem:[#allocation2 + $0x358] sm:$0xff]
        %v491 = vld [vmem:[#allocation2 + $0x360] sm:$0xff]
        %v492 = vld [vmem:[#allocation2 + $0x368] sm:$0xff]
        %v493 = vld [vmem:[#allocation2 + $0x370] sm:$0xff]
        %v494 = vld [vmem:[#allocation2 + $0x378] sm:$0xff]
        %v495 = vld [vmem:[#allocation2 + $0x380] sm:$0xff]
        %v496 = vld [vmem:[#allocation2 + $0x388] sm:$0xff]
        %v497 = vld [vmem:[#allocation2 + $0x390] sm:$0xff]
        %v498 = vld [vmem:[#allocation2 + $0x398] sm:$0xff]
        %v499 = vld [vmem:[#allocation2 + $0x3a0] sm:$0xff]
        %v500 = vld [vmem:[#allocation2 + $0x3a8] sm:$0xff]
        %v501 = vld [vmem:[#allocation2 + $0x3b0] sm:$0xff]
        %v502 = vld [vmem:[#allocation2 + $0x3b8] sm:$0xff]
        %v503 = vld [vmem:[#allocation2 + $0x3c0] sm:$0xff]
        %v504 = vld [vmem:[#allocation2 + $0x3c8] sm:$0xff]
        %v505 = vld [vmem:[#allocation2 + $0x3d0] sm:$0xff]
        %v506 = vld [vmem:[#allocation2 + $0x3d8] sm:$0xff]
        %v507 = vld [vmem:[#allocation2 + $0x3e0] sm:$0xff]
        %v508 = vld [vmem:[#allocation2 + $0x3e8] sm:$0xff]
        %v509 = vld [vmem:[#allocation2 + $0x3f0] sm:$0xff]
        %v510 = vld [vmem:[#allocation2 + $0x3f8] sm:$0xff]
        %v511 = vld [vmem:[#allocation2 + $0x400] sm:$0xff]
        %v512 = vld [vmem:[#allocation2 + $0x408] sm:$0xff]
        %v513 = vld [vmem:[#allocation2 + $0x410] sm:$0xff]
        %v514 = vld [vmem:[#allocation2 + $0x418] sm:$0xff]
        %v515 = vld [vmem:[#allocation2 + $0x420] sm:$0xff]
        %v516 = vld [vmem:[#allocation2 + $0x428] sm:$0xff]
        %v517 = vld [vmem:[#allocation2 + $0x430] sm:$0xff]
        %v518 = vld [vmem:[#allocation2 + $0x438] sm:$0xff]
        %v519 = vld [vmem:[#allocation2 + $0x440] sm:$0xff]
        %v520 = vld [vmem:[#allocation2 + $0x448] sm:$0xff]
        %v521 = vld [vmem:[#allocation2 + $0x450] sm:$0xff]
        %v522 = vld [vmem:[#allocation2 + $0x458] sm:$0xff]
        %v523 = vld [vmem:[#allocation2 + $0x460] sm:$0xff]
        %v524 = vld [vmem:[#allocation2 + $0x468] sm:$0xff]
        %v525 = vld [vmem:[#allocation2 + $0x470] sm:$0xff]
        %v526 = vld [vmem:[#allocation2 + $0x478] sm:$0xff]
        %v527 = vld [vmem:[#allocation2 + $0x480] sm:$0xff]
        %v528 = vld [vmem:[#allocation2 + $0x488] sm:$0xff]
        %v529 = vld [vmem:[#allocation2 + $0x490] sm:$0xff]
        %v530 = vld [vmem:[#allocation2 + $0x498] sm:$0xff]
        %v531 = vld [vmem:[#allocation2 + $0x4a0] sm:$0xff]
        %v532 = vld [vmem:[#allocation2 + $0x4a8] sm:$0xff]
        %v533 = vld [vmem:[#allocation2 + $0x4b0] sm:$0xff]
        %v534 = vld [vmem:[#allocation2 + $0x4b8] sm:$0xff]
        %v535 = vld [vmem:[#allocation2 + $0x4c0] sm:$0xff]
        %v536 = vld [vmem:[#allocation2 + $0x4c8] sm:$0xff]
        %v537 = vld [vmem:[#allocation2 + $0x4d0] sm:$0xff]
        %v538 = vld [vmem:[#allocation2 + $0x4d8] sm:$0xff]
        %v539 = vld [vmem:[#allocation2 + $0x4e0] sm:$0xff]
        %v540 = vld [vmem:[#allocation2 + $0x4e8] sm:$0xff]
        %v541 = vld [vmem:[#allocation2 + $0x4f0] sm:$0xff]
        %v542 = vld [vmem:[#allocation2 + $0x4f8] sm:$0xff]
        %v543 = vld [vmem:[#allocation2 + $0x500] sm:$0xff]
        %v544 = vld [vmem:[#allocation2 + $0x508] sm:$0xff]
        %v545 = vld [vmem:[#allocation2 + $0x510] sm:$0xff]
        %v546 = vld [vmem:[#allocation2 + $0x518] sm:$0xff]
        %v547 = vld [vmem:[#allocation2 + $0x520] sm:$0xff]
        %v548 = vld [vmem:[#allocation2 + $0x528] sm:$0xff]
        %v549 = vld [vmem:[#allocation2 + $0x530] sm:$0xff]
        %v550 = vld [vmem:[#allocation2 + $0x538] sm:$0xff]
        %v551 = vld [vmem:[#allocation2 + $0x540] sm:$0xff]
        %v552 = vld [vmem:[#allocation2 + $0x548] sm:$0xff]
        %v553 = vld [vmem:[#allocation2 + $0x550] sm:$0xff]
        %v554 = vld [vmem:[#allocation2 + $0x558] sm:$0xff]
        %v555 = vld [vmem:[#allocation2 + $0x560] sm:$0xff]
        %v556 = vld [vmem:[#allocation2 + $0x568] sm:$0xff]
        %v557 = vld [vmem:[#allocation2 + $0x570] sm:$0xff]
        %v558 = vld [vmem:[#allocation2 + $0x578] sm:$0xff]
        %v559 = vld [vmem:[#allocation2 + $0x580] sm:$0xff]
        %v560 = vld [vmem:[#allocation2 + $0x588] sm:$0xff]
        %v561 = vld [vmem:[#allocation2 + $0x590] sm:$0xff]
        %v562 = vld [vmem:[#allocation2 + $0x598] sm:$0xff]
        %v563 = vld [vmem:[#allocation2 + $0x5a0] sm:$0xff]
        %v564 = vld [vmem:[#allocation2 + $0x5a8] sm:$0xff]
        %v565 = vld [vmem:[#allocation2 + $0x5b0] sm:$0xff]
        %v566 = vld [vmem:[#allocation2 + $0x5b8] sm:$0xff]
        %v567 = vld [vmem:[#allocation2 + $0x5c0] sm:$0xff]
        %v568 = vld [vmem:[#allocation2 + $0x5c8] sm:$0xff]
        %v569 = vld [vmem:[#allocation2 + $0x5d0] sm:$0xff]
        %v570 = vld [vmem:[#allocation2 + $0x5d8] sm:$0xff]
        %v571 = vld [vmem:[#allocation2 + $0x5e0] sm:$0xff]
        %v572 = vld [vmem:[#allocation2 + $0x5e8] sm:$0xff]
        %v573 = vld [vmem:[#allocation2 + $0x5f0] sm:$0xff]
        %v574 = vld [vmem:[#allocation2 + $0x5f8] sm:$0xff]
        %v575 = vld [vmem:[#allocation2 + $0x600] sm:$0xff]
        %v576 = vld [vmem:[#allocation2 + $0x608] sm:$0xff]
        %v577 = vld [vmem:[#allocation2 + $0x610] sm:$0xff]
        %v578 = vld [vmem:[#allocation2 + $0x618] sm:$0xff]
        %v579 = vld [vmem:[#allocation2 + $0x620] sm:$0xff]
        %v580 = vld [vmem:[#allocation2 + $0x628] sm:$0xff]
        %v581 = vld [vmem:[#allocation2 + $0x630] sm:$0xff]
        %v582 = vld [vmem:[#allocation2 + $0x638] sm:$0xff]
        %v583 = vld [vmem:[#allocation2 + $0x640] sm:$0xff]
        %v584 = vld [vmem:[#allocation2 + $0x648] sm:$0xff]
        %v585 = vld [vmem:[#allocation2 + $0x650] sm:$0xff]
        %v586 = vld [vmem:[#allocation2 + $0x658] sm:$0xff]
        %v587 = vld [vmem:[#allocation2 + $0x660] sm:$0xff]
        %v588 = vld [vmem:[#allocation2 + $0x668] sm:$0xff]
        %v589 = vld [vmem:[#allocation2 + $0x670] sm:$0xff]
        %v590 = vld [vmem:[#allocation2 + $0x678] sm:$0xff]
        %v591 = vld [vmem:[#allocation2 + $0x680] sm:$0xff]
        %v592 = vld [vmem:[#allocation2 + $0x688] sm:$0xff]
        %v593 = vld [vmem:[#allocation2 + $0x690] sm:$0xff]
        %v594 = vld [vmem:[#allocation2 + $0x698] sm:$0xff]
        %v595 = vld [vmem:[#allocation2 + $0x6a0] sm:$0xff]
        %v596 = vld [vmem:[#allocation2 + $0x6a8] sm:$0xff]
        %v597 = vld [vmem:[#allocation2 + $0x6b0] sm:$0xff]
        %v598 = vld [vmem:[#allocation2 + $0x6b8] sm:$0xff]
        %v599 = vld [vmem:[#allocation2 + $0x6c0] sm:$0xff]
        %v600 = vld [vmem:[#allocation2 + $0x6c8] sm:$0xff]
        %v601 = vld [vmem:[#allocation2 + $0x6d0] sm:$0xff]
        %v602 = vld [vmem:[#allocation2 + $0x6d8] sm:$0xff]
        %v603 = vld [vmem:[#allocation2 + $0x6e0] sm:$0xff]
        %v604 = vld [vmem:[#allocation2 + $0x6e8] sm:$0xff]
        %v605 = vld [vmem:[#allocation2 + $0x6f0] sm:$0xff]
        %v606 = vld [vmem:[#allocation2 + $0x6f8] sm:$0xff]
        %v607 = vld [vmem:[#allocation2 + $0x700] sm:$0xff]
        %v608 = vld [vmem:[#allocation2 + $0x708] sm:$0xff]
        %v609 = vld [vmem:[#allocation2 + $0x710] sm:$0xff]
        %v610 = vld [vmem:[#allocation2 + $0x718] sm:$0xff]
        %v611 = vld [vmem:[#allocation2 + $0x720] sm:$0xff]
        %v612 = vld [vmem:[#allocation2 + $0x728] sm:$0xff]
        %v613 = vld [vmem:[#allocation2 + $0x730] sm:$0xff]
        %v614 = vld [vmem:[#allocation2 + $0x738] sm:$0xff]
        %v615 = vld [vmem:[#allocation2 + $0x740] sm:$0xff]
        %v616 = vld [vmem:[#allocation2 + $0x748] sm:$0xff]
        %v617 = vld [vmem:[#allocation2 + $0x750] sm:$0xff]
        %v618 = vld [vmem:[#allocation2 + $0x758] sm:$0xff]
        %v619 = vld [vmem:[#allocation2 + $0x760] sm:$0xff]
        %v620 = vld [vmem:[#allocation2 + $0x768] sm:$0xff]
        %v621 = vld [vmem:[#allocation2 + $0x770] sm:$0xff]
        %v622 = vld [vmem:[#allocation2 + $0x778] sm:$0xff]
        %v623 = vld [vmem:[#allocation2 + $0x780] sm:$0xff]
        %v624 = vld [vmem:[#allocation2 + $0x788] sm:$0xff]
        %v625 = vld [vmem:[#allocation2 + $0x790] sm:$0xff]
        %v626 = vld [vmem:[#allocation2 + $0x798] sm:$0xff]
        %v627 = vld [vmem:[#allocation2 + $0x7a0] sm:$0xff]
        %v628 = vld [vmem:[#allocation2 + $0x7a8] sm:$0xff]
        %v629 = vld [vmem:[#allocation2 + $0x7b0] sm:$0xff]
        %v630 = vld [vmem:[#allocation2 + $0x7b8] sm:$0xff]
        %v631 = vld [vmem:[#allocation2 + $0x7c0] sm:$0xff]
        %v632 = vld [vmem:[#allocation2 + $0x7c8] sm:$0xff]
        %v633 = vld [vmem:[#allocation2 + $0x7d0] sm:$0xff]
        %v634 = vld [vmem:[#allocation2 + $0x7d8] sm:$0xff]
        %v635 = vld [vmem:[#allocation2 + $0x7e0] sm:$0xff]
        %v636 = vld [vmem:[#allocation2 + $0x7e8] sm:$0xff]
        %v637 = vld [vmem:[#allocation2 + $0x7f0] sm:$0xff]
        %v638 = vld [vmem:[#allocation2 + $0x7f8] sm:$0xff]
        %v639 = vld [vmem:[%s2] sm:$0xff]
        %v641 = vperm.slane %v639, 0
        %v642 = vperm.slane %v639, 1
        %v643 = vperm.slane %v639, 2
        %v644 = vperm.slane %v639, 3
        %v645 = vperm.slane %v639, 4
        %v646 = vperm.slane %v639, 5
        %v647 = vperm.slane %v639, 6
        %v648 = vperm.slane %v639, 7
        %v659 = vunpack.c.l.b16 %v381
        %v660 = vunpack.c.h.b16 %v381
        %v661 = vunpack.c.l.b16 %v382
        %v662 = vunpack.c.h.b16 %v382
        %v663 = vpack.c.b16 %v659, %v659
        %v664 = vpack.c.b16 %v660, %v660
        %v665 = vpack.c.b16 %v661, %v661
        %v666 = vpack.c.b16 %v662, %v662
        %v927 = vunpack.c.l.b16 %v383
        %v928 = vunpack.c.h.b16 %v383
        %v929 = vunpack.c.l.b16 %v384
        %v930 = vunpack.c.h.b16 %v384
        %v931 = vunpack.c.l.b16 %v385
        %v932 = vunpack.c.h.b16 %v385
        %v933 = vunpack.c.l.b16 %v386
        %v934 = vunpack.c.h.b16 %v386
        %v935 = vunpack.c.l.b16 %v387
        %v936 = vunpack.c.h.b16 %v387
        %v937 = vunpack.c.l.b16 %v388
        %v938 = vunpack.c.h.b16 %v388
        %v939 = vunpack.c.l.b16 %v389
        %v940 = vunpack.c.h.b16 %v389
        %v941 = vunpack.c.l.b16 %v390
        %v942 = vunpack.c.h.b16 %v390
        %v943 = vunpack.c.l.b16 %v391
        %v944 = vunpack.c.h.b16 %v391
        %v945 = vunpack.c.l.b16 %v392
        %v946 = vunpack.c.h.b16 %v392
        %v947 = vunpack.c.l.b16 %v393
        %v948 = vunpack.c.h.b16 %v393
        %v949 = vunpack.c.l.b16 %v394
        %v950 = vunpack.c.h.b16 %v394
        %v951 = vunpack.c.l.b16 %v395
        %v952 = vunpack.c.h.b16 %v395
        %v953 = vunpack.c.l.b16 %v396
        %v954 = vunpack.c.h.b16 %v396
        %v955 = vunpack.c.l.b16 %v397
        %v956 = vunpack.c.h.b16 %v397
        %v957 = vunpack.c.l.b16 %v398
        %v958 = vunpack.c.h.b16 %v398
        %v959 = vunpack.c.l.b16 %v399
        %v960 = vunpack.c.h.b16 %v399
        %v961 = vunpack.c.l.b16 %v400
        %v962 = vunpack.c.h.b16 %v400
        %v963 = vunpack.c.l.b16 %v401
        %v964 = vunpack.c.h.b16 %v401
        %v965 = vunpack.c.l.b16 %v402
        %v966 = vunpack.c.h.b16 %v402
        %v967 = vunpack.c.l.b16 %v403
        %v968 = vunpack.c.h.b16 %v403
        %v969 = vunpack.c.l.b16 %v404
        %v970 = vunpack.c.h.b16 %v404
        %v971 = vunpack.c.l.b16 %v405
        %v972 = vunpack.c.h.b16 %v405
        %v973 = vunpack.c.l.b16 %v406
        %v974 = vunpack.c.h.b16 %v406
        %v975 = vunpack.c.l.b16 %v407
        %v976 = vunpack.c.h.b16 %v407
        %v977 = vunpack.c.l.b16 %v408
        %v978 = vunpack.c.h.b16 %v408
        %v979 = vunpack.c.l.b16 %v409
        %v980 = vunpack.c.h.b16 %v409
        %v981 = vunpack.c.l.b16 %v410
        %v982 = vunpack.c.h.b16 %v410
        %v983 = vunpack.c.l.b16 %v411
        %v984 = vunpack.c.h.b16 %v411
        %v985 = vunpack.c.l.b16 %v412
        %v986 = vunpack.c.h.b16 %v412
        %v987 = vunpack.c.l.b16 %v413
        %v988 = vunpack.c.h.b16 %v413
        %v989 = vunpack.c.l.b16 %v414
        %v990 = vunpack.c.h.b16 %v414
        %v991 = vunpack.c.l.b16 %v415
        %v992 = vunpack.c.h.b16 %v415
        %v993 = vunpack.c.l.b16 %v416
        %v994 = vunpack.c.h.b16 %v416
        %v995 = vunpack.c.l.b16 %v417
        %v996 = vunpack.c.h.b16 %v417
        %v997 = vunpack.c.l.b16 %v418
        %v998 = vunpack.c.h.b16 %v418
        %v999 = vunpack.c.l.b16 %v419
        %v1000 = vunpack.c.h.b16 %v419
        %v1001 = vunpack.c.l.b16 %v420
        %v1002 = vunpack.c.h.b16 %v420
        %v1003 = vunpack.c.l.b16 %v421
        %v1004 = vunpack.c.h.b16 %v421
        %v1005 = vunpack.c.l.b16 %v422
        %v1006 = vunpack.c.h.b16 %v422
        %v1007 = vunpack.c.l.b16 %v423
        %v1008 = vunpack.c.h.b16 %v423
        %v1009 = vunpack.c.l.b16 %v424
        %v1010 = vunpack.c.h.b16 %v424
        %v1011 = vunpack.c.l.b16 %v425
        %v1012 = vunpack.c.h.b16 %v425
        %v1013 = vunpack.c.l.b16 %v426
        %v1014 = vunpack.c.h.b16 %v426
        %v1015 = vunpack.c.l.b16 %v427
        %v1016 = vunpack.c.h.b16 %v427
        %v1017 = vunpack.c.l.b16 %v428
        %v1018 = vunpack.c.h.b16 %v428
        %v1019 = vunpack.c.l.b16 %v429
        %v1020 = vunpack.c.h.b16 %v429
        %v1021 = vunpack.c.l.b16 %v430
        %v1022 = vunpack.c.h.b16 %v430
        %v1023 = vunpack.c.l.b16 %v431
        %v1024 = vunpack.c.h.b16 %v431
        %v1025 = vunpack.c.l.b16 %v432
        %v1026 = vunpack.c.h.b16 %v432
        %v1027 = vunpack.c.l.b16 %v433
        %v1028 = vunpack.c.h.b16 %v433
        %v1029 = vunpack.c.l.b16 %v434
        %v1030 = vunpack.c.h.b16 %v434
        %v1031 = vunpack.c.l.b16 %v435
        %v1032 = vunpack.c.h.b16 %v435
        %v1033 = vunpack.c.l.b16 %v436
        %v1034 = vunpack.c.h.b16 %v436
        %v1035 = vunpack.c.l.b16 %v437
        %v1036 = vunpack.c.h.b16 %v437
        %v1037 = vunpack.c.l.b16 %v438
        %v1038 = vunpack.c.h.b16 %v438
        %v1039 = vunpack.c.l.b16 %v439
        %v1040 = vunpack.c.h.b16 %v439
        %v1041 = vunpack.c.l.b16 %v440
        %v1042 = vunpack.c.h.b16 %v440
        %v1043 = vunpack.c.l.b16 %v441
        %v1044 = vunpack.c.h.b16 %v441
        %v1045 = vunpack.c.l.b16 %v442
        %v1046 = vunpack.c.h.b16 %v442
        %v1047 = vunpack.c.l.b16 %v443
        %v1048 = vunpack.c.h.b16 %v443
        %v1049 = vunpack.c.l.b16 %v444
        %v1050 = vunpack.c.h.b16 %v444
        %v1051 = vunpack.c.l.b16 %v445
        %v1052 = vunpack.c.h.b16 %v445
        %v1053 = vunpack.c.l.b16 %v446
        %v1054 = vunpack.c.h.b16 %v446
        %v1055 = vunpack.c.l.b16 %v447
        %v1056 = vunpack.c.h.b16 %v447
        %v1057 = vunpack.c.l.b16 %v448
        %v1058 = vunpack.c.h.b16 %v448
        %v1059 = vunpack.c.l.b16 %v449
        %v1060 = vunpack.c.h.b16 %v449
        %v1061 = vunpack.c.l.b16 %v450
        %v1062 = vunpack.c.h.b16 %v450
        %v1063 = vunpack.c.l.b16 %v451
        %v1064 = vunpack.c.h.b16 %v451
        %v1065 = vunpack.c.l.b16 %v452
        %v1066 = vunpack.c.h.b16 %v452
        %v1067 = vunpack.c.l.b16 %v453
        %v1068 = vunpack.c.h.b16 %v453
        %v1069 = vunpack.c.l.b16 %v454
        %v1070 = vunpack.c.h.b16 %v454
        %v1071 = vunpack.c.l.b16 %v455
        %v1072 = vunpack.c.h.b16 %v455
        %v1073 = vunpack.c.l.b16 %v456
        %v1074 = vunpack.c.h.b16 %v456
        %v1075 = vunpack.c.l.b16 %v457
        %v1076 = vunpack.c.h.b16 %v457
        %v1077 = vunpack.c.l.b16 %v458
        %v1078 = vunpack.c.h.b16 %v458
        %v1079 = vunpack.c.l.b16 %v459
        %v1080 = vunpack.c.h.b16 %v459
        %v1081 = vunpack.c.l.b16 %v460
        %v1082 = vunpack.c.h.b16 %v460
        %v1083 = vunpack.c.l.b16 %v461
        %v1084 = vunpack.c.h.b16 %v461
        %v1085 = vunpack.c.l.b16 %v462
        %v1086 = vunpack.c.h.b16 %v462
        %v1087 = vunpack.c.l.b16 %v463
        %v1088 = vunpack.c.h.b16 %v463
        %v1089 = vunpack.c.l.b16 %v464
        %v1090 = vunpack.c.h.b16 %v464
        %v1091 = vunpack.c.l.b16 %v465
        %v1092 = vunpack.c.h.b16 %v465
        %v1093 = vunpack.c.l.b16 %v466
        %v1094 = vunpack.c.h.b16 %v466
        %v1095 = vunpack.c.l.b16 %v467
        %v1096 = vunpack.c.h.b16 %v467
        %v1097 = vunpack.c.l.b16 %v468
        %v1098 = vunpack.c.h.b16 %v468
        %v1099 = vunpack.c.l.b16 %v469
        %v1100 = vunpack.c.h.b16 %v469
        %v1101 = vunpack.c.l.b16 %v470
        %v1102 = vunpack.c.h.b16 %v470
        %v1103 = vunpack.c.l.b16 %v471
        %v1104 = vunpack.c.h.b16 %v471
        %v1105 = vunpack.c.l.b16 %v472
        %v1106 = vunpack.c.h.b16 %v472
        %v1107 = vunpack.c.l.b16 %v473
        %v1108 = vunpack.c.h.b16 %v473
        %v1109 = vunpack.c.l.b16 %v474
        %v1110 = vunpack.c.h.b16 %v474
        %v1111 = vunpack.c.l.b16 %v475
        %v1112 = vunpack.c.h.b16 %v475
        %v1113 = vunpack.c.l.b16 %v476
        %v1114 = vunpack.c.h.b16 %v476
        %v1115 = vunpack.c.l.b16 %v477
        %v1116 = vunpack.c.h.b16 %v477
        %v1117 = vunpack.c.l.b16 %v478
        %v1118 = vunpack.c.h.b16 %v478
        %v1119 = vunpack.c.l.b16 %v479
        %v1120 = vunpack.c.h.b16 %v479
        %v1121 = vunpack.c.l.b16 %v480
        %v1122 = vunpack.c.h.b16 %v480
        %v1123 = vunpack.c.l.b16 %v481
        %v1124 = vunpack.c.h.b16 %v481
        %v1125 = vunpack.c.l.b16 %v482
        %v1126 = vunpack.c.h.b16 %v482
        %v1127 = vunpack.c.l.b16 %v483
        %v1128 = vunpack.c.h.b16 %v483
        %v1129 = vunpack.c.l.b16 %v484
        %v1130 = vunpack.c.h.b16 %v484
        %v1131 = vunpack.c.l.b16 %v485
        %v1132 = vunpack.c.h.b16 %v485
        %v1133 = vunpack.c.l.b16 %v486
        %v1134 = vunpack.c.h.b16 %v486
        %v1135 = vunpack.c.l.b16 %v487
        %v1136 = vunpack.c.h.b16 %v487
        %v1137 = vunpack.c.l.b16 %v488
        %v1138 = vunpack.c.h.b16 %v488
        %v1139 = vunpack.c.l.b16 %v489
        %v1140 = vunpack.c.h.b16 %v489
        %v1141 = vunpack.c.l.b16 %v490
        %v1142 = vunpack.c.h.b16 %v490
        %v1143 = vunpack.c.l.b16 %v491
        %v1144 = vunpack.c.h.b16 %v491
        %v1145 = vunpack.c.l.b16 %v492
        %v1146 = vunpack.c.h.b16 %v492
        %v1147 = vunpack.c.l.b16 %v493
        %v1148 = vunpack.c.h.b16 %v493
        %v1149 = vunpack.c.l.b16 %v494
        %v1150 = vunpack.c.h.b16 %v494
        %v1151 = vunpack.c.l.b16 %v495
        %v1152 = vunpack.c.h.b16 %v495
        %v1153 = vunpack.c.l.b16 %v496
        %v1154 = vunpack.c.h.b16 %v496
        %v1155 = vunpack.c.l.b16 %v497
        %v1156 = vunpack.c.h.b16 %v497
        %v1157 = vunpack.c.l.b16 %v498
        %v1158 = vunpack.c.h.b16 %v498
        %v1159 = vunpack.c.l.b16 %v499
        %v1160 = vunpack.c.h.b16 %v499
        %v1161 = vunpack.c.l.b16 %v500
        %v1162 = vunpack.c.h.b16 %v500
        %v1163 = vunpack.c.l.b16 %v501
        %v1164 = vunpack.c.h.b16 %v501
        %v1165 = vunpack.c.l.b16 %v502
        %v1166 = vunpack.c.h.b16 %v502
        %v1167 = vunpack.c.l.b16 %v503
        %v1168 = vunpack.c.h.b16 %v503
        %v1169 = vunpack.c.l.b16 %v504
        %v1170 = vunpack.c.h.b16 %v504
        %v1171 = vunpack.c.l.b16 %v505
        %v1172 = vunpack.c.h.b16 %v505
        %v1173 = vunpack.c.l.b16 %v506
        %v1174 = vunpack.c.h.b16 %v506
        %v1175 = vunpack.c.l.b16 %v507
        %v1176 = vunpack.c.h.b16 %v507
        %v1177 = vunpack.c.l.b16 %v508
        %v1178 = vunpack.c.h.b16 %v508
        %v1179 = vunpack.c.l.b16 %v509
        %v1180 = vunpack.c.h.b16 %v509
        %v1181 = vunpack.c.l.b16 %v510
        %v1182 = vunpack.c.h.b16 %v510
        %v1183 = vunpack.c.l.b16 %v511
        %v1184 = vunpack.c.h.b16 %v511
        %v1185 = vunpack.c.l.b16 %v512
        %v1186 = vunpack.c.h.b16 %v512
        %v1187 = vunpack.c.l.b16 %v513
        %v1188 = vunpack.c.h.b16 %v513
        %v1189 = vunpack.c.l.b16 %v514
        %v1190 = vunpack.c.h.b16 %v514
        %v1191 = vunpack.c.l.b16 %v515
        %v1192 = vunpack.c.h.b16 %v515
        %v1193 = vunpack.c.l.b16 %v516
        %v1194 = vunpack.c.h.b16 %v516
        %v1195 = vunpack.c.l.b16 %v517
        %v1196 = vunpack.c.h.b16 %v517
        %v1197 = vunpack.c.l.b16 %v518
        %v1198 = vunpack.c.h.b16 %v518
        %v1199 = vunpack.c.l.b16 %v519
        %v1200 = vunpack.c.h.b16 %v519
        %v1201 = vunpack.c.l.b16 %v520
        %v1202 = vunpack.c.h.b16 %v520
        %v1203 = vunpack.c.l.b16 %v521
        %v1204 = vunpack.c.h.b16 %v521
        %v1205 = vunpack.c.l.b16 %v522
        %v1206 = vunpack.c.h.b16 %v522
        %v1207 = vunpack.c.l.b16 %v523
        %v1208 = vunpack.c.h.b16 %v523
        %v1209 = vunpack.c.l.b16 %v524
        %v1210 = vunpack.c.h.b16 %v524
        %v1211 = vunpack.c.l.b16 %v525
        %v1212 = vunpack.c.h.b16 %v525
        %v1213 = vunpack.c.l.b16 %v526
        %v1214 = vunpack.c.h.b16 %v526
        %v1215 = vunpack.c.l.b16 %v527
        %v1216 = vunpack.c.h.b16 %v527
        %v1217 = vunpack.c.l.b16 %v528
        %v1218 = vunpack.c.h.b16 %v528
        %v1219 = vunpack.c.l.b16 %v529
        %v1220 = vunpack.c.h.b16 %v529
        %v1221 = vunpack.c.l.b16 %v530
        %v1222 = vunpack.c.h.b16 %v530
        %v1223 = vunpack.c.l.b16 %v531
        %v1224 = vunpack.c.h.b16 %v531
        %v1225 = vunpack.c.l.b16 %v532
        %v1226 = vunpack.c.h.b16 %v532
        %v1227 = vunpack.c.l.b16 %v533
        %v1228 = vunpack.c.h.b16 %v533
        %v1229 = vunpack.c.l.b16 %v534
        %v1230 = vunpack.c.h.b16 %v534
        %v1231 = vunpack.c.l.b16 %v535
        %v1232 = vunpack.c.h.b16 %v535
        %v1233 = vunpack.c.l.b16 %v536
        %v1234 = vunpack.c.h.b16 %v536
        %v1235 = vunpack.c.l.b16 %v537
        %v1236 = vunpack.c.h.b16 %v537
        %v1237 = vunpack.c.l.b16 %v538
        %v1238 = vunpack.c.h.b16 %v538
        %v1239 = vunpack.c.l.b16 %v539
        %v1240 = vunpack.c.h.b16 %v539
        %v1241 = vunpack.c.l.b16 %v540
        %v1242 = vunpack.c.h.b16 %v540
        %v1243 = vunpack.c.l.b16 %v541
        %v1244 = vunpack.c.h.b16 %v541
        %v1245 = vunpack.c.l.b16 %v542
        %v1246 = vunpack.c.h.b16 %v542
        %v1247 = vunpack.c.l.b16 %v543
        %v1248 = vunpack.c.h.b16 %v543
        %v1249 = vunpack.c.l.b16 %v544
        %v1250 = vunpack.c.h.b16 %v544
        %v1251 = vunpack.c.l.b16 %v545
        %v1252 = vunpack.c.h.b16 %v545
        %v1253 = vunpack.c.l.b16 %v546
        %v1254 = vunpack.c.h.b16 %v546
        %v1255 = vunpack.c.l.b16 %v547
        %v1256 = vunpack.c.h.b16 %v547
        %v1257 = vunpack.c.l.b16 %v548
        %v1258 = vunpack.c.h.b16 %v548
        %v1259 = vunpack.c.l.b16 %v549
        %v1260 = vunpack.c.h.b16 %v549
        %v1261 = vunpack.c.l.b16 %v550
        %v1262 = vunpack.c.h.b16 %v550
        %v1263 = vunpack.c.l.b16 %v551
        %v1264 = vunpack.c.h.b16 %v551
        %v1265 = vunpack.c.l.b16 %v552
        %v1266 = vunpack.c.h.b16 %v552
        %v1267 = vunpack.c.l.b16 %v553
        %v1268 = vunpack.c.h.b16 %v553
        %v1269 = vunpack.c.l.b16 %v554
        %v1270 = vunpack.c.h.b16 %v554
        %v1271 = vunpack.c.l.b16 %v555
        %v1272 = vunpack.c.h.b16 %v555
        %v1273 = vunpack.c.l.b16 %v556
        %v1274 = vunpack.c.h.b16 %v556
        %v1275 = vunpack.c.l.b16 %v557
        %v1276 = vunpack.c.h.b16 %v557
        %v1277 = vunpack.c.l.b16 %v558
        %v1278 = vunpack.c.h.b16 %v558
        %v1279 = vunpack.c.l.b16 %v559
        %v1280 = vunpack.c.h.b16 %v559
        %v1281 = vunpack.c.l.b16 %v560
        %v1282 = vunpack.c.h.b16 %v560
        %v1283 = vunpack.c.l.b16 %v561
        %v1284 = vunpack.c.h.b16 %v561
        %v1285 = vunpack.c.l.b16 %v562
        %v1286 = vunpack.c.h.b16 %v562
        %v1287 = vunpack.c.l.b16 %v563
        %v1288 = vunpack.c.h.b16 %v563
        %v1289 = vunpack.c.l.b16 %v564
        %v1290 = vunpack.c.h.b16 %v564
        %v1291 = vunpack.c.l.b16 %v565
        %v1292 = vunpack.c.h.b16 %v565
        %v1293 = vunpack.c.l.b16 %v566
        %v1294 = vunpack.c.h.b16 %v566
        %v1295 = vunpack.c.l.b16 %v567
        %v1296 = vunpack.c.h.b16 %v567
        %v1297 = vunpack.c.l.b16 %v568
        %v1298 = vunpack.c.h.b16 %v568
        %v1299 = vunpack.c.l.b16 %v569
        %v1300 = vunpack.c.h.b16 %v569
        %v1301 = vunpack.c.l.b16 %v570
        %v1302 = vunpack.c.h.b16 %v570
        %v1303 = vunpack.c.l.b16 %v571
        %v1304 = vunpack.c.h.b16 %v571
        %v1305 = vunpack.c.l.b16 %v572
        %v1306 = vunpack.c.h.b16 %v572
        %v1307 = vunpack.c.l.b16 %v573
        %v1308 = vunpack.c.h.b16 %v573
        %v1309 = vunpack.c.l.b16 %v574
        %v1310 = vunpack.c.h.b16 %v574
        %v1311 = vunpack.c.l.b16 %v575
        %v1312 = vunpack.c.h.b16 %v575
        %v1313 = vunpack.c.l.b16 %v576
        %v1314 = vunpack.c.h.b16 %v576
        %v1315 = vunpack.c.l.b16 %v577
        %v1316 = vunpack.c.h.b16 %v577
        %v1317 = vunpack.c.l.b16 %v578
        %v1318 = vunpack.c.h.b16 %v578
        %v1319 = vunpack.c.l.b16 %v579
        %v1320 = vunpack.c.h.b16 %v579
        %v1321 = vunpack.c.l.b16 %v580
        %v1322 = vunpack.c.h.b16 %v580
        %v1323 = vunpack.c.l.b16 %v581
        %v1324 = vunpack.c.h.b16 %v581
        %v1325 = vunpack.c.l.b16 %v582
        %v1326 = vunpack.c.h.b16 %v582
        %v1327 = vunpack.c.l.b16 %v583
        %v1328 = vunpack.c.h.b16 %v583
        %v1329 = vunpack.c.l.b16 %v584
        %v1330 = vunpack.c.h.b16 %v584
        %v1331 = vunpack.c.l.b16 %v585
        %v1332 = vunpack.c.h.b16 %v585
        %v1333 = vunpack.c.l.b16 %v586
        %v1334 = vunpack.c.h.b16 %v586
        %v1335 = vunpack.c.l.b16 %v587
        %v1336 = vunpack.c.h.b16 %v587
        %v1337 = vunpack.c.l.b16 %v588
        %v1338 = vunpack.c.h.b16 %v588
        %v1339 = vunpack.c.l.b16 %v589
        %v1340 = vunpack.c.h.b16 %v589
        %v1341 = vunpack.c.l.b16 %v590
        %v1342 = vunpack.c.h.b16 %v590
        %v1343 = vunpack.c.l.b16 %v591
        %v1344 = vunpack.c.h.b16 %v591
        %v1345 = vunpack.c.l.b16 %v592
        %v1346 = vunpack.c.h.b16 %v592
        %v1347 = vunpack.c.l.b16 %v593
        %v1348 = vunpack.c.h.b16 %v593
        %v1349 = vunpack.c.l.b16 %v594
        %v1350 = vunpack.c.h.b16 %v594
        %v1351 = vunpack.c.l.b16 %v595
        %v1352 = vunpack.c.h.b16 %v595
        %v1353 = vunpack.c.l.b16 %v596
        %v1354 = vunpack.c.h.b16 %v596
        %v1355 = vunpack.c.l.b16 %v597
        %v1356 = vunpack.c.h.b16 %v597
        %v1357 = vunpack.c.l.b16 %v598
        %v1358 = vunpack.c.h.b16 %v598
        %v1359 = vunpack.c.l.b16 %v599
        %v1360 = vunpack.c.h.b16 %v599
        %v1361 = vunpack.c.l.b16 %v600
        %v1362 = vunpack.c.h.b16 %v600
        %v1363 = vunpack.c.l.b16 %v601
        %v1364 = vunpack.c.h.b16 %v601
        %v1365 = vunpack.c.l.b16 %v602
        %v1366 = vunpack.c.h.b16 %v602
        %v1367 = vunpack.c.l.b16 %v603
        %v1368 = vunpack.c.h.b16 %v603
        %v1369 = vunpack.c.l.b16 %v604
        %v1370 = vunpack.c.h.b16 %v604
        %v1371 = vunpack.c.l.b16 %v605
        %v1372 = vunpack.c.h.b16 %v605
        %v1373 = vunpack.c.l.b16 %v606
        %v1374 = vunpack.c.h.b16 %v606
        %v1375 = vunpack.c.l.b16 %v607
        %v1376 = vunpack.c.h.b16 %v607
        %v1377 = vunpack.c.l.b16 %v608
        %v1378 = vunpack.c.h.b16 %v608
        %v1379 = vunpack.c.l.b16 %v609
        %v1380 = vunpack.c.h.b16 %v609
        %v1381 = vunpack.c.l.b16 %v610
        %v1382 = vunpack.c.h.b16 %v610
        %v1383 = vunpack.c.l.b16 %v611
        %v1384 = vunpack.c.h.b16 %v611
        %v1385 = vunpack.c.l.b16 %v612
        %v1386 = vunpack.c.h.b16 %v612
        %v1387 = vunpack.c.l.b16 %v613
        %v1388 = vunpack.c.h.b16 %v613
        %v1389 = vunpack.c.l.b16 %v614
        %v1390 = vunpack.c.h.b16 %v614
        %v1391 = vunpack.c.l.b16 %v615
        %v1392 = vunpack.c.h.b16 %v615
        %v1393 = vunpack.c.l.b16 %v616
        %v1394 = vunpack.c.h.b16 %v616
        %v1395 = vunpack.c.l.b16 %v617
        %v1396 = vunpack.c.h.b16 %v617
        %v1397 = vunpack.c.l.b16 %v618
        %v1398 = vunpack.c.h.b16 %v618
        %v1399 = vunpack.c.l.b16 %v619
        %v1400 = vunpack.c.h.b16 %v619
        %v1401 = vunpack.c.l.b16 %v620
        %v1402 = vunpack.c.h.b16 %v620
        %v1403 = vunpack.c.l.b16 %v621
        %v1404 = vunpack.c.h.b16 %v621
        %v1405 = vunpack.c.l.b16 %v622
        %v1406 = vunpack.c.h.b16 %v622
        %v1407 = vunpack.c.l.b16 %v623
        %v1408 = vunpack.c.h.b16 %v623
        %v1409 = vunpack.c.l.b16 %v624
        %v1410 = vunpack.c.h.b16 %v624
        %v1411 = vunpack.c.l.b16 %v625
        %v1412 = vunpack.c.h.b16 %v625
        %v1413 = vunpack.c.l.b16 %v626
        %v1414 = vunpack.c.h.b16 %v626
        %v1415 = vunpack.c.l.b16 %v627
        %v1416 = vunpack.c.h.b16 %v627
        %v1417 = vunpack.c.l.b16 %v628
        %v1418 = vunpack.c.h.b16 %v628
        %v1419 = vunpack.c.l.b16 %v629
        %v1420 = vunpack.c.h.b16 %v629
        %v1421 = vunpack.c.l.b16 %v630
        %v1422 = vunpack.c.h.b16 %v630
        %v1423 = vunpack.c.l.b16 %v631
        %v1424 = vunpack.c.h.b16 %v631
        %v1425 = vunpack.c.l.b16 %v632
        %v1426 = vunpack.c.h.b16 %v632
        %v1427 = vunpack.c.l.b16 %v633
        %v1428 = vunpack.c.h.b16 %v633
        %v1429 = vunpack.c.l.b16 %v634
        %v1430 = vunpack.c.h.b16 %v634
        %v1431 = vunpack.c.l.b16 %v635
        %v1432 = vunpack.c.h.b16 %v635
        %v1433 = vunpack.c.l.b16 %v636
        %v1434 = vunpack.c.h.b16 %v636
        %v1435 = vunpack.c.l.b16 %v637
        %v1436 = vunpack.c.h.b16 %v637
        %v1437 = vunpack.c.l.b16 %v638
        %v1438 = vunpack.c.h.b16 %v638
        %v1439 = vpack.c.b16 %v935, %v927
        %v1440 = vpack.c.b16 %v936, %v928
        %v1441 = vpack.c.b16 %v937, %v929
        %v1442 = vpack.c.b16 %v938, %v930
        %v1443 = vpack.c.b16 %v939, %v931
        %v1444 = vpack.c.b16 %v940, %v932
        %v1445 = vpack.c.b16 %v941, %v933
        %v1446 = vpack.c.b16 %v942, %v934
        %v1447 = vpack.c.b16 %v951, %v943
        %v1448 = vpack.c.b16 %v952, %v944
        %v1449 = vpack.c.b16 %v953, %v945
        %v1450 = vpack.c.b16 %v954, %v946
        %v1451 = vpack.c.b16 %v955, %v947
        %v1452 = vpack.c.b16 %v956, %v948
        %v1453 = vpack.c.b16 %v957, %v949
        %v1454 = vpack.c.b16 %v958, %v950
        %v1455 = vpack.c.b16 %v967, %v959
        %v1456 = vpack.c.b16 %v968, %v960
        %v1457 = vpack.c.b16 %v969, %v961
        %v1458 = vpack.c.b16 %v970, %v962
        %v1459 = vpack.c.b16 %v971, %v963
        %v1460 = vpack.c.b16 %v972, %v964
        %v1461 = vpack.c.b16 %v973, %v965
        %v1462 = vpack.c.b16 %v974, %v966
        %v1463 = vpack.c.b16 %v983, %v975
        %v1464 = vpack.c.b16 %v984, %v976
        %v1465 = vpack.c.b16 %v985, %v977
        %v1466 = vpack.c.b16 %v986, %v978
        %v1467 = vpack.c.b16 %v987, %v979
        %v1468 = vpack.c.b16 %v988, %v980
        %v1469 = vpack.c.b16 %v989, %v981
        %v1470 = vpack.c.b16 %v990, %v982
        %v1471 = vpack.c.b16 %v999, %v991
        %v1472 = vpack.c.b16 %v1000, %v992
        %v1473 = vpack.c.b16 %v1001, %v993
        %v1474 = vpack.c.b16 %v1002, %v994
        %v1475 = vpack.c.b16 %v1003, %v995
        %v1476 = vpack.c.b16 %v1004, %v996
        %v1477 = vpack.c.b16 %v1005, %v997
        %v1478 = vpack.c.b16 %v1006, %v998
        %v1479 = vpack.c.b16 %v1015, %v1007
        %v1480 = vpack.c.b16 %v1016, %v1008
        %v1481 = vpack.c.b16 %v1017, %v1009
        %v1482 = vpack.c.b16 %v1018, %v1010
        %v1483 = vpack.c.b16 %v1019, %v1011
        %v1484 = vpack.c.b16 %v1020, %v1012
        %v1485 = vpack.c.b16 %v1021, %v1013
        %v1486 = vpack.c.b16 %v1022, %v1014
        %v1487 = vpack.c.b16 %v1031, %v1023
        %v1488 = vpack.c.b16 %v1032, %v1024
        %v1489 = vpack.c.b16 %v1033, %v1025
        %v1490 = vpack.c.b16 %v1034, %v1026
        %v1491 = vpack.c.b16 %v1035, %v1027
        %v1492 = vpack.c.b16 %v1036, %v1028
        %v1493 = vpack.c.b16 %v1037, %v1029
        %v1494 = vpack.c.b16 %v1038, %v1030
        %v1495 = vpack.c.b16 %v1047, %v1039
        %v1496 = vpack.c.b16 %v1048, %v1040
        %v1497 = vpack.c.b16 %v1049, %v1041
        %v1498 = vpack.c.b16 %v1050, %v1042
        %v1499 = vpack.c.b16 %v1051, %v1043
        %v1500 = vpack.c.b16 %v1052, %v1044
        %v1501 = vpack.c.b16 %v1053, %v1045
        %v1502 = vpack.c.b16 %v1054, %v1046
        %v1503 = vpack.c.b16 %v1063, %v1055
        %v1504 = vpack.c.b16 %v1064, %v1056
        %v1505 = vpack.c.b16 %v1065, %v1057
        %v1506 = vpack.c.b16 %v1066, %v1058
        %v1507 = vpack.c.b16 %v1067, %v1059
        %v1508 = vpack.c.b16 %v1068, %v1060
        %v1509 = vpack.c.b16 %v1069, %v1061
        %v1510 = vpack.c.b16 %v1070, %v1062
        %v1511 = vpack.c.b16 %v1079, %v1071
        %v1512 = vpack.c.b16 %v1080, %v1072
        %v1513 = vpack.c.b16 %v1081, %v1073
        %v1514 = vpack.c.b16 %v1082, %v1074
        %v1515 = vpack.c.b16 %v1083, %v1075
        %v1516 = vpack.c.b16 %v1084, %v1076
        %v1517 = vpack.c.b16 %v1085, %v1077
        %v1518 = vpack.c.b16 %v1086, %v1078
        %v1519 = vpack.c.b16 %v1095, %v1087
        %v1520 = vpack.c.b16 %v1096, %v1088
        %v1521 = vpack.c.b16 %v1097, %v1089
        %v1522 = vpack.c.b16 %v1098, %v1090
        %v1523 = vpack.c.b16 %v1099, %v1091
        %v1524 = vpack.c.b16 %v1100, %v1092
        %v1525 = vpack.c.b16 %v1101, %v1093
        %v1526 = vpack.c.b16 %v1102, %v1094
        %v1527 = vpack.c.b16 %v1111, %v1103
        %v1528 = vpack.c.b16 %v1112, %v1104
        %v1529 = vpack.c.b16 %v1113, %v1105
        %v1530 = vpack.c.b16 %v1114, %v1106
        %v1531 = vpack.c.b16 %v1115, %v1107
        %v1532 = vpack.c.b16 %v1116, %v1108
        %v1533 = vpack.c.b16 %v1117, %v1109
        %v1534 = vpack.c.b16 %v1118, %v1110
        %v1535 = vpack.c.b16 %v1127, %v1119
        %v1536 = vpack.c.b16 %v1128, %v1120
        %v1537 = vpack.c.b16 %v1129, %v1121
        %v1538 = vpack.c.b16 %v1130, %v1122
        %v1539 = vpack.c.b16 %v1131, %v1123
        %v1540 = vpack.c.b16 %v1132, %v1124
        %v1541 = vpack.c.b16 %v1133, %v1125
        %v1542 = vpack.c.b16 %v1134, %v1126
        %v1543 = vpack.c.b16 %v1143, %v1135
        %v1544 = vpack.c.b16 %v1144, %v1136
        %v1545 = vpack.c.b16 %v1145, %v1137
        %v1546 = vpack.c.b16 %v1146, %v1138
        %v1547 = vpack.c.b16 %v1147, %v1139
        %v1548 = vpack.c.b16 %v1148, %v1140
        %v1549 = vpack.c.b16 %v1149, %v1141
        %v1550 = vpack.c.b16 %v1150, %v1142
        %v1551 = vpack.c.b16 %v1159, %v1151
        %v1552 = vpack.c.b16 %v1160, %v1152
        %v1553 = vpack.c.b16 %v1161, %v1153
        %v1554 = vpack.c.b16 %v1162, %v1154
        %v1555 = vpack.c.b16 %v1163, %v1155
        %v1556 = vpack.c.b16 %v1164, %v1156
        %v1557 = vpack.c.b16 %v1165, %v1157
        %v1558 = vpack.c.b16 %v1166, %v1158
        %v1559 = vpack.c.b16 %v1175, %v1167
        %v1560 = vpack.c.b16 %v1176, %v1168
        %v1561 = vpack.c.b16 %v1177, %v1169
        %v1562 = vpack.c.b16 %v1178, %v1170
        %v1563 = vpack.c.b16 %v1179, %v1171
        %v1564 = vpack.c.b16 %v1180, %v1172
        %v1565 = vpack.c.b16 %v1181, %v1173
        %v1566 = vpack.c.b16 %v1182, %v1174
        %v1567 = vpack.c.b16 %v1191, %v1183
        %v1568 = vpack.c.b16 %v1192, %v1184
        %v1569 = vpack.c.b16 %v1193, %v1185
        %v1570 = vpack.c.b16 %v1194, %v1186
        %v1571 = vpack.c.b16 %v1195, %v1187
        %v1572 = vpack.c.b16 %v1196, %v1188
        %v1573 = vpack.c.b16 %v1197, %v1189
        %v1574 = vpack.c.b16 %v1198, %v1190
        %v1575 = vpack.c.b16 %v1207, %v1199
        %v1576 = vpack.c.b16 %v1208, %v1200
        %v1577 = vpack.c.b16 %v1209, %v1201
        %v1578 = vpack.c.b16 %v1210, %v1202
        %v1579 = vpack.c.b16 %v1211, %v1203
        %v1580 = vpack.c.b16 %v1212, %v1204
        %v1581 = vpack.c.b16 %v1213, %v1205
        %v1582 = vpack.c.b16 %v1214, %v1206
        %v1583 = vpack.c.b16 %v1223, %v1215
        %v1584 = vpack.c.b16 %v1224, %v1216
        %v1585 = vpack.c.b16 %v1225, %v1217
        %v1586 = vpack.c.b16 %v1226, %v1218
        %v1587 = vpack.c.b16 %v1227, %v1219
        %v1588 = vpack.c.b16 %v1228, %v1220
        %v1589 = vpack.c.b16 %v1229, %v1221
        %v1590 = vpack.c.b16 %v1230, %v1222
        %v1591 = vpack.c.b16 %v1239, %v1231
        %v1592 = vpack.c.b16 %v1240, %v1232
        %v1593 = vpack.c.b16 %v1241, %v1233
        %v1594 = vpack.c.b16 %v1242, %v1234
        %v1595 = vpack.c.b16 %v1243, %v1235
        %v1596 = vpack.c.b16 %v1244, %v1236
        %v1597 = vpack.c.b16 %v1245, %v1237
        %v1598 = vpack.c.b16 %v1246, %v1238
        %v1599 = vpack.c.b16 %v1255, %v1247
        %v1600 = vpack.c.b16 %v1256, %v1248
        %v1601 = vpack.c.b16 %v1257, %v1249
        %v1602 = vpack.c.b16 %v1258, %v1250
        %v1603 = vpack.c.b16 %v1259, %v1251
        %v1604 = vpack.c.b16 %v1260, %v1252
        %v1605 = vpack.c.b16 %v1261, %v1253
        %v1606 = vpack.c.b16 %v1262, %v1254
        %v1607 = vpack.c.b16 %v1271, %v1263
        %v1608 = vpack.c.b16 %v1272, %v1264
        %v1609 = vpack.c.b16 %v1273, %v1265
        %v1610 = vpack.c.b16 %v1274, %v1266
        %v1611 = vpack.c.b16 %v1275, %v1267
        %v1612 = vpack.c.b16 %v1276, %v1268
        %v1613 = vpack.c.b16 %v1277, %v1269
        %v1614 = vpack.c.b16 %v1278, %v1270
        %v1615 = vpack.c.b16 %v1287, %v1279
        %v1616 = vpack.c.b16 %v1288, %v1280
        %v1617 = vpack.c.b16 %v1289, %v1281
        %v1618 = vpack.c.b16 %v1290, %v1282
        %v1619 = vpack.c.b16 %v1291, %v1283
        %v1620 = vpack.c.b16 %v1292, %v1284
        %v1621 = vpack.c.b16 %v1293, %v1285
        %v1622 = vpack.c.b16 %v1294, %v1286
        %v1623 = vpack.c.b16 %v1303, %v1295
        %v1624 = vpack.c.b16 %v1304, %v1296
        %v1625 = vpack.c.b16 %v1305, %v1297
        %v1626 = vpack.c.b16 %v1306, %v1298
        %v1627 = vpack.c.b16 %v1307, %v1299
        %v1628 = vpack.c.b16 %v1308, %v1300
        %v1629 = vpack.c.b16 %v1309, %v1301
        %v1630 = vpack.c.b16 %v1310, %v1302
        %v1631 = vpack.c.b16 %v1319, %v1311
        %v1632 = vpack.c.b16 %v1320, %v1312
        %v1633 = vpack.c.b16 %v1321, %v1313
        %v1634 = vpack.c.b16 %v1322, %v1314
        %v1635 = vpack.c.b16 %v1323, %v1315
        %v1636 = vpack.c.b16 %v1324, %v1316
        %v1637 = vpack.c.b16 %v1325, %v1317
        %v1638 = vpack.c.b16 %v1326, %v1318
        %v1639 = vpack.c.b16 %v1335, %v1327
        %v1640 = vpack.c.b16 %v1336, %v1328
        %v1641 = vpack.c.b16 %v1337, %v1329
        %v1642 = vpack.c.b16 %v1338, %v1330
        %v1643 = vpack.c.b16 %v1339, %v1331
        %v1644 = vpack.c.b16 %v1340, %v1332
        %v1645 = vpack.c.b16 %v1341, %v1333
        %v1646 = vpack.c.b16 %v1342, %v1334
        %v1647 = vpack.c.b16 %v1351, %v1343
        %v1648 = vpack.c.b16 %v1352, %v1344
        %v1649 = vpack.c.b16 %v1353, %v1345
        %v1650 = vpack.c.b16 %v1354, %v1346
        %v1651 = vpack.c.b16 %v1355, %v1347
        %v1652 = vpack.c.b16 %v1356, %v1348
        %v1653 = vpack.c.b16 %v1357, %v1349
        %v1654 = vpack.c.b16 %v1358, %v1350
        %v1655 = vpack.c.b16 %v1367, %v1359
        %v1656 = vpack.c.b16 %v1368, %v1360
        %v1657 = vpack.c.b16 %v1369, %v1361
        %v1658 = vpack.c.b16 %v1370, %v1362
        %v1659 = vpack.c.b16 %v1371, %v1363
        %v1660 = vpack.c.b16 %v1372, %v1364
        %v1661 = vpack.c.b16 %v1373, %v1365
        %v1662 = vpack.c.b16 %v1374, %v1366
        %v1663 = vpack.c.b16 %v1383, %v1375
        %v1664 = vpack.c.b16 %v1384, %v1376
        %v1665 = vpack.c.b16 %v1385, %v1377
        %v1666 = vpack.c.b16 %v1386, %v1378
        %v1667 = vpack.c.b16 %v1387, %v1379
        %v1668 = vpack.c.b16 %v1388, %v1380
        %v1669 = vpack.c.b16 %v1389, %v1381
        %v1670 = vpack.c.b16 %v1390, %v1382
        %v1671 = vpack.c.b16 %v1399, %v1391
        %v1672 = vpack.c.b16 %v1400, %v1392
        %v1673 = vpack.c.b16 %v1401, %v1393
        %v1674 = vpack.c.b16 %v1402, %v1394
        %v1675 = vpack.c.b16 %v1403, %v1395
        %v1676 = vpack.c.b16 %v1404, %v1396
        %v1677 = vpack.c.b16 %v1405, %v1397
        %v1678 = vpack.c.b16 %v1406, %v1398
        %v1679 = vpack.c.b16 %v1415, %v1407
        %v1680 = vpack.c.b16 %v1416, %v1408
        %v1681 = vpack.c.b16 %v1417, %v1409
        %v1682 = vpack.c.b16 %v1418, %v1410
        %v1683 = vpack.c.b16 %v1419, %v1411
        %v1684 = vpack.c.b16 %v1420, %v1412
        %v1685 = vpack.c.b16 %v1421, %v1413
        %v1686 = vpack.c.b16 %v1422, %v1414
        %v1687 = vpack.c.b16 %v1431, %v1423
        %v1688 = vpack.c.b16 %v1432, %v1424
        %v1689 = vpack.c.b16 %v1433, %v1425
        %v1690 = vpack.c.b16 %v1434, %v1426
        %v1691 = vpack.c.b16 %v1435, %v1427
        %v1692 = vpack.c.b16 %v1436, %v1428
        %v1693 = vpack.c.b16 %v1437, %v1429
        %v1694 = vpack.c.b16 %v1438, %v1430
        %1951 = vmatpush.bf16.msra.mxu0 %v1495
        %1952 = vmatpush.bf16.msra.mxu0 %v1487
        %1953 = vmatpush.bf16.msra.mxu0 %v1479
        %1954 = vmatpush.bf16.msra.mxu0 %v1471
        %1955 = vmatpush.bf16.msra.mxu0 %v1463
        %1956 = vmatpush.bf16.msra.mxu0 %v1455
        %1957 = vmatpush.bf16.msra.mxu0 %v1447
        %1958 = vmatpush.bf16.msra.mxu0 %v1439
        %1959 = vmatmul.bf16.gmra.mxu0 %v663
        %v1960 = vpop.f32.mrf.mxu0
        %v1961 = vadd.f32 %v641, %v1960
        %v1962 = vpop.f32.mrf.mxu0
        %1963 = vdwg.mxu0
        %1964 = vmatpush.bf16.msra.mxu0 %v1559
        %1965 = vmatpush.bf16.msra.mxu0 %v1551
        %1966 = vmatpush.bf16.msra.mxu0 %v1543
        %1967 = vmatpush.bf16.msra.mxu0 %v1535
        %1968 = vmatpush.bf16.msra.mxu0 %v1527
        %1969 = vmatpush.bf16.msra.mxu0 %v1519
        %1970 = vmatpush.bf16.msra.mxu0 %v1511
        %1971 = vmatpush.bf16.msra.mxu0 %v1503
        %1972 = vmatmul.bf16.gmra.mxu0 %v664
        %v1973 = vpop.f32.mrf.mxu0
        %v1974 = vadd.f32 %v1961, %v1973
        %v1975 = vpop.f32.mrf.mxu0
        %1976 = vdwg.mxu0
        %1977 = vmatpush.bf16.msra.mxu0 %v1623
        %1978 = vmatpush.bf16.msra.mxu0 %v1615
        %1979 = vmatpush.bf16.msra.mxu0 %v1607
        %1980 = vmatpush.bf16.msra.mxu0 %v1599
        %1981 = vmatpush.bf16.msra.mxu0 %v1591
        %1982 = vmatpush.bf16.msra.mxu0 %v1583
        %1983 = vmatpush.bf16.msra.mxu0 %v1575
        %1984 = vmatpush.bf16.msra.mxu0 %v1567
        %1985 = vmatmul.bf16.gmra.mxu0 %v665
        %v1986 = vpop.f32.mrf.mxu0
        %v1987 = vadd.f32 %v1974, %v1986
        %v1988 = vpop.f32.mrf.mxu0
        %1989 = vdwg.mxu0
        %1990 = vmatpush.bf16.msra.mxu0 %v1687
        %1991 = vmatpush.bf16.msra.mxu0 %v1679
        %1992 = vmatpush.bf16.msra.mxu0 %v1671
        %1993 = vmatpush.bf16.msra.mxu0 %v1663
        %1994 = vmatpush.bf16.msra.mxu0 %v1655
        %1995 = vmatpush.bf16.msra.mxu0 %v1647
        %1996 = vmatpush.bf16.msra.mxu0 %v1639
        %1997 = vmatpush.bf16.msra.mxu0 %v1631
        %1998 = vmatmul.bf16.gmra.mxu0 %v666
        %v1999 = vpop.f32.mrf.mxu0
        %v2000 = vadd.f32 %v1987, %v1999
        %v2001 = vpop.f32.mrf.mxu0
        %2002 = vdwg.mxu0
        %2003 = vmatpush.bf16.msra.mxu0 %v1496
        %2004 = vmatpush.bf16.msra.mxu0 %v1488
        %2005 = vmatpush.bf16.msra.mxu0 %v1480
        %2006 = vmatpush.bf16.msra.mxu0 %v1472
        %2007 = vmatpush.bf16.msra.mxu0 %v1464
        %2008 = vmatpush.bf16.msra.mxu0 %v1456
        %2009 = vmatpush.bf16.msra.mxu0 %v1448
        %2010 = vmatpush.bf16.msra.mxu0 %v1440
        %2011 = vmatmul.bf16.gmra.mxu0 %v663
        %v2012 = vpop.f32.mrf.mxu0
        %v2013 = vadd.f32 %v642, %v2012
        %v2014 = vpop.f32.mrf.mxu0
        %2015 = vdwg.mxu0
        %2016 = vmatpush.bf16.msra.mxu0 %v1560
        %2017 = vmatpush.bf16.msra.mxu0 %v1552
        %2018 = vmatpush.bf16.msra.mxu0 %v1544
        %2019 = vmatpush.bf16.msra.mxu0 %v1536
        %2020 = vmatpush.bf16.msra.mxu0 %v1528
        %2021 = vmatpush.bf16.msra.mxu0 %v1520
        %2022 = vmatpush.bf16.msra.mxu0 %v1512
        %2023 = vmatpush.bf16.msra.mxu0 %v1504
        %2024 = vmatmul.bf16.gmra.mxu0 %v664
        %v2025 = vpop.f32.mrf.mxu0
        %v2026 = vadd.f32 %v2013, %v2025
        %v2027 = vpop.f32.mrf.mxu0
        %2028 = vdwg.mxu0
        %2029 = vmatpush.bf16.msra.mxu0 %v1624
        %2030 = vmatpush.bf16.msra.mxu0 %v1616
        %2031 = vmatpush.bf16.msra.mxu0 %v1608
        %2032 = vmatpush.bf16.msra.mxu0 %v1600
        %2033 = vmatpush.bf16.msra.mxu0 %v1592
        %2034 = vmatpush.bf16.msra.mxu0 %v1584
        %2035 = vmatpush.bf16.msra.mxu0 %v1576
        %2036 = vmatpush.bf16.msra.mxu0 %v1568
        %2037 = vmatmul.bf16.gmra.mxu0 %v665
        %v2038 = vpop.f32.mrf.mxu0
        %v2039 = vadd.f32 %v2026, %v2038
        %v2040 = vpop.f32.mrf.mxu0
        %2041 = vdwg.mxu0
        %2042 = vmatpush.bf16.msra.mxu0 %v1688
        %2043 = vmatpush.bf16.msra.mxu0 %v1680
        %2044 = vmatpush.bf16.msra.mxu0 %v1672
        %2045 = vmatpush.bf16.msra.mxu0 %v1664
        %2046 = vmatpush.bf16.msra.mxu0 %v1656
        %2047 = vmatpush.bf16.msra.mxu0 %v1648
        %2048 = vmatpush.bf16.msra.mxu0 %v1640
        %2049 = vmatpush.bf16.msra.mxu0 %v1632
        %2050 = vmatmul.bf16.gmra.mxu0 %v666
        %v2051 = vpop.f32.mrf.mxu0
        %v2052 = vadd.f32 %v2039, %v2051
        %v2053 = vpop.f32.mrf.mxu0
        %2054 = vdwg.mxu0
        %2055 = vmatpush.bf16.msra.mxu0 %v1497
        %2056 = vmatpush.bf16.msra.mxu0 %v1489
        %2057 = vmatpush.bf16.msra.mxu0 %v1481
        %2058 = vmatpush.bf16.msra.mxu0 %v1473
        %2059 = vmatpush.bf16.msra.mxu0 %v1465
        %2060 = vmatpush.bf16.msra.mxu0 %v1457
        %2061 = vmatpush.bf16.msra.mxu0 %v1449
        %2062 = vmatpush.bf16.msra.mxu0 %v1441
        %2063 = vmatmul.bf16.gmra.mxu0 %v663
        %v2064 = vpop.f32.mrf.mxu0
        %v2065 = vadd.f32 %v643, %v2064
        %v2066 = vpop.f32.mrf.mxu0
        %2067 = vdwg.mxu0
        %2068 = vmatpush.bf16.msra.mxu0 %v1561
        %2069 = vmatpush.bf16.msra.mxu0 %v1553
        %2070 = vmatpush.bf16.msra.mxu0 %v1545
        %2071 = vmatpush.bf16.msra.mxu0 %v1537
        %2072 = vmatpush.bf16.msra.mxu0 %v1529
        %2073 = vmatpush.bf16.msra.mxu0 %v1521
        %2074 = vmatpush.bf16.msra.mxu0 %v1513
        %2075 = vmatpush.bf16.msra.mxu0 %v1505
        %2076 = vmatmul.bf16.gmra.mxu0 %v664
        %v2077 = vpop.f32.mrf.mxu0
        %v2078 = vadd.f32 %v2065, %v2077
        %v2079 = vpop.f32.mrf.mxu0
        %2080 = vdwg.mxu0
        %2081 = vmatpush.bf16.msra.mxu0 %v1625
        %2082 = vmatpush.bf16.msra.mxu0 %v1617
        %2083 = vmatpush.bf16.msra.mxu0 %v1609
        %2084 = vmatpush.bf16.msra.mxu0 %v1601
        %2085 = vmatpush.bf16.msra.mxu0 %v1593
        %2086 = vmatpush.bf16.msra.mxu0 %v1585
        %2087 = vmatpush.bf16.msra.mxu0 %v1577
        %2088 = vmatpush.bf16.msra.mxu0 %v1569
        %2089 = vmatmul.bf16.gmra.mxu0 %v665
        %v2090 = vpop.f32.mrf.mxu0
        %v2091 = vadd.f32 %v2078, %v2090
        %v2092 = vpop.f32.mrf.mxu0
        %2093 = vdwg.mxu0
        %2094 = vmatpush.bf16.msra.mxu0 %v1689
        %2095 = vmatpush.bf16.msra.mxu0 %v1681
        %2096 = vmatpush.bf16.msra.mxu0 %v1673
        %2097 = vmatpush.bf16.msra.mxu0 %v1665
        %2098 = vmatpush.bf16.msra.mxu0 %v1657
        %2099 = vmatpush.bf16.msra.mxu0 %v1649
        %2100 = vmatpush.bf16.msra.mxu0 %v1641
        %2101 = vmatpush.bf16.msra.mxu0 %v1633
        %2102 = vmatmul.bf16.gmra.mxu0 %v666
        %v2103 = vpop.f32.mrf.mxu0
        %v2104 = vadd.f32 %v2091, %v2103
        %v2105 = vpop.f32.mrf.mxu0
        %2106 = vdwg.mxu0
        %2107 = vmatpush.bf16.msra.mxu0 %v1498
        %2108 = vmatpush.bf16.msra.mxu0 %v1490
        %2109 = vmatpush.bf16.msra.mxu0 %v1482
        %2110 = vmatpush.bf16.msra.mxu0 %v1474
        %2111 = vmatpush.bf16.msra.mxu0 %v1466
        %2112 = vmatpush.bf16.msra.mxu0 %v1458
        %2113 = vmatpush.bf16.msra.mxu0 %v1450
        %2114 = vmatpush.bf16.msra.mxu0 %v1442
        %2115 = vmatmul.bf16.gmra.mxu0 %v663
        %v2116 = vpop.f32.mrf.mxu0
        %v2117 = vadd.f32 %v644, %v2116
        %v2118 = vpop.f32.mrf.mxu0
        %2119 = vdwg.mxu0
        %2120 = vmatpush.bf16.msra.mxu0 %v1562
        %2121 = vmatpush.bf16.msra.mxu0 %v1554
        %2122 = vmatpush.bf16.msra.mxu0 %v1546
        %2123 = vmatpush.bf16.msra.mxu0 %v1538
        %2124 = vmatpush.bf16.msra.mxu0 %v1530
        %2125 = vmatpush.bf16.msra.mxu0 %v1522
        %2126 = vmatpush.bf16.msra.mxu0 %v1514
        %2127 = vmatpush.bf16.msra.mxu0 %v1506
        %2128 = vmatmul.bf16.gmra.mxu0 %v664
        %v2129 = vpop.f32.mrf.mxu0
        %v2130 = vadd.f32 %v2117, %v2129
        %v2131 = vpop.f32.mrf.mxu0
        %2132 = vdwg.mxu0
        %2133 = vmatpush.bf16.msra.mxu0 %v1626
        %2134 = vmatpush.bf16.msra.mxu0 %v1618
        %2135 = vmatpush.bf16.msra.mxu0 %v1610
        %2136 = vmatpush.bf16.msra.mxu0 %v1602
        %2137 = vmatpush.bf16.msra.mxu0 %v1594
        %2138 = vmatpush.bf16.msra.mxu0 %v1586
        %2139 = vmatpush.bf16.msra.mxu0 %v1578
        %2140 = vmatpush.bf16.msra.mxu0 %v1570
        %2141 = vmatmul.bf16.gmra.mxu0 %v665
        %v2142 = vpop.f32.mrf.mxu0
        %v2143 = vadd.f32 %v2130, %v2142
        %v2144 = vpop.f32.mrf.mxu0
        %2145 = vdwg.mxu0
        %2146 = vmatpush.bf16.msra.mxu0 %v1690
        %2147 = vmatpush.bf16.msra.mxu0 %v1682
        %2148 = vmatpush.bf16.msra.mxu0 %v1674
        %2149 = vmatpush.bf16.msra.mxu0 %v1666
        %2150 = vmatpush.bf16.msra.mxu0 %v1658
        %2151 = vmatpush.bf16.msra.mxu0 %v1650
        %2152 = vmatpush.bf16.msra.mxu0 %v1642
        %2153 = vmatpush.bf16.msra.mxu0 %v1634
        %2154 = vmatmul.bf16.gmra.mxu0 %v666
        %v2155 = vpop.f32.mrf.mxu0
        %v2156 = vadd.f32 %v2143, %v2155
        %v2157 = vpop.f32.mrf.mxu0
        %2158 = vdwg.mxu0
        %2159 = vmatpush.bf16.msra.mxu0 %v1499
        %2160 = vmatpush.bf16.msra.mxu0 %v1491
        %2161 = vmatpush.bf16.msra.mxu0 %v1483
        %2162 = vmatpush.bf16.msra.mxu0 %v1475
        %2163 = vmatpush.bf16.msra.mxu0 %v1467
        %2164 = vmatpush.bf16.msra.mxu0 %v1459
        %2165 = vmatpush.bf16.msra.mxu0 %v1451
        %2166 = vmatpush.bf16.msra.mxu0 %v1443
        %2167 = vmatmul.bf16.gmra.mxu0 %v663
        %v2168 = vpop.f32.mrf.mxu0
        %v2169 = vadd.f32 %v645, %v2168
        %v2170 = vpop.f32.mrf.mxu0
        %2171 = vdwg.mxu0
        %2172 = vmatpush.bf16.msra.mxu0 %v1563
        %2173 = vmatpush.bf16.msra.mxu0 %v1555
        %2174 = vmatpush.bf16.msra.mxu0 %v1547
        %2175 = vmatpush.bf16.msra.mxu0 %v1539
        %2176 = vmatpush.bf16.msra.mxu0 %v1531
        %2177 = vmatpush.bf16.msra.mxu0 %v1523
        %2178 = vmatpush.bf16.msra.mxu0 %v1515
        %2179 = vmatpush.bf16.msra.mxu0 %v1507
        %2180 = vmatmul.bf16.gmra.mxu0 %v664
        %v2181 = vpop.f32.mrf.mxu0
        %v2182 = vadd.f32 %v2169, %v2181
        %v2183 = vpop.f32.mrf.mxu0
        %2184 = vdwg.mxu0
        %2185 = vmatpush.bf16.msra.mxu0 %v1627
        %2186 = vmatpush.bf16.msra.mxu0 %v1619
        %2187 = vmatpush.bf16.msra.mxu0 %v1611
        %2188 = vmatpush.bf16.msra.mxu0 %v1603
        %2189 = vmatpush.bf16.msra.mxu0 %v1595
        %2190 = vmatpush.bf16.msra.mxu0 %v1587
        %2191 = vmatpush.bf16.msra.mxu0 %v1579
        %2192 = vmatpush.bf16.msra.mxu0 %v1571
        %2193 = vmatmul.bf16.gmra.mxu0 %v665
        %v2194 = vpop.f32.mrf.mxu0
        %v2195 = vadd.f32 %v2182, %v2194
        %v2196 = vpop.f32.mrf.mxu0
        %2197 = vdwg.mxu0
        %2198 = vmatpush.bf16.msra.mxu0 %v1691
        %2199 = vmatpush.bf16.msra.mxu0 %v1683
        %2200 = vmatpush.bf16.msra.mxu0 %v1675
        %2201 = vmatpush.bf16.msra.mxu0 %v1667
        %2202 = vmatpush.bf16.msra.mxu0 %v1659
        %2203 = vmatpush.bf16.msra.mxu0 %v1651
        %2204 = vmatpush.bf16.msra.mxu0 %v1643
        %2205 = vmatpush.bf16.msra.mxu0 %v1635
        %2206 = vmatmul.bf16.gmra.mxu0 %v666
        %v2207 = vpop.f32.mrf.mxu0
        %v2208 = vadd.f32 %v2195, %v2207
        %v2209 = vpop.f32.mrf.mxu0
        %2210 = vdwg.mxu0
        %2211 = vmatpush.bf16.msra.mxu0 %v1500
        %2212 = vmatpush.bf16.msra.mxu0 %v1492
        %2213 = vmatpush.bf16.msra.mxu0 %v1484
        %2214 = vmatpush.bf16.msra.mxu0 %v1476
        %2215 = vmatpush.bf16.msra.mxu0 %v1468
        %2216 = vmatpush.bf16.msra.mxu0 %v1460
        %2217 = vmatpush.bf16.msra.mxu0 %v1452
        %2218 = vmatpush.bf16.msra.mxu0 %v1444
        %2219 = vmatmul.bf16.gmra.mxu0 %v663
        %v2220 = vpop.f32.mrf.mxu0
        %v2221 = vadd.f32 %v646, %v2220
        %v2222 = vpop.f32.mrf.mxu0
        %2223 = vdwg.mxu0
        %2224 = vmatpush.bf16.msra.mxu0 %v1564
        %2225 = vmatpush.bf16.msra.mxu0 %v1556
        %2226 = vmatpush.bf16.msra.mxu0 %v1548
        %2227 = vmatpush.bf16.msra.mxu0 %v1540
        %2228 = vmatpush.bf16.msra.mxu0 %v1532
        %2229 = vmatpush.bf16.msra.mxu0 %v1524
        %2230 = vmatpush.bf16.msra.mxu0 %v1516
        %2231 = vmatpush.bf16.msra.mxu0 %v1508
        %2232 = vmatmul.bf16.gmra.mxu0 %v664
        %v2233 = vpop.f32.mrf.mxu0
        %v2234 = vadd.f32 %v2221, %v2233
        %v2235 = vpop.f32.mrf.mxu0
        %2236 = vdwg.mxu0
        %2237 = vmatpush.bf16.msra.mxu0 %v1628
        %2238 = vmatpush.bf16.msra.mxu0 %v1620
        %2239 = vmatpush.bf16.msra.mxu0 %v1612
        %2240 = vmatpush.bf16.msra.mxu0 %v1604
        %2241 = vmatpush.bf16.msra.mxu0 %v1596
        %2242 = vmatpush.bf16.msra.mxu0 %v1588
        %2243 = vmatpush.bf16.msra.mxu0 %v1580
        %2244 = vmatpush.bf16.msra.mxu0 %v1572
        %2245 = vmatmul.bf16.gmra.mxu0 %v665
        %v2246 = vpop.f32.mrf.mxu0
        %v2247 = vadd.f32 %v2234, %v2246
        %v2248 = vpop.f32.mrf.mxu0
        %2249 = vdwg.mxu0
        %2250 = vmatpush.bf16.msra.mxu0 %v1692
        %2251 = vmatpush.bf16.msra.mxu0 %v1684
        %2252 = vmatpush.bf16.msra.mxu0 %v1676
        %2253 = vmatpush.bf16.msra.mxu0 %v1668
        %2254 = vmatpush.bf16.msra.mxu0 %v1660
        %2255 = vmatpush.bf16.msra.mxu0 %v1652
        %2256 = vmatpush.bf16.msra.mxu0 %v1644
        %2257 = vmatpush.bf16.msra.mxu0 %v1636
        %2258 = vmatmul.bf16.gmra.mxu0 %v666
        %v2259 = vpop.f32.mrf.mxu0
        %v2260 = vadd.f32 %v2247, %v2259
        %v2261 = vpop.f32.mrf.mxu0
        %2262 = vdwg.mxu0
        %2263 = vmatpush.bf16.msra.mxu0 %v1501
        %2264 = vmatpush.bf16.msra.mxu0 %v1493
        %2265 = vmatpush.bf16.msra.mxu0 %v1485
        %2266 = vmatpush.bf16.msra.mxu0 %v1477
        %2267 = vmatpush.bf16.msra.mxu0 %v1469
        %2268 = vmatpush.bf16.msra.mxu0 %v1461
        %2269 = vmatpush.bf16.msra.mxu0 %v1453
        %2270 = vmatpush.bf16.msra.mxu0 %v1445
        %2271 = vmatmul.bf16.gmra.mxu0 %v663
        %v2272 = vpop.f32.mrf.mxu0
        %v2273 = vadd.f32 %v647, %v2272
        %v2274 = vpop.f32.mrf.mxu0
        %2275 = vdwg.mxu0
        %2276 = vmatpush.bf16.msra.mxu0 %v1565
        %2277 = vmatpush.bf16.msra.mxu0 %v1557
        %2278 = vmatpush.bf16.msra.mxu0 %v1549
        %2279 = vmatpush.bf16.msra.mxu0 %v1541
        %2280 = vmatpush.bf16.msra.mxu0 %v1533
        %2281 = vmatpush.bf16.msra.mxu0 %v1525
        %2282 = vmatpush.bf16.msra.mxu0 %v1517
        %2283 = vmatpush.bf16.msra.mxu0 %v1509
        %2284 = vmatmul.bf16.gmra.mxu0 %v664
        %v2285 = vpop.f32.mrf.mxu0
        %v2286 = vadd.f32 %v2273, %v2285
        %v2287 = vpop.f32.mrf.mxu0
        %2288 = vdwg.mxu0
        %2289 = vmatpush.bf16.msra.mxu0 %v1629
        %2290 = vmatpush.bf16.msra.mxu0 %v1621
        %2291 = vmatpush.bf16.msra.mxu0 %v1613
        %2292 = vmatpush.bf16.msra.mxu0 %v1605
        %2293 = vmatpush.bf16.msra.mxu0 %v1597
        %2294 = vmatpush.bf16.msra.mxu0 %v1589
        %2295 = vmatpush.bf16.msra.mxu0 %v1581
        %2296 = vmatpush.bf16.msra.mxu0 %v1573
        %2297 = vmatmul.bf16.gmra.mxu0 %v665
        %v2298 = vpop.f32.mrf.mxu0
        %v2299 = vadd.f32 %v2286, %v2298
        %v2300 = vpop.f32.mrf.mxu0
        %2301 = vdwg.mxu0
        %2302 = vmatpush.bf16.msra.mxu0 %v1693
        %2303 = vmatpush.bf16.msra.mxu0 %v1685
        %2304 = vmatpush.bf16.msra.mxu0 %v1677
        %2305 = vmatpush.bf16.msra.mxu0 %v1669
        %2306 = vmatpush.bf16.msra.mxu0 %v1661
        %2307 = vmatpush.bf16.msra.mxu0 %v1653
        %2308 = vmatpush.bf16.msra.mxu0 %v1645
        %2309 = vmatpush.bf16.msra.mxu0 %v1637
        %2310 = vmatmul.bf16.gmra.mxu0 %v666
        %v2311 = vpop.f32.mrf.mxu0
        %v2312 = vadd.f32 %v2299, %v2311
        %v2313 = vpop.f32.mrf.mxu0
        %2314 = vdwg.mxu0
        %2315 = vmatpush.bf16.msra.mxu0 %v1502
        %2316 = vmatpush.bf16.msra.mxu0 %v1494
        %2317 = vmatpush.bf16.msra.mxu0 %v1486
        %2318 = vmatpush.bf16.msra.mxu0 %v1478
        %2319 = vmatpush.bf16.msra.mxu0 %v1470
        %2320 = vmatpush.bf16.msra.mxu0 %v1462
        %2321 = vmatpush.bf16.msra.mxu0 %v1454
        %2322 = vmatpush.bf16.msra.mxu0 %v1446
        %2323 = vmatmul.bf16.gmra.mxu0 %v663
        %v2324 = vpop.f32.mrf.mxu0
        %v2325 = vadd.f32 %v648, %v2324
        %v2326 = vpop.f32.mrf.mxu0
        %2327 = vdwg.mxu0
        %2328 = vmatpush.bf16.msra.mxu0 %v1566
        %2329 = vmatpush.bf16.msra.mxu0 %v1558
        %2330 = vmatpush.bf16.msra.mxu0 %v1550
        %2331 = vmatpush.bf16.msra.mxu0 %v1542
        %2332 = vmatpush.bf16.msra.mxu0 %v1534
        %2333 = vmatpush.bf16.msra.mxu0 %v1526
        %2334 = vmatpush.bf16.msra.mxu0 %v1518
        %2335 = vmatpush.bf16.msra.mxu0 %v1510
        %2336 = vmatmul.bf16.gmra.mxu0 %v664
        %v2337 = vpop.f32.mrf.mxu0
        %v2338 = vadd.f32 %v2325, %v2337
        %v2339 = vpop.f32.mrf.mxu0
        %2340 = vdwg.mxu0
        %2341 = vmatpush.bf16.msra.mxu0 %v1630
        %2342 = vmatpush.bf16.msra.mxu0 %v1622
        %2343 = vmatpush.bf16.msra.mxu0 %v1614
        %2344 = vmatpush.bf16.msra.mxu0 %v1606
        %2345 = vmatpush.bf16.msra.mxu0 %v1598
        %2346 = vmatpush.bf16.msra.mxu0 %v1590
        %2347 = vmatpush.bf16.msra.mxu0 %v1582
        %2348 = vmatpush.bf16.msra.mxu0 %v1574
        %2349 = vmatmul.bf16.gmra.mxu0 %v665
        %v2350 = vpop.f32.mrf.mxu0
        %v2351 = vadd.f32 %v2338, %v2350
        %v2352 = vpop.f32.mrf.mxu0
        %2353 = vdwg.mxu0
        %2354 = vmatpush.bf16.msra.mxu0 %v1694
        %2355 = vmatpush.bf16.msra.mxu0 %v1686
        %2356 = vmatpush.bf16.msra.mxu0 %v1678
        %2357 = vmatpush.bf16.msra.mxu0 %v1670
        %2358 = vmatpush.bf16.msra.mxu0 %v1662
        %2359 = vmatpush.bf16.msra.mxu0 %v1654
        %2360 = vmatpush.bf16.msra.mxu0 %v1646
        %2361 = vmatpush.bf16.msra.mxu0 %v1638
        %2362 = vmatmul.bf16.gmra.mxu0 %v666
        %v2363 = vpop.f32.mrf.mxu0
        %v2364 = vadd.f32 %v2351, %v2363
        %v2365 = vpop.f32.mrf.mxu0
        %2366 = vdwg.mxu0
        %v2367 = vmul.f32 %v2000, 0.5
        %v2368 = vmul.f32 %v2052, 0.5
        %v2369 = vmul.f32 %v2104, 0.5
        %v2370 = vmul.f32 %v2156, 0.5
        %v2371 = vmul.f32 %v2208, 0.5
        %v2372 = vmul.f32 %v2260, 0.5
        %v2373 = vmul.f32 %v2312, 0.5
        %v2374 = vmul.f32 %v2364, 0.5
        %v2375 = vtanh.pop %v2367
        %v2376 = vtanh.pop %v2368
        %v2377 = vtanh.pop %v2369
        %v2378 = vtanh.pop %v2370
        %v2379 = vtanh.pop %v2371
        %v2380 = vtanh.pop %v2372
        %v2381 = vtanh.pop %v2373
        %v2382 = vtanh.pop %v2374
        %v2383 = vmul.f32 %v2375, 0.5
        %v2384 = vmul.f32 %v2376, 0.5
        %v2385 = vmul.f32 %v2377, 0.5
        %v2386 = vmul.f32 %v2378, 0.5
        %v2387 = vmul.f32 %v2379, 0.5
        %v2388 = vmul.f32 %v2380, 0.5
        %v2389 = vmul.f32 %v2381, 0.5
        %v2390 = vmul.f32 %v2382, 0.5
        %v2391 = vadd.f32 %v2383, 0.5
        %v2392 = vadd.f32 %v2384, 0.5
        %v2393 = vadd.f32 %v2385, 0.5
        %v2394 = vadd.f32 %v2386, 0.5
        %v2395 = vadd.f32 %v2387, 0.5
        %v2396 = vadd.f32 %v2388, 0.5
        %v2397 = vadd.f32 %v2389, 0.5
        %v2398 = vadd.f32 %v2390, 0.5
        %v2399 = vpack.c.bf16 %v2391, %v2391
        %v2400 = vpack.c.bf16 %v2392, %v2392
        %v2401 = vpack.c.bf16 %v2393, %v2393
        %v2402 = vpack.c.bf16 %v2394, %v2394
        %v2403 = vpack.c.bf16 %v2395, %v2395
        %v2404 = vpack.c.bf16 %v2396, %v2396
        %v2405 = vpack.c.bf16 %v2397, %v2397
        %v2406 = vpack.c.bf16 %v2398, %v2398
        %v2407 = vld [vmem:[#allocation5] sm:$0xff]
        %v2408 = vld [vmem:[#allocation5 + $0x8] sm:$0xff]
        %v2409 = vld [vmem:[#allocation5 + $0x10] sm:$0xff]
        %v2410 = vld [vmem:[#allocation5 + $0x18] sm:$0xff]
        %v2411 = vld [vmem:[#allocation5 + $0x20] sm:$0xff]
        %v2412 = vld [vmem:[#allocation5 + $0x28] sm:$0xff]
        %v2413 = vld [vmem:[#allocation5 + $0x30] sm:$0xff]
        %v2414 = vld [vmem:[#allocation5 + $0x38] sm:$0xff]
        %v2415 = vld [vmem:[#allocation5 + $0x40] sm:$0xff]
        %v2416 = vld [vmem:[#allocation5 + $0x48] sm:$0xff]
        %v2417 = vld [vmem:[#allocation5 + $0x50] sm:$0xff]
        %v2418 = vld [vmem:[#allocation5 + $0x58] sm:$0xff]
        %v2419 = vld [vmem:[#allocation5 + $0x60] sm:$0xff]
        %v2420 = vld [vmem:[#allocation5 + $0x68] sm:$0xff]
        %v2421 = vld [vmem:[#allocation5 + $0x70] sm:$0xff]
        %v2422 = vld [vmem:[#allocation5 + $0x78] sm:$0xff]
        %v2423 = vld [vmem:[#allocation5 + $0x80] sm:$0xff]
        %v2424 = vld [vmem:[#allocation5 + $0x88] sm:$0xff]
        %v2425 = vld [vmem:[#allocation5 + $0x90] sm:$0xff]
        %v2426 = vld [vmem:[#allocation5 + $0x98] sm:$0xff]
        %v2427 = vld [vmem:[#allocation5 + $0xa0] sm:$0xff]
        %v2428 = vld [vmem:[#allocation5 + $0xa8] sm:$0xff]
        %v2429 = vld [vmem:[#allocation5 + $0xb0] sm:$0xff]
        %v2430 = vld [vmem:[#allocation5 + $0xb8] sm:$0xff]
        %v2431 = vld [vmem:[#allocation5 + $0xc0] sm:$0xff]
        %v2432 = vld [vmem:[#allocation5 + $0xc8] sm:$0xff]
        %v2433 = vld [vmem:[#allocation5 + $0xd0] sm:$0xff]
        %v2434 = vld [vmem:[#allocation5 + $0xd8] sm:$0xff]
        %v2435 = vld [vmem:[#allocation5 + $0xe0] sm:$0xff]
        %v2436 = vld [vmem:[#allocation5 + $0xe8] sm:$0xff]
        %v2437 = vld [vmem:[#allocation5 + $0xf0] sm:$0xff]
        %v2438 = vld [vmem:[#allocation5 + $0xf8] sm:$0xff]
        %v2439 = vld [vmem:[#allocation5 + $0x100] sm:$0xff]
        %v2440 = vld [vmem:[#allocation5 + $0x108] sm:$0xff]
        %v2441 = vld [vmem:[#allocation5 + $0x110] sm:$0xff]
        %v2442 = vld [vmem:[#allocation5 + $0x118] sm:$0xff]
        %v2443 = vld [vmem:[#allocation5 + $0x120] sm:$0xff]
        %v2444 = vld [vmem:[#allocation5 + $0x128] sm:$0xff]
        %v2445 = vld [vmem:[#allocation5 + $0x130] sm:$0xff]
        %v2446 = vld [vmem:[#allocation5 + $0x138] sm:$0xff]
        %v2447 = vld [vmem:[#allocation5 + $0x140] sm:$0xff]
        %v2448 = vld [vmem:[#allocation5 + $0x148] sm:$0xff]
        %v2449 = vld [vmem:[#allocation5 + $0x150] sm:$0xff]
        %v2450 = vld [vmem:[#allocation5 + $0x158] sm:$0xff]
        %v2451 = vld [vmem:[#allocation5 + $0x160] sm:$0xff]
        %v2452 = vld [vmem:[#allocation5 + $0x168] sm:$0xff]
        %v2453 = vld [vmem:[#allocation5 + $0x170] sm:$0xff]
        %v2454 = vld [vmem:[#allocation5 + $0x178] sm:$0xff]
        %v2455 = vld [vmem:[#allocation5 + $0x180] sm:$0xff]
        %v2456 = vld [vmem:[#allocation5 + $0x188] sm:$0xff]
        %v2457 = vld [vmem:[#allocation5 + $0x190] sm:$0xff]
        %v2458 = vld [vmem:[#allocation5 + $0x198] sm:$0xff]
        %v2459 = vld [vmem:[#allocation5 + $0x1a0] sm:$0xff]
        %v2460 = vld [vmem:[#allocation5 + $0x1a8] sm:$0xff]
        %v2461 = vld [vmem:[#allocation5 + $0x1b0] sm:$0xff]
        %v2462 = vld [vmem:[#allocation5 + $0x1b8] sm:$0xff]
        %v2463 = vld [vmem:[#allocation5 + $0x1c0] sm:$0xff]
        %v2464 = vld [vmem:[#allocation5 + $0x1c8] sm:$0xff]
        %v2465 = vld [vmem:[#allocation5 + $0x1d0] sm:$0xff]
        %v2466 = vld [vmem:[#allocation5 + $0x1d8] sm:$0xff]
        %v2467 = vld [vmem:[#allocation5 + $0x1e0] sm:$0xff]
        %v2468 = vld [vmem:[#allocation5 + $0x1e8] sm:$0xff]
        %v2469 = vld [vmem:[#allocation5 + $0x1f0] sm:$0xff]
        %v2470 = vld [vmem:[#allocation5 + $0x1f8] sm:$0xff]
        %v2471 = vld [vmem:[#allocation5 + $0x200] sm:$0xff]
        %v2472 = vld [vmem:[#allocation5 + $0x208] sm:$0xff]
        %v2473 = vld [vmem:[#allocation5 + $0x210] sm:$0xff]
        %v2474 = vld [vmem:[#allocation5 + $0x218] sm:$0xff]
        %v2475 = vld [vmem:[#allocation5 + $0x220] sm:$0xff]
        %v2476 = vld [vmem:[#allocation5 + $0x228] sm:$0xff]
        %v2477 = vld [vmem:[#allocation5 + $0x230] sm:$0xff]
        %v2478 = vld [vmem:[#allocation5 + $0x238] sm:$0xff]
        %v2479 = vld [vmem:[#allocation5 + $0x240] sm:$0xff]
        %v2480 = vld [vmem:[#allocation5 + $0x248] sm:$0xff]
        %v2481 = vld [vmem:[#allocation5 + $0x250] sm:$0xff]
        %v2482 = vld [vmem:[#allocation5 + $0x258] sm:$0xff]
        %v2483 = vld [vmem:[#allocation5 + $0x260] sm:$0xff]
        %v2484 = vld [vmem:[#allocation5 + $0x268] sm:$0xff]
        %v2485 = vld [vmem:[#allocation5 + $0x270] sm:$0xff]
        %v2486 = vld [vmem:[#allocation5 + $0x278] sm:$0xff]
        %v2487 = vld [vmem:[#allocation5 + $0x280] sm:$0xff]
        %v2488 = vld [vmem:[#allocation5 + $0x288] sm:$0xff]
        %v2489 = vld [vmem:[#allocation5 + $0x290] sm:$0xff]
        %v2490 = vld [vmem:[#allocation5 + $0x298] sm:$0xff]
        %v2491 = vld [vmem:[#allocation5 + $0x2a0] sm:$0xff]
        %v2492 = vld [vmem:[#allocation5 + $0x2a8] sm:$0xff]
        %v2493 = vld [vmem:[#allocation5 + $0x2b0] sm:$0xff]
        %v2494 = vld [vmem:[#allocation5 + $0x2b8] sm:$0xff]
        %v2495 = vld [vmem:[#allocation5 + $0x2c0] sm:$0xff]
        %v2496 = vld [vmem:[#allocation5 + $0x2c8] sm:$0xff]
        %v2497 = vld [vmem:[#allocation5 + $0x2d0] sm:$0xff]
        %v2498 = vld [vmem:[#allocation5 + $0x2d8] sm:$0xff]
        %v2499 = vld [vmem:[#allocation5 + $0x2e0] sm:$0xff]
        %v2500 = vld [vmem:[#allocation5 + $0x2e8] sm:$0xff]
        %v2501 = vld [vmem:[#allocation5 + $0x2f0] sm:$0xff]
        %v2502 = vld [vmem:[#allocation5 + $0x2f8] sm:$0xff]
        %v2503 = vld [vmem:[#allocation5 + $0x300] sm:$0xff]
        %v2504 = vld [vmem:[#allocation5 + $0x308] sm:$0xff]
        %v2505 = vld [vmem:[#allocation5 + $0x310] sm:$0xff]
        %v2506 = vld [vmem:[#allocation5 + $0x318] sm:$0xff]
        %v2507 = vld [vmem:[#allocation5 + $0x320] sm:$0xff]
        %v2508 = vld [vmem:[#allocation5 + $0x328] sm:$0xff]
        %v2509 = vld [vmem:[#allocation5 + $0x330] sm:$0xff]
        %v2510 = vld [vmem:[#allocation5 + $0x338] sm:$0xff]
        %v2511 = vld [vmem:[#allocation5 + $0x340] sm:$0xff]
        %v2512 = vld [vmem:[#allocation5 + $0x348] sm:$0xff]
        %v2513 = vld [vmem:[#allocation5 + $0x350] sm:$0xff]
        %v2514 = vld [vmem:[#allocation5 + $0x358] sm:$0xff]
        %v2515 = vld [vmem:[#allocation5 + $0x360] sm:$0xff]
        %v2516 = vld [vmem:[#allocation5 + $0x368] sm:$0xff]
        %v2517 = vld [vmem:[#allocation5 + $0x370] sm:$0xff]
        %v2518 = vld [vmem:[#allocation5 + $0x378] sm:$0xff]
        %v2519 = vld [vmem:[#allocation5 + $0x380] sm:$0xff]
        %v2520 = vld [vmem:[#allocation5 + $0x388] sm:$0xff]
        %v2521 = vld [vmem:[#allocation5 + $0x390] sm:$0xff]
        %v2522 = vld [vmem:[#allocation5 + $0x398] sm:$0xff]
        %v2523 = vld [vmem:[#allocation5 + $0x3a0] sm:$0xff]
        %v2524 = vld [vmem:[#allocation5 + $0x3a8] sm:$0xff]
        %v2525 = vld [vmem:[#allocation5 + $0x3b0] sm:$0xff]
        %v2526 = vld [vmem:[#allocation5 + $0x3b8] sm:$0xff]
        %v2527 = vld [vmem:[#allocation5 + $0x3c0] sm:$0xff]
        %v2528 = vld [vmem:[#allocation5 + $0x3c8] sm:$0xff]
        %v2529 = vld [vmem:[#allocation5 + $0x3d0] sm:$0xff]
        %v2530 = vld [vmem:[#allocation5 + $0x3d8] sm:$0xff]
        %v2531 = vld [vmem:[#allocation5 + $0x3e0] sm:$0xff]
        %v2532 = vld [vmem:[#allocation5 + $0x3e8] sm:$0xff]
        %v2533 = vld [vmem:[#allocation5 + $0x3f0] sm:$0xff]
        %v2534 = vld [vmem:[#allocation5 + $0x3f8] sm:$0xff]
        %v2535 = vld [vmem:[#allocation5 + $0x400] sm:$0xff]
        %v2536 = vld [vmem:[#allocation5 + $0x408] sm:$0xff]
        %v2537 = vld [vmem:[#allocation5 + $0x410] sm:$0xff]
        %v2538 = vld [vmem:[#allocation5 + $0x418] sm:$0xff]
        %v2539 = vld [vmem:[#allocation5 + $0x420] sm:$0xff]
        %v2540 = vld [vmem:[#allocation5 + $0x428] sm:$0xff]
        %v2541 = vld [vmem:[#allocation5 + $0x430] sm:$0xff]
        %v2542 = vld [vmem:[#allocation5 + $0x438] sm:$0xff]
        %v2543 = vld [vmem:[#allocation5 + $0x440] sm:$0xff]
        %v2544 = vld [vmem:[#allocation5 + $0x448] sm:$0xff]
        %v2545 = vld [vmem:[#allocation5 + $0x450] sm:$0xff]
        %v2546 = vld [vmem:[#allocation5 + $0x458] sm:$0xff]
        %v2547 = vld [vmem:[#allocation5 + $0x460] sm:$0xff]
        %v2548 = vld [vmem:[#allocation5 + $0x468] sm:$0xff]
        %v2549 = vld [vmem:[#allocation5 + $0x470] sm:$0xff]
        %v2550 = vld [vmem:[#allocation5 + $0x478] sm:$0xff]
        %v2551 = vld [vmem:[#allocation5 + $0x480] sm:$0xff]
        %v2552 = vld [vmem:[#allocation5 + $0x488] sm:$0xff]
        %v2553 = vld [vmem:[#allocation5 + $0x490] sm:$0xff]
        %v2554 = vld [vmem:[#allocation5 + $0x498] sm:$0xff]
        %v2555 = vld [vmem:[#allocation5 + $0x4a0] sm:$0xff]
        %v2556 = vld [vmem:[#allocation5 + $0x4a8] sm:$0xff]
        %v2557 = vld [vmem:[#allocation5 + $0x4b0] sm:$0xff]
        %v2558 = vld [vmem:[#allocation5 + $0x4b8] sm:$0xff]
        %v2559 = vld [vmem:[#allocation5 + $0x4c0] sm:$0xff]
        %v2560 = vld [vmem:[#allocation5 + $0x4c8] sm:$0xff]
        %v2561 = vld [vmem:[#allocation5 + $0x4d0] sm:$0xff]
        %v2562 = vld [vmem:[#allocation5 + $0x4d8] sm:$0xff]
        %v2563 = vld [vmem:[#allocation5 + $0x4e0] sm:$0xff]
        %v2564 = vld [vmem:[#allocation5 + $0x4e8] sm:$0xff]
        %v2565 = vld [vmem:[#allocation5 + $0x4f0] sm:$0xff]
        %v2566 = vld [vmem:[#allocation5 + $0x4f8] sm:$0xff]
        %v2567 = vld [vmem:[#allocation5 + $0x500] sm:$0xff]
        %v2568 = vld [vmem:[#allocation5 + $0x508] sm:$0xff]
        %v2569 = vld [vmem:[#allocation5 + $0x510] sm:$0xff]
        %v2570 = vld [vmem:[#allocation5 + $0x518] sm:$0xff]
        %v2571 = vld [vmem:[#allocation5 + $0x520] sm:$0xff]
        %v2572 = vld [vmem:[#allocation5 + $0x528] sm:$0xff]
        %v2573 = vld [vmem:[#allocation5 + $0x530] sm:$0xff]
        %v2574 = vld [vmem:[#allocation5 + $0x538] sm:$0xff]
        %v2575 = vld [vmem:[#allocation5 + $0x540] sm:$0xff]
        %v2576 = vld [vmem:[#allocation5 + $0x548] sm:$0xff]
        %v2577 = vld [vmem:[#allocation5 + $0x550] sm:$0xff]
        %v2578 = vld [vmem:[#allocation5 + $0x558] sm:$0xff]
        %v2579 = vld [vmem:[#allocation5 + $0x560] sm:$0xff]
        %v2580 = vld [vmem:[#allocation5 + $0x568] sm:$0xff]
        %v2581 = vld [vmem:[#allocation5 + $0x570] sm:$0xff]
        %v2582 = vld [vmem:[#allocation5 + $0x578] sm:$0xff]
        %v2583 = vld [vmem:[#allocation5 + $0x580] sm:$0xff]
        %v2584 = vld [vmem:[#allocation5 + $0x588] sm:$0xff]
        %v2585 = vld [vmem:[#allocation5 + $0x590] sm:$0xff]
        %v2586 = vld [vmem:[#allocation5 + $0x598] sm:$0xff]
        %v2587 = vld [vmem:[#allocation5 + $0x5a0] sm:$0xff]
        %v2588 = vld [vmem:[#allocation5 + $0x5a8] sm:$0xff]
        %v2589 = vld [vmem:[#allocation5 + $0x5b0] sm:$0xff]
        %v2590 = vld [vmem:[#allocation5 + $0x5b8] sm:$0xff]
        %v2591 = vld [vmem:[#allocation5 + $0x5c0] sm:$0xff]
        %v2592 = vld [vmem:[#allocation5 + $0x5c8] sm:$0xff]
        %v2593 = vld [vmem:[#allocation5 + $0x5d0] sm:$0xff]
        %v2594 = vld [vmem:[#allocation5 + $0x5d8] sm:$0xff]
        %v2595 = vld [vmem:[#allocation5 + $0x5e0] sm:$0xff]
        %v2596 = vld [vmem:[#allocation5 + $0x5e8] sm:$0xff]
        %v2597 = vld [vmem:[#allocation5 + $0x5f0] sm:$0xff]
        %v2598 = vld [vmem:[#allocation5 + $0x5f8] sm:$0xff]
        %v2599 = vld [vmem:[#allocation5 + $0x600] sm:$0xff]
        %v2600 = vld [vmem:[#allocation5 + $0x608] sm:$0xff]
        %v2601 = vld [vmem:[#allocation5 + $0x610] sm:$0xff]
        %v2602 = vld [vmem:[#allocation5 + $0x618] sm:$0xff]
        %v2603 = vld [vmem:[#allocation5 + $0x620] sm:$0xff]
        %v2604 = vld [vmem:[#allocation5 + $0x628] sm:$0xff]
        %v2605 = vld [vmem:[#allocation5 + $0x630] sm:$0xff]
        %v2606 = vld [vmem:[#allocation5 + $0x638] sm:$0xff]
        %v2607 = vld [vmem:[#allocation5 + $0x640] sm:$0xff]
        %v2608 = vld [vmem:[#allocation5 + $0x648] sm:$0xff]
        %v2609 = vld [vmem:[#allocation5 + $0x650] sm:$0xff]
        %v2610 = vld [vmem:[#allocation5 + $0x658] sm:$0xff]
        %v2611 = vld [vmem:[#allocation5 + $0x660] sm:$0xff]
        %v2612 = vld [vmem:[#allocation5 + $0x668] sm:$0xff]
        %v2613 = vld [vmem:[#allocation5 + $0x670] sm:$0xff]
        %v2614 = vld [vmem:[#allocation5 + $0x678] sm:$0xff]
        %v2615 = vld [vmem:[#allocation5 + $0x680] sm:$0xff]
        %v2616 = vld [vmem:[#allocation5 + $0x688] sm:$0xff]
        %v2617 = vld [vmem:[#allocation5 + $0x690] sm:$0xff]
        %v2618 = vld [vmem:[#allocation5 + $0x698] sm:$0xff]
        %v2619 = vld [vmem:[#allocation5 + $0x6a0] sm:$0xff]
        %v2620 = vld [vmem:[#allocation5 + $0x6a8] sm:$0xff]
        %v2621 = vld [vmem:[#allocation5 + $0x6b0] sm:$0xff]
        %v2622 = vld [vmem:[#allocation5 + $0x6b8] sm:$0xff]
        %v2623 = vld [vmem:[#allocation5 + $0x6c0] sm:$0xff]
        %v2624 = vld [vmem:[#allocation5 + $0x6c8] sm:$0xff]
        %v2625 = vld [vmem:[#allocation5 + $0x6d0] sm:$0xff]
        %v2626 = vld [vmem:[#allocation5 + $0x6d8] sm:$0xff]
        %v2627 = vld [vmem:[#allocation5 + $0x6e0] sm:$0xff]
        %v2628 = vld [vmem:[#allocation5 + $0x6e8] sm:$0xff]
        %v2629 = vld [vmem:[#allocation5 + $0x6f0] sm:$0xff]
        %v2630 = vld [vmem:[#allocation5 + $0x6f8] sm:$0xff]
        %v2631 = vld [vmem:[#allocation5 + $0x700] sm:$0xff]
        %v2632 = vld [vmem:[#allocation5 + $0x708] sm:$0xff]
        %v2633 = vld [vmem:[#allocation5 + $0x710] sm:$0xff]
        %v2634 = vld [vmem:[#allocation5 + $0x718] sm:$0xff]
        %v2635 = vld [vmem:[#allocation5 + $0x720] sm:$0xff]
        %v2636 = vld [vmem:[#allocation5 + $0x728] sm:$0xff]
        %v2637 = vld [vmem:[#allocation5 + $0x730] sm:$0xff]
        %v2638 = vld [vmem:[#allocation5 + $0x738] sm:$0xff]
        %v2639 = vld [vmem:[#allocation5 + $0x740] sm:$0xff]
        %v2640 = vld [vmem:[#allocation5 + $0x748] sm:$0xff]
        %v2641 = vld [vmem:[#allocation5 + $0x750] sm:$0xff]
        %v2642 = vld [vmem:[#allocation5 + $0x758] sm:$0xff]
        %v2643 = vld [vmem:[#allocation5 + $0x760] sm:$0xff]
        %v2644 = vld [vmem:[#allocation5 + $0x768] sm:$0xff]
        %v2645 = vld [vmem:[#allocation5 + $0x770] sm:$0xff]
        %v2646 = vld [vmem:[#allocation5 + $0x778] sm:$0xff]
        %v2647 = vld [vmem:[#allocation5 + $0x780] sm:$0xff]
        %v2648 = vld [vmem:[#allocation5 + $0x788] sm:$0xff]
        %v2649 = vld [vmem:[#allocation5 + $0x790] sm:$0xff]
        %v2650 = vld [vmem:[#allocation5 + $0x798] sm:$0xff]
        %v2651 = vld [vmem:[#allocation5 + $0x7a0] sm:$0xff]
        %v2652 = vld [vmem:[#allocation5 + $0x7a8] sm:$0xff]
        %v2653 = vld [vmem:[#allocation5 + $0x7b0] sm:$0xff]
        %v2654 = vld [vmem:[#allocation5 + $0x7b8] sm:$0xff]
        %v2655 = vld [vmem:[#allocation5 + $0x7c0] sm:$0xff]
        %v2656 = vld [vmem:[#allocation5 + $0x7c8] sm:$0xff]
        %v2657 = vld [vmem:[#allocation5 + $0x7d0] sm:$0xff]
        %v2658 = vld [vmem:[#allocation5 + $0x7d8] sm:$0xff]
        %v2659 = vld [vmem:[#allocation5 + $0x7e0] sm:$0xff]
        %v2660 = vld [vmem:[#allocation5 + $0x7e8] sm:$0xff]
        %v2661 = vld [vmem:[#allocation5 + $0x7f0] sm:$0xff]
        %v2662 = vld [vmem:[#allocation5 + $0x7f8] sm:$0xff]
        %v2663 = vld [vmem:[%s4] sm:$0xf]
        %v2665 = vperm.slane %v2663, 0
        %v2666 = vperm.slane %v2663, 1
        %v2667 = vperm.slane %v2663, 2
        %v2668 = vperm.slane %v2663, 3
        %v2929 = vunpack.c.l.b16 %v2407
        %v2930 = vunpack.c.h.b16 %v2407
        %v2931 = vunpack.c.l.b16 %v2408
        %v2932 = vunpack.c.h.b16 %v2408
        %v2933 = vunpack.c.l.b16 %v2409
        %v2934 = vunpack.c.h.b16 %v2409
        %v2935 = vunpack.c.l.b16 %v2410
        %v2936 = vunpack.c.h.b16 %v2410
        %v2937 = vunpack.c.l.b16 %v2411
        %v2938 = vunpack.c.h.b16 %v2411
        %v2939 = vunpack.c.l.b16 %v2412
        %v2940 = vunpack.c.h.b16 %v2412
        %v2941 = vunpack.c.l.b16 %v2413
        %v2942 = vunpack.c.h.b16 %v2413
        %v2943 = vunpack.c.l.b16 %v2414
        %v2944 = vunpack.c.h.b16 %v2414
        %v2945 = vunpack.c.l.b16 %v2415
        %v2946 = vunpack.c.h.b16 %v2415
        %v2947 = vunpack.c.l.b16 %v2416
        %v2948 = vunpack.c.h.b16 %v2416
        %v2949 = vunpack.c.l.b16 %v2417
        %v2950 = vunpack.c.h.b16 %v2417
        %v2951 = vunpack.c.l.b16 %v2418
        %v2952 = vunpack.c.h.b16 %v2418
        %v2953 = vunpack.c.l.b16 %v2419
        %v2954 = vunpack.c.h.b16 %v2419
        %v2955 = vunpack.c.l.b16 %v2420
        %v2956 = vunpack.c.h.b16 %v2420
        %v2957 = vunpack.c.l.b16 %v2421
        %v2958 = vunpack.c.h.b16 %v2421
        %v2959 = vunpack.c.l.b16 %v2422
        %v2960 = vunpack.c.h.b16 %v2422
        %v2961 = vunpack.c.l.b16 %v2423
        %v2962 = vunpack.c.h.b16 %v2423
        %v2963 = vunpack.c.l.b16 %v2424
        %v2964 = vunpack.c.h.b16 %v2424
        %v2965 = vunpack.c.l.b16 %v2425
        %v2966 = vunpack.c.h.b16 %v2425
        %v2967 = vunpack.c.l.b16 %v2426
        %v2968 = vunpack.c.h.b16 %v2426
        %v2969 = vunpack.c.l.b16 %v2427
        %v2970 = vunpack.c.h.b16 %v2427
        %v2971 = vunpack.c.l.b16 %v2428
        %v2972 = vunpack.c.h.b16 %v2428
        %v2973 = vunpack.c.l.b16 %v2429
        %v2974 = vunpack.c.h.b16 %v2429
        %v2975 = vunpack.c.l.b16 %v2430
        %v2976 = vunpack.c.h.b16 %v2430
        %v2977 = vunpack.c.l.b16 %v2431
        %v2978 = vunpack.c.h.b16 %v2431
        %v2979 = vunpack.c.l.b16 %v2432
        %v2980 = vunpack.c.h.b16 %v2432
        %v2981 = vunpack.c.l.b16 %v2433
        %v2982 = vunpack.c.h.b16 %v2433
        %v2983 = vunpack.c.l.b16 %v2434
        %v2984 = vunpack.c.h.b16 %v2434
        %v2985 = vunpack.c.l.b16 %v2435
        %v2986 = vunpack.c.h.b16 %v2435
        %v2987 = vunpack.c.l.b16 %v2436
        %v2988 = vunpack.c.h.b16 %v2436
        %v2989 = vunpack.c.l.b16 %v2437
        %v2990 = vunpack.c.h.b16 %v2437
        %v2991 = vunpack.c.l.b16 %v2438
        %v2992 = vunpack.c.h.b16 %v2438
        %v2993 = vunpack.c.l.b16 %v2439
        %v2994 = vunpack.c.h.b16 %v2439
        %v2995 = vunpack.c.l.b16 %v2440
        %v2996 = vunpack.c.h.b16 %v2440
        %v2997 = vunpack.c.l.b16 %v2441
        %v2998 = vunpack.c.h.b16 %v2441
        %v2999 = vunpack.c.l.b16 %v2442
        %v3000 = vunpack.c.h.b16 %v2442
        %v3001 = vunpack.c.l.b16 %v2443
        %v3002 = vunpack.c.h.b16 %v2443
        %v3003 = vunpack.c.l.b16 %v2444
        %v3004 = vunpack.c.h.b16 %v2444
        %v3005 = vunpack.c.l.b16 %v2445
        %v3006 = vunpack.c.h.b16 %v2445
        %v3007 = vunpack.c.l.b16 %v2446
        %v3008 = vunpack.c.h.b16 %v2446
        %v3009 = vunpack.c.l.b16 %v2447
        %v3010 = vunpack.c.h.b16 %v2447
        %v3011 = vunpack.c.l.b16 %v2448
        %v3012 = vunpack.c.h.b16 %v2448
        %v3013 = vunpack.c.l.b16 %v2449
        %v3014 = vunpack.c.h.b16 %v2449
        %v3015 = vunpack.c.l.b16 %v2450
        %v3016 = vunpack.c.h.b16 %v2450
        %v3017 = vunpack.c.l.b16 %v2451
        %v3018 = vunpack.c.h.b16 %v2451
        %v3019 = vunpack.c.l.b16 %v2452
        %v3020 = vunpack.c.h.b16 %v2452
        %v3021 = vunpack.c.l.b16 %v2453
        %v3022 = vunpack.c.h.b16 %v2453
        %v3023 = vunpack.c.l.b16 %v2454
        %v3024 = vunpack.c.h.b16 %v2454
        %v3025 = vunpack.c.l.b16 %v2455
        %v3026 = vunpack.c.h.b16 %v2455
        %v3027 = vunpack.c.l.b16 %v2456
        %v3028 = vunpack.c.h.b16 %v2456
        %v3029 = vunpack.c.l.b16 %v2457
        %v3030 = vunpack.c.h.b16 %v2457
        %v3031 = vunpack.c.l.b16 %v2458
        %v3032 = vunpack.c.h.b16 %v2458
        %v3033 = vunpack.c.l.b16 %v2459
        %v3034 = vunpack.c.h.b16 %v2459
        %v3035 = vunpack.c.l.b16 %v2460
        %v3036 = vunpack.c.h.b16 %v2460
        %v3037 = vunpack.c.l.b16 %v2461
        %v3038 = vunpack.c.h.b16 %v2461
        %v3039 = vunpack.c.l.b16 %v2462
        %v3040 = vunpack.c.h.b16 %v2462
        %v3041 = vunpack.c.l.b16 %v2463
        %v3042 = vunpack.c.h.b16 %v2463
        %v3043 = vunpack.c.l.b16 %v2464
        %v3044 = vunpack.c.h.b16 %v2464
        %v3045 = vunpack.c.l.b16 %v2465
        %v3046 = vunpack.c.h.b16 %v2465
        %v3047 = vunpack.c.l.b16 %v2466
        %v3048 = vunpack.c.h.b16 %v2466
        %v3049 = vunpack.c.l.b16 %v2467
        %v3050 = vunpack.c.h.b16 %v2467
        %v3051 = vunpack.c.l.b16 %v2468
        %v3052 = vunpack.c.h.b16 %v2468
        %v3053 = vunpack.c.l.b16 %v2469
        %v3054 = vunpack.c.h.b16 %v2469
        %v3055 = vunpack.c.l.b16 %v2470
        %v3056 = vunpack.c.h.b16 %v2470
        %v3057 = vunpack.c.l.b16 %v2471
        %v3058 = vunpack.c.h.b16 %v2471
        %v3059 = vunpack.c.l.b16 %v2472
        %v3060 = vunpack.c.h.b16 %v2472
        %v3061 = vunpack.c.l.b16 %v2473
        %v3062 = vunpack.c.h.b16 %v2473
        %v3063 = vunpack.c.l.b16 %v2474
        %v3064 = vunpack.c.h.b16 %v2474
        %v3065 = vunpack.c.l.b16 %v2475
        %v3066 = vunpack.c.h.b16 %v2475
        %v3067 = vunpack.c.l.b16 %v2476
        %v3068 = vunpack.c.h.b16 %v2476
        %v3069 = vunpack.c.l.b16 %v2477
        %v3070 = vunpack.c.h.b16 %v2477
        %v3071 = vunpack.c.l.b16 %v2478
        %v3072 = vunpack.c.h.b16 %v2478
        %v3073 = vunpack.c.l.b16 %v2479
        %v3074 = vunpack.c.h.b16 %v2479
        %v3075 = vunpack.c.l.b16 %v2480
        %v3076 = vunpack.c.h.b16 %v2480
        %v3077 = vunpack.c.l.b16 %v2481
        %v3078 = vunpack.c.h.b16 %v2481
        %v3079 = vunpack.c.l.b16 %v2482
        %v3080 = vunpack.c.h.b16 %v2482
        %v3081 = vunpack.c.l.b16 %v2483
        %v3082 = vunpack.c.h.b16 %v2483
        %v3083 = vunpack.c.l.b16 %v2484
        %v3084 = vunpack.c.h.b16 %v2484
        %v3085 = vunpack.c.l.b16 %v2485
        %v3086 = vunpack.c.h.b16 %v2485
        %v3087 = vunpack.c.l.b16 %v2486
        %v3088 = vunpack.c.h.b16 %v2486
        %v3089 = vunpack.c.l.b16 %v2487
        %v3090 = vunpack.c.h.b16 %v2487
        %v3091 = vunpack.c.l.b16 %v2488
        %v3092 = vunpack.c.h.b16 %v2488
        %v3093 = vunpack.c.l.b16 %v2489
        %v3094 = vunpack.c.h.b16 %v2489
        %v3095 = vunpack.c.l.b16 %v2490
        %v3096 = vunpack.c.h.b16 %v2490
        %v3097 = vunpack.c.l.b16 %v2491
        %v3098 = vunpack.c.h.b16 %v2491
        %v3099 = vunpack.c.l.b16 %v2492
        %v3100 = vunpack.c.h.b16 %v2492
        %v3101 = vunpack.c.l.b16 %v2493
        %v3102 = vunpack.c.h.b16 %v2493
        %v3103 = vunpack.c.l.b16 %v2494
        %v3104 = vunpack.c.h.b16 %v2494
        %v3105 = vunpack.c.l.b16 %v2495
        %v3106 = vunpack.c.h.b16 %v2495
        %v3107 = vunpack.c.l.b16 %v2496
        %v3108 = vunpack.c.h.b16 %v2496
        %v3109 = vunpack.c.l.b16 %v2497
        %v3110 = vunpack.c.h.b16 %v2497
        %v3111 = vunpack.c.l.b16 %v2498
        %v3112 = vunpack.c.h.b16 %v2498
        %v3113 = vunpack.c.l.b16 %v2499
        %v3114 = vunpack.c.h.b16 %v2499
        %v3115 = vunpack.c.l.b16 %v2500
        %v3116 = vunpack.c.h.b16 %v2500
        %v3117 = vunpack.c.l.b16 %v2501
        %v3118 = vunpack.c.h.b16 %v2501
        %v3119 = vunpack.c.l.b16 %v2502
        %v3120 = vunpack.c.h.b16 %v2502
        %v3121 = vunpack.c.l.b16 %v2503
        %v3122 = vunpack.c.h.b16 %v2503
        %v3123 = vunpack.c.l.b16 %v2504
        %v3124 = vunpack.c.h.b16 %v2504
        %v3125 = vunpack.c.l.b16 %v2505
        %v3126 = vunpack.c.h.b16 %v2505
        %v3127 = vunpack.c.l.b16 %v2506
        %v3128 = vunpack.c.h.b16 %v2506
        %v3129 = vunpack.c.l.b16 %v2507
        %v3130 = vunpack.c.h.b16 %v2507
        %v3131 = vunpack.c.l.b16 %v2508
        %v3132 = vunpack.c.h.b16 %v2508
        %v3133 = vunpack.c.l.b16 %v2509
        %v3134 = vunpack.c.h.b16 %v2509
        %v3135 = vunpack.c.l.b16 %v2510
        %v3136 = vunpack.c.h.b16 %v2510
        %v3137 = vunpack.c.l.b16 %v2511
        %v3138 = vunpack.c.h.b16 %v2511
        %v3139 = vunpack.c.l.b16 %v2512
        %v3140 = vunpack.c.h.b16 %v2512
        %v3141 = vunpack.c.l.b16 %v2513
        %v3142 = vunpack.c.h.b16 %v2513
        %v3143 = vunpack.c.l.b16 %v2514
        %v3144 = vunpack.c.h.b16 %v2514
        %v3145 = vunpack.c.l.b16 %v2515
        %v3146 = vunpack.c.h.b16 %v2515
        %v3147 = vunpack.c.l.b16 %v2516
        %v3148 = vunpack.c.h.b16 %v2516
        %v3149 = vunpack.c.l.b16 %v2517
        %v3150 = vunpack.c.h.b16 %v2517
        %v3151 = vunpack.c.l.b16 %v2518
        %v3152 = vunpack.c.h.b16 %v2518
        %v3153 = vunpack.c.l.b16 %v2519
        %v3154 = vunpack.c.h.b16 %v2519
        %v3155 = vunpack.c.l.b16 %v2520
        %v3156 = vunpack.c.h.b16 %v2520
        %v3157 = vunpack.c.l.b16 %v2521
        %v3158 = vunpack.c.h.b16 %v2521
        %v3159 = vunpack.c.l.b16 %v2522
        %v3160 = vunpack.c.h.b16 %v2522
        %v3161 = vunpack.c.l.b16 %v2523
        %v3162 = vunpack.c.h.b16 %v2523
        %v3163 = vunpack.c.l.b16 %v2524
        %v3164 = vunpack.c.h.b16 %v2524
        %v3165 = vunpack.c.l.b16 %v2525
        %v3166 = vunpack.c.h.b16 %v2525
        %v3167 = vunpack.c.l.b16 %v2526
        %v3168 = vunpack.c.h.b16 %v2526
        %v3169 = vunpack.c.l.b16 %v2527
        %v3170 = vunpack.c.h.b16 %v2527
        %v3171 = vunpack.c.l.b16 %v2528
        %v3172 = vunpack.c.h.b16 %v2528
        %v3173 = vunpack.c.l.b16 %v2529
        %v3174 = vunpack.c.h.b16 %v2529
        %v3175 = vunpack.c.l.b16 %v2530
        %v3176 = vunpack.c.h.b16 %v2530
        %v3177 = vunpack.c.l.b16 %v2531
        %v3178 = vunpack.c.h.b16 %v2531
        %v3179 = vunpack.c.l.b16 %v2532
        %v3180 = vunpack.c.h.b16 %v2532
        %v3181 = vunpack.c.l.b16 %v2533
        %v3182 = vunpack.c.h.b16 %v2533
        %v3183 = vunpack.c.l.b16 %v2534
        %v3184 = vunpack.c.h.b16 %v2534
        %v3185 = vunpack.c.l.b16 %v2535
        %v3186 = vunpack.c.h.b16 %v2535
        %v3187 = vunpack.c.l.b16 %v2536
        %v3188 = vunpack.c.h.b16 %v2536
        %v3189 = vunpack.c.l.b16 %v2537
        %v3190 = vunpack.c.h.b16 %v2537
        %v3191 = vunpack.c.l.b16 %v2538
        %v3192 = vunpack.c.h.b16 %v2538
        %v3193 = vunpack.c.l.b16 %v2539
        %v3194 = vunpack.c.h.b16 %v2539
        %v3195 = vunpack.c.l.b16 %v2540
        %v3196 = vunpack.c.h.b16 %v2540
        %v3197 = vunpack.c.l.b16 %v2541
        %v3198 = vunpack.c.h.b16 %v2541
        %v3199 = vunpack.c.l.b16 %v2542
        %v3200 = vunpack.c.h.b16 %v2542
        %v3201 = vunpack.c.l.b16 %v2543
        %v3202 = vunpack.c.h.b16 %v2543
        %v3203 = vunpack.c.l.b16 %v2544
        %v3204 = vunpack.c.h.b16 %v2544
        %v3205 = vunpack.c.l.b16 %v2545
        %v3206 = vunpack.c.h.b16 %v2545
        %v3207 = vunpack.c.l.b16 %v2546
        %v3208 = vunpack.c.h.b16 %v2546
        %v3209 = vunpack.c.l.b16 %v2547
        %v3210 = vunpack.c.h.b16 %v2547
        %v3211 = vunpack.c.l.b16 %v2548
        %v3212 = vunpack.c.h.b16 %v2548
        %v3213 = vunpack.c.l.b16 %v2549
        %v3214 = vunpack.c.h.b16 %v2549
        %v3215 = vunpack.c.l.b16 %v2550
        %v3216 = vunpack.c.h.b16 %v2550
        %v3217 = vunpack.c.l.b16 %v2551
        %v3218 = vunpack.c.h.b16 %v2551
        %v3219 = vunpack.c.l.b16 %v2552
        %v3220 = vunpack.c.h.b16 %v2552
        %v3221 = vunpack.c.l.b16 %v2553
        %v3222 = vunpack.c.h.b16 %v2553
        %v3223 = vunpack.c.l.b16 %v2554
        %v3224 = vunpack.c.h.b16 %v2554
        %v3225 = vunpack.c.l.b16 %v2555
        %v3226 = vunpack.c.h.b16 %v2555
        %v3227 = vunpack.c.l.b16 %v2556
        %v3228 = vunpack.c.h.b16 %v2556
        %v3229 = vunpack.c.l.b16 %v2557
        %v3230 = vunpack.c.h.b16 %v2557
        %v3231 = vunpack.c.l.b16 %v2558
        %v3232 = vunpack.c.h.b16 %v2558
        %v3233 = vunpack.c.l.b16 %v2559
        %v3234 = vunpack.c.h.b16 %v2559
        %v3235 = vunpack.c.l.b16 %v2560
        %v3236 = vunpack.c.h.b16 %v2560
        %v3237 = vunpack.c.l.b16 %v2561
        %v3238 = vunpack.c.h.b16 %v2561
        %v3239 = vunpack.c.l.b16 %v2562
        %v3240 = vunpack.c.h.b16 %v2562
        %v3241 = vunpack.c.l.b16 %v2563
        %v3242 = vunpack.c.h.b16 %v2563
        %v3243 = vunpack.c.l.b16 %v2564
        %v3244 = vunpack.c.h.b16 %v2564
        %v3245 = vunpack.c.l.b16 %v2565
        %v3246 = vunpack.c.h.b16 %v2565
        %v3247 = vunpack.c.l.b16 %v2566
        %v3248 = vunpack.c.h.b16 %v2566
        %v3249 = vunpack.c.l.b16 %v2567
        %v3250 = vunpack.c.h.b16 %v2567
        %v3251 = vunpack.c.l.b16 %v2568
        %v3252 = vunpack.c.h.b16 %v2568
        %v3253 = vunpack.c.l.b16 %v2569
        %v3254 = vunpack.c.h.b16 %v2569
        %v3255 = vunpack.c.l.b16 %v2570
        %v3256 = vunpack.c.h.b16 %v2570
        %v3257 = vunpack.c.l.b16 %v2571
        %v3258 = vunpack.c.h.b16 %v2571
        %v3259 = vunpack.c.l.b16 %v2572
        %v3260 = vunpack.c.h.b16 %v2572
        %v3261 = vunpack.c.l.b16 %v2573
        %v3262 = vunpack.c.h.b16 %v2573
        %v3263 = vunpack.c.l.b16 %v2574
        %v3264 = vunpack.c.h.b16 %v2574
        %v3265 = vunpack.c.l.b16 %v2575
        %v3266 = vunpack.c.h.b16 %v2575
        %v3267 = vunpack.c.l.b16 %v2576
        %v3268 = vunpack.c.h.b16 %v2576
        %v3269 = vunpack.c.l.b16 %v2577
        %v3270 = vunpack.c.h.b16 %v2577
        %v3271 = vunpack.c.l.b16 %v2578
        %v3272 = vunpack.c.h.b16 %v2578
        %v3273 = vunpack.c.l.b16 %v2579
        %v3274 = vunpack.c.h.b16 %v2579
        %v3275 = vunpack.c.l.b16 %v2580
        %v3276 = vunpack.c.h.b16 %v2580
        %v3277 = vunpack.c.l.b16 %v2581
        %v3278 = vunpack.c.h.b16 %v2581
        %v3279 = vunpack.c.l.b16 %v2582
        %v3280 = vunpack.c.h.b16 %v2582
        %v3281 = vunpack.c.l.b16 %v2583
        %v3282 = vunpack.c.h.b16 %v2583
        %v3283 = vunpack.c.l.b16 %v2584
        %v3284 = vunpack.c.h.b16 %v2584
        %v3285 = vunpack.c.l.b16 %v2585
        %v3286 = vunpack.c.h.b16 %v2585
        %v3287 = vunpack.c.l.b16 %v2586
        %v3288 = vunpack.c.h.b16 %v2586
        %v3289 = vunpack.c.l.b16 %v2587
        %v3290 = vunpack.c.h.b16 %v2587
        %v3291 = vunpack.c.l.b16 %v2588
        %v3292 = vunpack.c.h.b16 %v2588
        %v3293 = vunpack.c.l.b16 %v2589
        %v3294 = vunpack.c.h.b16 %v2589
        %v3295 = vunpack.c.l.b16 %v2590
        %v3296 = vunpack.c.h.b16 %v2590
        %v3297 = vunpack.c.l.b16 %v2591
        %v3298 = vunpack.c.h.b16 %v2591
        %v3299 = vunpack.c.l.b16 %v2592
        %v3300 = vunpack.c.h.b16 %v2592
        %v3301 = vunpack.c.l.b16 %v2593
        %v3302 = vunpack.c.h.b16 %v2593
        %v3303 = vunpack.c.l.b16 %v2594
        %v3304 = vunpack.c.h.b16 %v2594
        %v3305 = vunpack.c.l.b16 %v2595
        %v3306 = vunpack.c.h.b16 %v2595
        %v3307 = vunpack.c.l.b16 %v2596
        %v3308 = vunpack.c.h.b16 %v2596
        %v3309 = vunpack.c.l.b16 %v2597
        %v3310 = vunpack.c.h.b16 %v2597
        %v3311 = vunpack.c.l.b16 %v2598
        %v3312 = vunpack.c.h.b16 %v2598
        %v3313 = vunpack.c.l.b16 %v2599
        %v3314 = vunpack.c.h.b16 %v2599
        %v3315 = vunpack.c.l.b16 %v2600
        %v3316 = vunpack.c.h.b16 %v2600
        %v3317 = vunpack.c.l.b16 %v2601
        %v3318 = vunpack.c.h.b16 %v2601
        %v3319 = vunpack.c.l.b16 %v2602
        %v3320 = vunpack.c.h.b16 %v2602
        %v3321 = vunpack.c.l.b16 %v2603
        %v3322 = vunpack.c.h.b16 %v2603
        %v3323 = vunpack.c.l.b16 %v2604
        %v3324 = vunpack.c.h.b16 %v2604
        %v3325 = vunpack.c.l.b16 %v2605
        %v3326 = vunpack.c.h.b16 %v2605
        %v3327 = vunpack.c.l.b16 %v2606
        %v3328 = vunpack.c.h.b16 %v2606
        %v3329 = vunpack.c.l.b16 %v2607
        %v3330 = vunpack.c.h.b16 %v2607
        %v3331 = vunpack.c.l.b16 %v2608
        %v3332 = vunpack.c.h.b16 %v2608
        %v3333 = vunpack.c.l.b16 %v2609
        %v3334 = vunpack.c.h.b16 %v2609
        %v3335 = vunpack.c.l.b16 %v2610
        %v3336 = vunpack.c.h.b16 %v2610
        %v3337 = vunpack.c.l.b16 %v2611
        %v3338 = vunpack.c.h.b16 %v2611
        %v3339 = vunpack.c.l.b16 %v2612
        %v3340 = vunpack.c.h.b16 %v2612
        %v3341 = vunpack.c.l.b16 %v2613
        %v3342 = vunpack.c.h.b16 %v2613
        %v3343 = vunpack.c.l.b16 %v2614
        %v3344 = vunpack.c.h.b16 %v2614
        %v3345 = vunpack.c.l.b16 %v2615
        %v3346 = vunpack.c.h.b16 %v2615
        %v3347 = vunpack.c.l.b16 %v2616
        %v3348 = vunpack.c.h.b16 %v2616
        %v3349 = vunpack.c.l.b16 %v2617
        %v3350 = vunpack.c.h.b16 %v2617
        %v3351 = vunpack.c.l.b16 %v2618
        %v3352 = vunpack.c.h.b16 %v2618
        %v3353 = vunpack.c.l.b16 %v2619
        %v3354 = vunpack.c.h.b16 %v2619
        %v3355 = vunpack.c.l.b16 %v2620
        %v3356 = vunpack.c.h.b16 %v2620
        %v3357 = vunpack.c.l.b16 %v2621
        %v3358 = vunpack.c.h.b16 %v2621
        %v3359 = vunpack.c.l.b16 %v2622
        %v3360 = vunpack.c.h.b16 %v2622
        %v3361 = vunpack.c.l.b16 %v2623
        %v3362 = vunpack.c.h.b16 %v2623
        %v3363 = vunpack.c.l.b16 %v2624
        %v3364 = vunpack.c.h.b16 %v2624
        %v3365 = vunpack.c.l.b16 %v2625
        %v3366 = vunpack.c.h.b16 %v2625
        %v3367 = vunpack.c.l.b16 %v2626
        %v3368 = vunpack.c.h.b16 %v2626
        %v3369 = vunpack.c.l.b16 %v2627
        %v3370 = vunpack.c.h.b16 %v2627
        %v3371 = vunpack.c.l.b16 %v2628
        %v3372 = vunpack.c.h.b16 %v2628
        %v3373 = vunpack.c.l.b16 %v2629
        %v3374 = vunpack.c.h.b16 %v2629
        %v3375 = vunpack.c.l.b16 %v2630
        %v3376 = vunpack.c.h.b16 %v2630
        %v3377 = vunpack.c.l.b16 %v2631
        %v3378 = vunpack.c.h.b16 %v2631
        %v3379 = vunpack.c.l.b16 %v2632
        %v3380 = vunpack.c.h.b16 %v2632
        %v3381 = vunpack.c.l.b16 %v2633
        %v3382 = vunpack.c.h.b16 %v2633
        %v3383 = vunpack.c.l.b16 %v2634
        %v3384 = vunpack.c.h.b16 %v2634
        %v3385 = vunpack.c.l.b16 %v2635
        %v3386 = vunpack.c.h.b16 %v2635
        %v3387 = vunpack.c.l.b16 %v2636
        %v3388 = vunpack.c.h.b16 %v2636
        %v3389 = vunpack.c.l.b16 %v2637
        %v3390 = vunpack.c.h.b16 %v2637
        %v3391 = vunpack.c.l.b16 %v2638
        %v3392 = vunpack.c.h.b16 %v2638
        %v3393 = vunpack.c.l.b16 %v2639
        %v3394 = vunpack.c.h.b16 %v2639
        %v3395 = vunpack.c.l.b16 %v2640
        %v3396 = vunpack.c.h.b16 %v2640
        %v3397 = vunpack.c.l.b16 %v2641
        %v3398 = vunpack.c.h.b16 %v2641
        %v3399 = vunpack.c.l.b16 %v2642
        %v3400 = vunpack.c.h.b16 %v2642
        %v3401 = vunpack.c.l.b16 %v2643
        %v3402 = vunpack.c.h.b16 %v2643
        %v3403 = vunpack.c.l.b16 %v2644
        %v3404 = vunpack.c.h.b16 %v2644
        %v3405 = vunpack.c.l.b16 %v2645
        %v3406 = vunpack.c.h.b16 %v2645
        %v3407 = vunpack.c.l.b16 %v2646
        %v3408 = vunpack.c.h.b16 %v2646
        %v3409 = vunpack.c.l.b16 %v2647
        %v3410 = vunpack.c.h.b16 %v2647
        %v3411 = vunpack.c.l.b16 %v2648
        %v3412 = vunpack.c.h.b16 %v2648
        %v3413 = vunpack.c.l.b16 %v2649
        %v3414 = vunpack.c.h.b16 %v2649
        %v3415 = vunpack.c.l.b16 %v2650
        %v3416 = vunpack.c.h.b16 %v2650
        %v3417 = vunpack.c.l.b16 %v2651
        %v3418 = vunpack.c.h.b16 %v2651
        %v3419 = vunpack.c.l.b16 %v2652
        %v3420 = vunpack.c.h.b16 %v2652
        %v3421 = vunpack.c.l.b16 %v2653
        %v3422 = vunpack.c.h.b16 %v2653
        %v3423 = vunpack.c.l.b16 %v2654
        %v3424 = vunpack.c.h.b16 %v2654
        %v3425 = vunpack.c.l.b16 %v2655
        %v3426 = vunpack.c.h.b16 %v2655
        %v3427 = vunpack.c.l.b16 %v2656
        %v3428 = vunpack.c.h.b16 %v2656
        %v3429 = vunpack.c.l.b16 %v2657
        %v3430 = vunpack.c.h.b16 %v2657
        %v3431 = vunpack.c.l.b16 %v2658
        %v3432 = vunpack.c.h.b16 %v2658
        %v3433 = vunpack.c.l.b16 %v2659
        %v3434 = vunpack.c.h.b16 %v2659
        %v3435 = vunpack.c.l.b16 %v2660
        %v3436 = vunpack.c.h.b16 %v2660
        %v3437 = vunpack.c.l.b16 %v2661
        %v3438 = vunpack.c.h.b16 %v2661
        %v3439 = vunpack.c.l.b16 %v2662
        %v3440 = vunpack.c.h.b16 %v2662
        %v3441 = vpack.c.b16 %v2933, %v2929
        %v3442 = vpack.c.b16 %v2934, %v2930
        %v3443 = vpack.c.b16 %v2935, %v2931
        %v3444 = vpack.c.b16 %v2936, %v2932
        %v3445 = vpack.c.b16 %v2941, %v2937
        %v3446 = vpack.c.b16 %v2942, %v2938
        %v3447 = vpack.c.b16 %v2943, %v2939
        %v3448 = vpack.c.b16 %v2944, %v2940
        %v3449 = vpack.c.b16 %v2949, %v2945
        %v3450 = vpack.c.b16 %v2950, %v2946
        %v3451 = vpack.c.b16 %v2951, %v2947
        %v3452 = vpack.c.b16 %v2952, %v2948
        %v3453 = vpack.c.b16 %v2957, %v2953
        %v3454 = vpack.c.b16 %v2958, %v2954
        %v3455 = vpack.c.b16 %v2959, %v2955
        %v3456 = vpack.c.b16 %v2960, %v2956
        %v3457 = vpack.c.b16 %v2965, %v2961
        %v3458 = vpack.c.b16 %v2966, %v2962
        %v3459 = vpack.c.b16 %v2967, %v2963
        %v3460 = vpack.c.b16 %v2968, %v2964
        %v3461 = vpack.c.b16 %v2973, %v2969
        %v3462 = vpack.c.b16 %v2974, %v2970
        %v3463 = vpack.c.b16 %v2975, %v2971
        %v3464 = vpack.c.b16 %v2976, %v2972
        %v3465 = vpack.c.b16 %v2981, %v2977
        %v3466 = vpack.c.b16 %v2982, %v2978
        %v3467 = vpack.c.b16 %v2983, %v2979
        %v3468 = vpack.c.b16 %v2984, %v2980
        %v3469 = vpack.c.b16 %v2989, %v2985
        %v3470 = vpack.c.b16 %v2990, %v2986
        %v3471 = vpack.c.b16 %v2991, %v2987
        %v3472 = vpack.c.b16 %v2992, %v2988
        %v3473 = vpack.c.b16 %v2997, %v2993
        %v3474 = vpack.c.b16 %v2998, %v2994
        %v3475 = vpack.c.b16 %v2999, %v2995
        %v3476 = vpack.c.b16 %v3000, %v2996
        %v3477 = vpack.c.b16 %v3005, %v3001
        %v3478 = vpack.c.b16 %v3006, %v3002
        %v3479 = vpack.c.b16 %v3007, %v3003
        %v3480 = vpack.c.b16 %v3008, %v3004
        %v3481 = vpack.c.b16 %v3013, %v3009
        %v3482 = vpack.c.b16 %v3014, %v3010
        %v3483 = vpack.c.b16 %v3015, %v3011
        %v3484 = vpack.c.b16 %v3016, %v3012
        %v3485 = vpack.c.b16 %v3021, %v3017
        %v3486 = vpack.c.b16 %v3022, %v3018
        %v3487 = vpack.c.b16 %v3023, %v3019
        %v3488 = vpack.c.b16 %v3024, %v3020
        %v3489 = vpack.c.b16 %v3029, %v3025
        %v3490 = vpack.c.b16 %v3030, %v3026
        %v3491 = vpack.c.b16 %v3031, %v3027
        %v3492 = vpack.c.b16 %v3032, %v3028
        %v3493 = vpack.c.b16 %v3037, %v3033
        %v3494 = vpack.c.b16 %v3038, %v3034
        %v3495 = vpack.c.b16 %v3039, %v3035
        %v3496 = vpack.c.b16 %v3040, %v3036
        %v3497 = vpack.c.b16 %v3045, %v3041
        %v3498 = vpack.c.b16 %v3046, %v3042
        %v3499 = vpack.c.b16 %v3047, %v3043
        %v3500 = vpack.c.b16 %v3048, %v3044
        %v3501 = vpack.c.b16 %v3053, %v3049
        %v3502 = vpack.c.b16 %v3054, %v3050
        %v3503 = vpack.c.b16 %v3055, %v3051
        %v3504 = vpack.c.b16 %v3056, %v3052
        %v3505 = vpack.c.b16 %v3061, %v3057
        %v3506 = vpack.c.b16 %v3062, %v3058
        %v3507 = vpack.c.b16 %v3063, %v3059
        %v3508 = vpack.c.b16 %v3064, %v3060
        %v3509 = vpack.c.b16 %v3069, %v3065
        %v3510 = vpack.c.b16 %v3070, %v3066
        %v3511 = vpack.c.b16 %v3071, %v3067
        %v3512 = vpack.c.b16 %v3072, %v3068
        %v3513 = vpack.c.b16 %v3077, %v3073
        %v3514 = vpack.c.b16 %v3078, %v3074
        %v3515 = vpack.c.b16 %v3079, %v3075
        %v3516 = vpack.c.b16 %v3080, %v3076
        %v3517 = vpack.c.b16 %v3085, %v3081
        %v3518 = vpack.c.b16 %v3086, %v3082
        %v3519 = vpack.c.b16 %v3087, %v3083
        %v3520 = vpack.c.b16 %v3088, %v3084
        %v3521 = vpack.c.b16 %v3093, %v3089
        %v3522 = vpack.c.b16 %v3094, %v3090
        %v3523 = vpack.c.b16 %v3095, %v3091
        %v3524 = vpack.c.b16 %v3096, %v3092
        %v3525 = vpack.c.b16 %v3101, %v3097
        %v3526 = vpack.c.b16 %v3102, %v3098
        %v3527 = vpack.c.b16 %v3103, %v3099
        %v3528 = vpack.c.b16 %v3104, %v3100
        %v3529 = vpack.c.b16 %v3109, %v3105
        %v3530 = vpack.c.b16 %v3110, %v3106
        %v3531 = vpack.c.b16 %v3111, %v3107
        %v3532 = vpack.c.b16 %v3112, %v3108
        %v3533 = vpack.c.b16 %v3117, %v3113
        %v3534 = vpack.c.b16 %v3118, %v3114
        %v3535 = vpack.c.b16 %v3119, %v3115
        %v3536 = vpack.c.b16 %v3120, %v3116
        %v3537 = vpack.c.b16 %v3125, %v3121
        %v3538 = vpack.c.b16 %v3126, %v3122
        %v3539 = vpack.c.b16 %v3127, %v3123
        %v3540 = vpack.c.b16 %v3128, %v3124
        %v3541 = vpack.c.b16 %v3133, %v3129
        %v3542 = vpack.c.b16 %v3134, %v3130
        %v3543 = vpack.c.b16 %v3135, %v3131
        %v3544 = vpack.c.b16 %v3136, %v3132
        %v3545 = vpack.c.b16 %v3141, %v3137
        %v3546 = vpack.c.b16 %v3142, %v3138
        %v3547 = vpack.c.b16 %v3143, %v3139
        %v3548 = vpack.c.b16 %v3144, %v3140
        %v3549 = vpack.c.b16 %v3149, %v3145
        %v3550 = vpack.c.b16 %v3150, %v3146
        %v3551 = vpack.c.b16 %v3151, %v3147
        %v3552 = vpack.c.b16 %v3152, %v3148
        %v3553 = vpack.c.b16 %v3157, %v3153
        %v3554 = vpack.c.b16 %v3158, %v3154
        %v3555 = vpack.c.b16 %v3159, %v3155
        %v3556 = vpack.c.b16 %v3160, %v3156
        %v3557 = vpack.c.b16 %v3165, %v3161
        %v3558 = vpack.c.b16 %v3166, %v3162
        %v3559 = vpack.c.b16 %v3167, %v3163
        %v3560 = vpack.c.b16 %v3168, %v3164
        %v3561 = vpack.c.b16 %v3173, %v3169
        %v3562 = vpack.c.b16 %v3174, %v3170
        %v3563 = vpack.c.b16 %v3175, %v3171
        %v3564 = vpack.c.b16 %v3176, %v3172
        %v3565 = vpack.c.b16 %v3181, %v3177
        %v3566 = vpack.c.b16 %v3182, %v3178
        %v3567 = vpack.c.b16 %v3183, %v3179
        %v3568 = vpack.c.b16 %v3184, %v3180
        %v3569 = vpack.c.b16 %v3189, %v3185
        %v3570 = vpack.c.b16 %v3190, %v3186
        %v3571 = vpack.c.b16 %v3191, %v3187
        %v3572 = vpack.c.b16 %v3192, %v3188
        %v3573 = vpack.c.b16 %v3197, %v3193
        %v3574 = vpack.c.b16 %v3198, %v3194
        %v3575 = vpack.c.b16 %v3199, %v3195
        %v3576 = vpack.c.b16 %v3200, %v3196
        %v3577 = vpack.c.b16 %v3205, %v3201
        %v3578 = vpack.c.b16 %v3206, %v3202
        %v3579 = vpack.c.b16 %v3207, %v3203
        %v3580 = vpack.c.b16 %v3208, %v3204
        %v3581 = vpack.c.b16 %v3213, %v3209
        %v3582 = vpack.c.b16 %v3214, %v3210
        %v3583 = vpack.c.b16 %v3215, %v3211
        %v3584 = vpack.c.b16 %v3216, %v3212
        %v3585 = vpack.c.b16 %v3221, %v3217
        %v3586 = vpack.c.b16 %v3222, %v3218
        %v3587 = vpack.c.b16 %v3223, %v3219
        %v3588 = vpack.c.b16 %v3224, %v3220
        %v3589 = vpack.c.b16 %v3229, %v3225
        %v3590 = vpack.c.b16 %v3230, %v3226
        %v3591 = vpack.c.b16 %v3231, %v3227
        %v3592 = vpack.c.b16 %v3232, %v3228
        %v3593 = vpack.c.b16 %v3237, %v3233
        %v3594 = vpack.c.b16 %v3238, %v3234
        %v3595 = vpack.c.b16 %v3239, %v3235
        %v3596 = vpack.c.b16 %v3240, %v3236
        %v3597 = vpack.c.b16 %v3245, %v3241
        %v3598 = vpack.c.b16 %v3246, %v3242
        %v3599 = vpack.c.b16 %v3247, %v3243
        %v3600 = vpack.c.b16 %v3248, %v3244
        %v3601 = vpack.c.b16 %v3253, %v3249
        %v3602 = vpack.c.b16 %v3254, %v3250
        %v3603 = vpack.c.b16 %v3255, %v3251
        %v3604 = vpack.c.b16 %v3256, %v3252
        %v3605 = vpack.c.b16 %v3261, %v3257
        %v3606 = vpack.c.b16 %v3262, %v3258
        %v3607 = vpack.c.b16 %v3263, %v3259
        %v3608 = vpack.c.b16 %v3264, %v3260
        %v3609 = vpack.c.b16 %v3269, %v3265
        %v3610 = vpack.c.b16 %v3270, %v3266
        %v3611 = vpack.c.b16 %v3271, %v3267
        %v3612 = vpack.c.b16 %v3272, %v3268
        %v3613 = vpack.c.b16 %v3277, %v3273
        %v3614 = vpack.c.b16 %v3278, %v3274
        %v3615 = vpack.c.b16 %v3279, %v3275
        %v3616 = vpack.c.b16 %v3280, %v3276
        %v3617 = vpack.c.b16 %v3285, %v3281
        %v3618 = vpack.c.b16 %v3286, %v3282
        %v3619 = vpack.c.b16 %v3287, %v3283
        %v3620 = vpack.c.b16 %v3288, %v3284
        %v3621 = vpack.c.b16 %v3293, %v3289
        %v3622 = vpack.c.b16 %v3294, %v3290
        %v3623 = vpack.c.b16 %v3295, %v3291
        %v3624 = vpack.c.b16 %v3296, %v3292
        %v3625 = vpack.c.b16 %v3301, %v3297
        %v3626 = vpack.c.b16 %v3302, %v3298
        %v3627 = vpack.c.b16 %v3303, %v3299
        %v3628 = vpack.c.b16 %v3304, %v3300
        %v3629 = vpack.c.b16 %v3309, %v3305
        %v3630 = vpack.c.b16 %v3310, %v3306
        %v3631 = vpack.c.b16 %v3311, %v3307
        %v3632 = vpack.c.b16 %v3312, %v3308
        %v3633 = vpack.c.b16 %v3317, %v3313
        %v3634 = vpack.c.b16 %v3318, %v3314
        %v3635 = vpack.c.b16 %v3319, %v3315
        %v3636 = vpack.c.b16 %v3320, %v3316
        %v3637 = vpack.c.b16 %v3325, %v3321
        %v3638 = vpack.c.b16 %v3326, %v3322
        %v3639 = vpack.c.b16 %v3327, %v3323
        %v3640 = vpack.c.b16 %v3328, %v3324
        %v3641 = vpack.c.b16 %v3333, %v3329
        %v3642 = vpack.c.b16 %v3334, %v3330
        %v3643 = vpack.c.b16 %v3335, %v3331
        %v3644 = vpack.c.b16 %v3336, %v3332
        %v3645 = vpack.c.b16 %v3341, %v3337
        %v3646 = vpack.c.b16 %v3342, %v3338
        %v3647 = vpack.c.b16 %v3343, %v3339
        %v3648 = vpack.c.b16 %v3344, %v3340
        %v3649 = vpack.c.b16 %v3349, %v3345
        %v3650 = vpack.c.b16 %v3350, %v3346
        %v3651 = vpack.c.b16 %v3351, %v3347
        %v3652 = vpack.c.b16 %v3352, %v3348
        %v3653 = vpack.c.b16 %v3357, %v3353
        %v3654 = vpack.c.b16 %v3358, %v3354
        %v3655 = vpack.c.b16 %v3359, %v3355
        %v3656 = vpack.c.b16 %v3360, %v3356
        %v3657 = vpack.c.b16 %v3365, %v3361
        %v3658 = vpack.c.b16 %v3366, %v3362
        %v3659 = vpack.c.b16 %v3367, %v3363
        %v3660 = vpack.c.b16 %v3368, %v3364
        %v3661 = vpack.c.b16 %v3373, %v3369
        %v3662 = vpack.c.b16 %v3374, %v3370
        %v3663 = vpack.c.b16 %v3375, %v3371
        %v3664 = vpack.c.b16 %v3376, %v3372
        %v3665 = vpack.c.b16 %v3381, %v3377
        %v3666 = vpack.c.b16 %v3382, %v3378
        %v3667 = vpack.c.b16 %v3383, %v3379
        %v3668 = vpack.c.b16 %v3384, %v3380
        %v3669 = vpack.c.b16 %v3389, %v3385
        %v3670 = vpack.c.b16 %v3390, %v3386
        %v3671 = vpack.c.b16 %v3391, %v3387
        %v3672 = vpack.c.b16 %v3392, %v3388
        %v3673 = vpack.c.b16 %v3397, %v3393
        %v3674 = vpack.c.b16 %v3398, %v3394
        %v3675 = vpack.c.b16 %v3399, %v3395
        %v3676 = vpack.c.b16 %v3400, %v3396
        %v3677 = vpack.c.b16 %v3405, %v3401
        %v3678 = vpack.c.b16 %v3406, %v3402
        %v3679 = vpack.c.b16 %v3407, %v3403
        %v3680 = vpack.c.b16 %v3408, %v3404
        %v3681 = vpack.c.b16 %v3413, %v3409
        %v3682 = vpack.c.b16 %v3414, %v3410
        %v3683 = vpack.c.b16 %v3415, %v3411
        %v3684 = vpack.c.b16 %v3416, %v3412
        %v3685 = vpack.c.b16 %v3421, %v3417
        %v3686 = vpack.c.b16 %v3422, %v3418
        %v3687 = vpack.c.b16 %v3423, %v3419
        %v3688 = vpack.c.b16 %v3424, %v3420
        %v3689 = vpack.c.b16 %v3429, %v3425
        %v3690 = vpack.c.b16 %v3430, %v3426
        %v3691 = vpack.c.b16 %v3431, %v3427
        %v3692 = vpack.c.b16 %v3432, %v3428
        %v3693 = vpack.c.b16 %v3437, %v3433
        %v3694 = vpack.c.b16 %v3438, %v3434
        %v3695 = vpack.c.b16 %v3439, %v3435
        %v3696 = vpack.c.b16 %v3440, %v3436
        %3953 = vmatpush.bf16.msra.mxu0 %v3469
        %3954 = vmatpush.bf16.msra.mxu0 %v3465
        %3955 = vmatpush.bf16.msra.mxu0 %v3461
        %3956 = vmatpush.bf16.msra.mxu0 %v3457
        %3957 = vmatpush.bf16.msra.mxu0 %v3453
        %3958 = vmatpush.bf16.msra.mxu0 %v3449
        %3959 = vmatpush.bf16.msra.mxu0 %v3445
        %3960 = vmatpush.bf16.msra.mxu0 %v3441
        %3961 = vmatmul.bf16.gmra.mxu0 %v2399
        %v3962 = vpop.f32.mrf.mxu0
        %v3963 = vadd.f32 %v2665, %v3962
        %v3964 = vpop.f32.mrf.mxu0
        %3965 = vdwg.mxu0
        %3966 = vmatpush.bf16.msra.mxu0 %v3501
        %3967 = vmatpush.bf16.msra.mxu0 %v3497
        %3968 = vmatpush.bf16.msra.mxu0 %v3493
        %3969 = vmatpush.bf16.msra.mxu0 %v3489
        %3970 = vmatpush.bf16.msra.mxu0 %v3485
        %3971 = vmatpush.bf16.msra.mxu0 %v3481
        %3972 = vmatpush.bf16.msra.mxu0 %v3477
        %3973 = vmatpush.bf16.msra.mxu0 %v3473
        %3974 = vmatmul.bf16.gmra.mxu0 %v2400
        %v3975 = vpop.f32.mrf.mxu0
        %v3976 = vadd.f32 %v3963, %v3975
        %v3977 = vpop.f32.mrf.mxu0
        %3978 = vdwg.mxu0
        %3979 = vmatpush.bf16.msra.mxu0 %v3533
        %3980 = vmatpush.bf16.msra.mxu0 %v3529
        %3981 = vmatpush.bf16.msra.mxu0 %v3525
        %3982 = vmatpush.bf16.msra.mxu0 %v3521
        %3983 = vmatpush.bf16.msra.mxu0 %v3517
        %3984 = vmatpush.bf16.msra.mxu0 %v3513
        %3985 = vmatpush.bf16.msra.mxu0 %v3509
        %3986 = vmatpush.bf16.msra.mxu0 %v3505
        %3987 = vmatmul.bf16.gmra.mxu0 %v2401
        %v3988 = vpop.f32.mrf.mxu0
        %v3989 = vadd.f32 %v3976, %v3988
        %v3990 = vpop.f32.mrf.mxu0
        %3991 = vdwg.mxu0
        %3992 = vmatpush.bf16.msra.mxu0 %v3565
        %3993 = vmatpush.bf16.msra.mxu0 %v3561
        %3994 = vmatpush.bf16.msra.mxu0 %v3557
        %3995 = vmatpush.bf16.msra.mxu0 %v3553
        %3996 = vmatpush.bf16.msra.mxu0 %v3549
        %3997 = vmatpush.bf16.msra.mxu0 %v3545
        %3998 = vmatpush.bf16.msra.mxu0 %v3541
        %3999 = vmatpush.bf16.msra.mxu0 %v3537
        %4000 = vmatmul.bf16.gmra.mxu0 %v2402
        %v4001 = vpop.f32.mrf.mxu0
        %v4002 = vadd.f32 %v3989, %v4001
        %v4003 = vpop.f32.mrf.mxu0
        %4004 = vdwg.mxu0
        %4005 = vmatpush.bf16.msra.mxu0 %v3597
        %4006 = vmatpush.bf16.msra.mxu0 %v3593
        %4007 = vmatpush.bf16.msra.mxu0 %v3589
        %4008 = vmatpush.bf16.msra.mxu0 %v3585
        %4009 = vmatpush.bf16.msra.mxu0 %v3581
        %4010 = vmatpush.bf16.msra.mxu0 %v3577
        %4011 = vmatpush.bf16.msra.mxu0 %v3573
        %4012 = vmatpush.bf16.msra.mxu0 %v3569
        %4013 = vmatmul.bf16.gmra.mxu0 %v2403
        %v4014 = vpop.f32.mrf.mxu0
        %v4015 = vadd.f32 %v4002, %v4014
        %v4016 = vpop.f32.mrf.mxu0
        %4017 = vdwg.mxu0
        %4018 = vmatpush.bf16.msra.mxu0 %v3629
        %4019 = vmatpush.bf16.msra.mxu0 %v3625
        %4020 = vmatpush.bf16.msra.mxu0 %v3621
        %4021 = vmatpush.bf16.msra.mxu0 %v3617
        %4022 = vmatpush.bf16.msra.mxu0 %v3613
        %4023 = vmatpush.bf16.msra.mxu0 %v3609
        %4024 = vmatpush.bf16.msra.mxu0 %v3605
        %4025 = vmatpush.bf16.msra.mxu0 %v3601
        %4026 = vmatmul.bf16.gmra.mxu0 %v2404
        %v4027 = vpop.f32.mrf.mxu0
        %v4028 = vadd.f32 %v4015, %v4027
        %v4029 = vpop.f32.mrf.mxu0
        %4030 = vdwg.mxu0
        %4031 = vmatpush.bf16.msra.mxu0 %v3661
        %4032 = vmatpush.bf16.msra.mxu0 %v3657
        %4033 = vmatpush.bf16.msra.mxu0 %v3653
        %4034 = vmatpush.bf16.msra.mxu0 %v3649
        %4035 = vmatpush.bf16.msra.mxu0 %v3645
        %4036 = vmatpush.bf16.msra.mxu0 %v3641
        %4037 = vmatpush.bf16.msra.mxu0 %v3637
        %4038 = vmatpush.bf16.msra.mxu0 %v3633
        %4039 = vmatmul.bf16.gmra.mxu0 %v2405
        %v4040 = vpop.f32.mrf.mxu0
        %v4041 = vadd.f32 %v4028, %v4040
        %v4042 = vpop.f32.mrf.mxu0
        %4043 = vdwg.mxu0
        %4044 = vmatpush.bf16.msra.mxu0 %v3693
        %4045 = vmatpush.bf16.msra.mxu0 %v3689
        %4046 = vmatpush.bf16.msra.mxu0 %v3685
        %4047 = vmatpush.bf16.msra.mxu0 %v3681
        %4048 = vmatpush.bf16.msra.mxu0 %v3677
        %4049 = vmatpush.bf16.msra.mxu0 %v3673
        %4050 = vmatpush.bf16.msra.mxu0 %v3669
        %4051 = vmatpush.bf16.msra.mxu0 %v3665
        %4052 = vmatmul.bf16.gmra.mxu0 %v2406
        %v4053 = vpop.f32.mrf.mxu0
        %v4054 = vadd.f32 %v4041, %v4053
        %v4055 = vpop.f32.mrf.mxu0
        %4056 = vdwg.mxu0
        %4057 = vmatpush.bf16.msra.mxu0 %v3470
        %4058 = vmatpush.bf16.msra.mxu0 %v3466
        %4059 = vmatpush.bf16.msra.mxu0 %v3462
        %4060 = vmatpush.bf16.msra.mxu0 %v3458
        %4061 = vmatpush.bf16.msra.mxu0 %v3454
        %4062 = vmatpush.bf16.msra.mxu0 %v3450
        %4063 = vmatpush.bf16.msra.mxu0 %v3446
        %4064 = vmatpush.bf16.msra.mxu0 %v3442
        %4065 = vmatmul.bf16.gmra.mxu0 %v2399
        %v4066 = vpop.f32.mrf.mxu0
        %v4067 = vadd.f32 %v2666, %v4066
        %v4068 = vpop.f32.mrf.mxu0
        %4069 = vdwg.mxu0
        %4070 = vmatpush.bf16.msra.mxu0 %v3502
        %4071 = vmatpush.bf16.msra.mxu0 %v3498
        %4072 = vmatpush.bf16.msra.mxu0 %v3494
        %4073 = vmatpush.bf16.msra.mxu0 %v3490
        %4074 = vmatpush.bf16.msra.mxu0 %v3486
        %4075 = vmatpush.bf16.msra.mxu0 %v3482
        %4076 = vmatpush.bf16.msra.mxu0 %v3478
        %4077 = vmatpush.bf16.msra.mxu0 %v3474
        %4078 = vmatmul.bf16.gmra.mxu0 %v2400
        %v4079 = vpop.f32.mrf.mxu0
        %v4080 = vadd.f32 %v4067, %v4079
        %v4081 = vpop.f32.mrf.mxu0
        %4082 = vdwg.mxu0
        %4083 = vmatpush.bf16.msra.mxu0 %v3534
        %4084 = vmatpush.bf16.msra.mxu0 %v3530
        %4085 = vmatpush.bf16.msra.mxu0 %v3526
        %4086 = vmatpush.bf16.msra.mxu0 %v3522
        %4087 = vmatpush.bf16.msra.mxu0 %v3518
        %4088 = vmatpush.bf16.msra.mxu0 %v3514
        %4089 = vmatpush.bf16.msra.mxu0 %v3510
        %4090 = vmatpush.bf16.msra.mxu0 %v3506
        %4091 = vmatmul.bf16.gmra.mxu0 %v2401
        %v4092 = vpop.f32.mrf.mxu0
        %v4093 = vadd.f32 %v4080, %v4092
        %v4094 = vpop.f32.mrf.mxu0
        %4095 = vdwg.mxu0
        %4096 = vmatpush.bf16.msra.mxu0 %v3566
        %4097 = vmatpush.bf16.msra.mxu0 %v3562
        %4098 = vmatpush.bf16.msra.mxu0 %v3558
        %4099 = vmatpush.bf16.msra.mxu0 %v3554
        %4100 = vmatpush.bf16.msra.mxu0 %v3550
        %4101 = vmatpush.bf16.msra.mxu0 %v3546
        %4102 = vmatpush.bf16.msra.mxu0 %v3542
        %4103 = vmatpush.bf16.msra.mxu0 %v3538
        %4104 = vmatmul.bf16.gmra.mxu0 %v2402
        %v4105 = vpop.f32.mrf.mxu0
        %v4106 = vadd.f32 %v4093, %v4105
        %v4107 = vpop.f32.mrf.mxu0
        %4108 = vdwg.mxu0
        %4109 = vmatpush.bf16.msra.mxu0 %v3598
        %4110 = vmatpush.bf16.msra.mxu0 %v3594
        %4111 = vmatpush.bf16.msra.mxu0 %v3590
        %4112 = vmatpush.bf16.msra.mxu0 %v3586
        %4113 = vmatpush.bf16.msra.mxu0 %v3582
        %4114 = vmatpush.bf16.msra.mxu0 %v3578
        %4115 = vmatpush.bf16.msra.mxu0 %v3574
        %4116 = vmatpush.bf16.msra.mxu0 %v3570
        %4117 = vmatmul.bf16.gmra.mxu0 %v2403
        %v4118 = vpop.f32.mrf.mxu0
        %v4119 = vadd.f32 %v4106, %v4118
        %v4120 = vpop.f32.mrf.mxu0
        %4121 = vdwg.mxu0
        %4122 = vmatpush.bf16.msra.mxu0 %v3630
        %4123 = vmatpush.bf16.msra.mxu0 %v3626
        %4124 = vmatpush.bf16.msra.mxu0 %v3622
        %4125 = vmatpush.bf16.msra.mxu0 %v3618
        %4126 = vmatpush.bf16.msra.mxu0 %v3614
        %4127 = vmatpush.bf16.msra.mxu0 %v3610
        %4128 = vmatpush.bf16.msra.mxu0 %v3606
        %4129 = vmatpush.bf16.msra.mxu0 %v3602
        %4130 = vmatmul.bf16.gmra.mxu0 %v2404
        %v4131 = vpop.f32.mrf.mxu0
        %v4132 = vadd.f32 %v4119, %v4131
        %v4133 = vpop.f32.mrf.mxu0
        %4134 = vdwg.mxu0
        %4135 = vmatpush.bf16.msra.mxu0 %v3662
        %4136 = vmatpush.bf16.msra.mxu0 %v3658
        %4137 = vmatpush.bf16.msra.mxu0 %v3654
        %4138 = vmatpush.bf16.msra.mxu0 %v3650
        %4139 = vmatpush.bf16.msra.mxu0 %v3646
        %4140 = vmatpush.bf16.msra.mxu0 %v3642
        %4141 = vmatpush.bf16.msra.mxu0 %v3638
        %4142 = vmatpush.bf16.msra.mxu0 %v3634
        %4143 = vmatmul.bf16.gmra.mxu0 %v2405
        %v4144 = vpop.f32.mrf.mxu0
        %v4145 = vadd.f32 %v4132, %v4144
        %v4146 = vpop.f32.mrf.mxu0
        %4147 = vdwg.mxu0
        %4148 = vmatpush.bf16.msra.mxu0 %v3694
        %4149 = vmatpush.bf16.msra.mxu0 %v3690
        %4150 = vmatpush.bf16.msra.mxu0 %v3686
        %4151 = vmatpush.bf16.msra.mxu0 %v3682
        %4152 = vmatpush.bf16.msra.mxu0 %v3678
        %4153 = vmatpush.bf16.msra.mxu0 %v3674
        %4154 = vmatpush.bf16.msra.mxu0 %v3670
        %4155 = vmatpush.bf16.msra.mxu0 %v3666
        %4156 = vmatmul.bf16.gmra.mxu0 %v2406
        %v4157 = vpop.f32.mrf.mxu0
        %v4158 = vadd.f32 %v4145, %v4157
        %v4159 = vpop.f32.mrf.mxu0
        %4160 = vdwg.mxu0
        %4161 = vmatpush.bf16.msra.mxu0 %v3471
        %4162 = vmatpush.bf16.msra.mxu0 %v3467
        %4163 = vmatpush.bf16.msra.mxu0 %v3463
        %4164 = vmatpush.bf16.msra.mxu0 %v3459
        %4165 = vmatpush.bf16.msra.mxu0 %v3455
        %4166 = vmatpush.bf16.msra.mxu0 %v3451
        %4167 = vmatpush.bf16.msra.mxu0 %v3447
        %4168 = vmatpush.bf16.msra.mxu0 %v3443
        %4169 = vmatmul.bf16.gmra.mxu0 %v2399
        %v4170 = vpop.f32.mrf.mxu0
        %v4171 = vadd.f32 %v2667, %v4170
        %v4172 = vpop.f32.mrf.mxu0
        %4173 = vdwg.mxu0
        %4174 = vmatpush.bf16.msra.mxu0 %v3503
        %4175 = vmatpush.bf16.msra.mxu0 %v3499
        %4176 = vmatpush.bf16.msra.mxu0 %v3495
        %4177 = vmatpush.bf16.msra.mxu0 %v3491
        %4178 = vmatpush.bf16.msra.mxu0 %v3487
        %4179 = vmatpush.bf16.msra.mxu0 %v3483
        %4180 = vmatpush.bf16.msra.mxu0 %v3479
        %4181 = vmatpush.bf16.msra.mxu0 %v3475
        %4182 = vmatmul.bf16.gmra.mxu0 %v2400
        %v4183 = vpop.f32.mrf.mxu0
        %v4184 = vadd.f32 %v4171, %v4183
        %v4185 = vpop.f32.mrf.mxu0
        %4186 = vdwg.mxu0
        %4187 = vmatpush.bf16.msra.mxu0 %v3535
        %4188 = vmatpush.bf16.msra.mxu0 %v3531
        %4189 = vmatpush.bf16.msra.mxu0 %v3527
        %4190 = vmatpush.bf16.msra.mxu0 %v3523
        %4191 = vmatpush.bf16.msra.mxu0 %v3519
        %4192 = vmatpush.bf16.msra.mxu0 %v3515
        %4193 = vmatpush.bf16.msra.mxu0 %v3511
        %4194 = vmatpush.bf16.msra.mxu0 %v3507
        %4195 = vmatmul.bf16.gmra.mxu0 %v2401
        %v4196 = vpop.f32.mrf.mxu0
        %v4197 = vadd.f32 %v4184, %v4196
        %v4198 = vpop.f32.mrf.mxu0
        %4199 = vdwg.mxu0
        %4200 = vmatpush.bf16.msra.mxu0 %v3567
        %4201 = vmatpush.bf16.msra.mxu0 %v3563
        %4202 = vmatpush.bf16.msra.mxu0 %v3559
        %4203 = vmatpush.bf16.msra.mxu0 %v3555
        %4204 = vmatpush.bf16.msra.mxu0 %v3551
        %4205 = vmatpush.bf16.msra.mxu0 %v3547
        %4206 = vmatpush.bf16.msra.mxu0 %v3543
        %4207 = vmatpush.bf16.msra.mxu0 %v3539
        %4208 = vmatmul.bf16.gmra.mxu0 %v2402
        %v4209 = vpop.f32.mrf.mxu0
        %v4210 = vadd.f32 %v4197, %v4209
        %v4211 = vpop.f32.mrf.mxu0
        %4212 = vdwg.mxu0
        %4213 = vmatpush.bf16.msra.mxu0 %v3599
        %4214 = vmatpush.bf16.msra.mxu0 %v3595
        %4215 = vmatpush.bf16.msra.mxu0 %v3591
        %4216 = vmatpush.bf16.msra.mxu0 %v3587
        %4217 = vmatpush.bf16.msra.mxu0 %v3583
        %4218 = vmatpush.bf16.msra.mxu0 %v3579
        %4219 = vmatpush.bf16.msra.mxu0 %v3575
        %4220 = vmatpush.bf16.msra.mxu0 %v3571
        %4221 = vmatmul.bf16.gmra.mxu0 %v2403
        %v4222 = vpop.f32.mrf.mxu0
        %v4223 = vadd.f32 %v4210, %v4222
        %v4224 = vpop.f32.mrf.mxu0
        %4225 = vdwg.mxu0
        %4226 = vmatpush.bf16.msra.mxu0 %v3631
        %4227 = vmatpush.bf16.msra.mxu0 %v3627
        %4228 = vmatpush.bf16.msra.mxu0 %v3623
        %4229 = vmatpush.bf16.msra.mxu0 %v3619
        %4230 = vmatpush.bf16.msra.mxu0 %v3615
        %4231 = vmatpush.bf16.msra.mxu0 %v3611
        %4232 = vmatpush.bf16.msra.mxu0 %v3607
        %4233 = vmatpush.bf16.msra.mxu0 %v3603
        %4234 = vmatmul.bf16.gmra.mxu0 %v2404
        %v4235 = vpop.f32.mrf.mxu0
        %v4236 = vadd.f32 %v4223, %v4235
        %v4237 = vpop.f32.mrf.mxu0
        %4238 = vdwg.mxu0
        %4239 = vmatpush.bf16.msra.mxu0 %v3663
        %4240 = vmatpush.bf16.msra.mxu0 %v3659
        %4241 = vmatpush.bf16.msra.mxu0 %v3655
        %4242 = vmatpush.bf16.msra.mxu0 %v3651
        %4243 = vmatpush.bf16.msra.mxu0 %v3647
        %4244 = vmatpush.bf16.msra.mxu0 %v3643
        %4245 = vmatpush.bf16.msra.mxu0 %v3639
        %4246 = vmatpush.bf16.msra.mxu0 %v3635
        %4247 = vmatmul.bf16.gmra.mxu0 %v2405
        %v4248 = vpop.f32.mrf.mxu0
        %v4249 = vadd.f32 %v4236, %v4248
        %v4250 = vpop.f32.mrf.mxu0
        %4251 = vdwg.mxu0
        %4252 = vmatpush.bf16.msra.mxu0 %v3695
        %4253 = vmatpush.bf16.msra.mxu0 %v3691
        %4254 = vmatpush.bf16.msra.mxu0 %v3687
        %4255 = vmatpush.bf16.msra.mxu0 %v3683
        %4256 = vmatpush.bf16.msra.mxu0 %v3679
        %4257 = vmatpush.bf16.msra.mxu0 %v3675
        %4258 = vmatpush.bf16.msra.mxu0 %v3671
        %4259 = vmatpush.bf16.msra.mxu0 %v3667
        %4260 = vmatmul.bf16.gmra.mxu0 %v2406
        %v4261 = vpop.f32.mrf.mxu0
        %v4262 = vadd.f32 %v4249, %v4261
        %v4263 = vpop.f32.mrf.mxu0
        %4264 = vdwg.mxu0
        %4265 = vmatpush.bf16.msra.mxu0 %v3472
        %4266 = vmatpush.bf16.msra.mxu0 %v3468
        %4267 = vmatpush.bf16.msra.mxu0 %v3464
        %4268 = vmatpush.bf16.msra.mxu0 %v3460
        %4269 = vmatpush.bf16.msra.mxu0 %v3456
        %4270 = vmatpush.bf16.msra.mxu0 %v3452
        %4271 = vmatpush.bf16.msra.mxu0 %v3448
        %4272 = vmatpush.bf16.msra.mxu0 %v3444
        %4273 = vmatmul.bf16.gmra.mxu0 %v2399
        %v4274 = vpop.f32.mrf.mxu0
        %v4275 = vadd.f32 %v2668, %v4274
        %v4276 = vpop.f32.mrf.mxu0
        %4277 = vdwg.mxu0
        %4278 = vmatpush.bf16.msra.mxu0 %v3504
        %4279 = vmatpush.bf16.msra.mxu0 %v3500
        %4280 = vmatpush.bf16.msra.mxu0 %v3496
        %4281 = vmatpush.bf16.msra.mxu0 %v3492
        %4282 = vmatpush.bf16.msra.mxu0 %v3488
        %4283 = vmatpush.bf16.msra.mxu0 %v3484
        %4284 = vmatpush.bf16.msra.mxu0 %v3480
        %4285 = vmatpush.bf16.msra.mxu0 %v3476
        %4286 = vmatmul.bf16.gmra.mxu0 %v2400
        %v4287 = vpop.f32.mrf.mxu0
        %v4288 = vadd.f32 %v4275, %v4287
        %v4289 = vpop.f32.mrf.mxu0
        %4290 = vdwg.mxu0
        %4291 = vmatpush.bf16.msra.mxu0 %v3536
        %4292 = vmatpush.bf16.msra.mxu0 %v3532
        %4293 = vmatpush.bf16.msra.mxu0 %v3528
        %4294 = vmatpush.bf16.msra.mxu0 %v3524
        %4295 = vmatpush.bf16.msra.mxu0 %v3520
        %4296 = vmatpush.bf16.msra.mxu0 %v3516
        %4297 = vmatpush.bf16.msra.mxu0 %v3512
        %4298 = vmatpush.bf16.msra.mxu0 %v3508
        %4299 = vmatmul.bf16.gmra.mxu0 %v2401
        %v4300 = vpop.f32.mrf.mxu0
        %v4301 = vadd.f32 %v4288, %v4300
        %v4302 = vpop.f32.mrf.mxu0
        %4303 = vdwg.mxu0
        %4304 = vmatpush.bf16.msra.mxu0 %v3568
        %4305 = vmatpush.bf16.msra.mxu0 %v3564
        %4306 = vmatpush.bf16.msra.mxu0 %v3560
        %4307 = vmatpush.bf16.msra.mxu0 %v3556
        %4308 = vmatpush.bf16.msra.mxu0 %v3552
        %4309 = vmatpush.bf16.msra.mxu0 %v3548
        %4310 = vmatpush.bf16.msra.mxu0 %v3544
        %4311 = vmatpush.bf16.msra.mxu0 %v3540
        %4312 = vmatmul.bf16.gmra.mxu0 %v2402
        %v4313 = vpop.f32.mrf.mxu0
        %v4314 = vadd.f32 %v4301, %v4313
        %v4315 = vpop.f32.mrf.mxu0
        %4316 = vdwg.mxu0
        %4317 = vmatpush.bf16.msra.mxu0 %v3600
        %4318 = vmatpush.bf16.msra.mxu0 %v3596
        %4319 = vmatpush.bf16.msra.mxu0 %v3592
        %4320 = vmatpush.bf16.msra.mxu0 %v3588
        %4321 = vmatpush.bf16.msra.mxu0 %v3584
        %4322 = vmatpush.bf16.msra.mxu0 %v3580
        %4323 = vmatpush.bf16.msra.mxu0 %v3576
        %4324 = vmatpush.bf16.msra.mxu0 %v3572
        %4325 = vmatmul.bf16.gmra.mxu0 %v2403
        %v4326 = vpop.f32.mrf.mxu0
        %v4327 = vadd.f32 %v4314, %v4326
        %v4328 = vpop.f32.mrf.mxu0
        %4329 = vdwg.mxu0
        %4330 = vmatpush.bf16.msra.mxu0 %v3632
        %4331 = vmatpush.bf16.msra.mxu0 %v3628
        %4332 = vmatpush.bf16.msra.mxu0 %v3624
        %4333 = vmatpush.bf16.msra.mxu0 %v3620
        %4334 = vmatpush.bf16.msra.mxu0 %v3616
        %4335 = vmatpush.bf16.msra.mxu0 %v3612
        %4336 = vmatpush.bf16.msra.mxu0 %v3608
        %4337 = vmatpush.bf16.msra.mxu0 %v3604
        %4338 = vmatmul.bf16.gmra.mxu0 %v2404
        %v4339 = vpop.f32.mrf.mxu0
        %v4340 = vadd.f32 %v4327, %v4339
        %v4341 = vpop.f32.mrf.mxu0
        %4342 = vdwg.mxu0
        %4343 = vmatpush.bf16.msra.mxu0 %v3664
        %4344 = vmatpush.bf16.msra.mxu0 %v3660
        %4345 = vmatpush.bf16.msra.mxu0 %v3656
        %4346 = vmatpush.bf16.msra.mxu0 %v3652
        %4347 = vmatpush.bf16.msra.mxu0 %v3648
        %4348 = vmatpush.bf16.msra.mxu0 %v3644
        %4349 = vmatpush.bf16.msra.mxu0 %v3640
        %4350 = vmatpush.bf16.msra.mxu0 %v3636
        %4351 = vmatmul.bf16.gmra.mxu0 %v2405
        %v4352 = vpop.f32.mrf.mxu0
        %v4353 = vadd.f32 %v4340, %v4352
        %v4354 = vpop.f32.mrf.mxu0
        %4355 = vdwg.mxu0
        %4356 = vmatpush.bf16.msra.mxu0 %v3696
        %4357 = vmatpush.bf16.msra.mxu0 %v3692
        %4358 = vmatpush.bf16.msra.mxu0 %v3688
        %4359 = vmatpush.bf16.msra.mxu0 %v3684
        %4360 = vmatpush.bf16.msra.mxu0 %v3680
        %4361 = vmatpush.bf16.msra.mxu0 %v3676
        %4362 = vmatpush.bf16.msra.mxu0 %v3672
        %4363 = vmatpush.bf16.msra.mxu0 %v3668
        %4364 = vmatmul.bf16.gmra.mxu0 %v2406
        %v4365 = vpop.f32.mrf.mxu0
        %v4366 = vadd.f32 %v4353, %v4365
        %v4367 = vpop.f32.mrf.mxu0
        %4368 = vdwg.mxu0
        %v4369 = vmul.f32 %v4054, 0.5
        %v4370 = vmul.f32 %v4158, 0.5
        %v4371 = vmul.f32 %v4262, 0.5
        %v4372 = vmul.f32 %v4366, 0.5
        %v4373 = vtanh.pop %v4369
        %v4374 = vtanh.pop %v4370
        %v4375 = vtanh.pop %v4371
        %v4376 = vtanh.pop %v4372
        %v4377 = vmul.f32 %v4373, 0.5
        %v4378 = vmul.f32 %v4374, 0.5
        %v4379 = vmul.f32 %v4375, 0.5
        %v4380 = vmul.f32 %v4376, 0.5
        %v4381 = vadd.f32 %v4377, 0.5
        %v4382 = vadd.f32 %v4378, 0.5
        %v4383 = vadd.f32 %v4379, 0.5
        %v4384 = vadd.f32 %v4380, 0.5
        %v4385 = vpack.c.bf16 %v4381, %v4381
        %v4386 = vpack.c.bf16 %v4382, %v4382
        %v4387 = vpack.c.bf16 %v4383, %v4383
        %v4388 = vpack.c.bf16 %v4384, %v4384
        %v4389 = vld [vmem:[#allocation7] sm:$0xf]
        %v4390 = vld [vmem:[#allocation7 + $0x4] sm:$0xf]
        %v4391 = vld [vmem:[#allocation7 + $0x8] sm:$0xf]
        %v4392 = vld [vmem:[#allocation7 + $0xc] sm:$0xf]
        %v4393 = vld [vmem:[#allocation7 + $0x10] sm:$0xf]
        %v4394 = vld [vmem:[#allocation7 + $0x14] sm:$0xf]
        %v4395 = vld [vmem:[#allocation7 + $0x18] sm:$0xf]
        %v4396 = vld [vmem:[#allocation7 + $0x1c] sm:$0xf]
        %v4397 = vld [vmem:[#allocation7 + $0x20] sm:$0xf]
        %v4398 = vld [vmem:[#allocation7 + $0x24] sm:$0xf]
        %v4399 = vld [vmem:[#allocation7 + $0x28] sm:$0xf]
        %v4400 = vld [vmem:[#allocation7 + $0x2c] sm:$0xf]
        %v4401 = vld [vmem:[#allocation7 + $0x30] sm:$0xf]
        %v4402 = vld [vmem:[#allocation7 + $0x34] sm:$0xf]
        %v4403 = vld [vmem:[#allocation7 + $0x38] sm:$0xf]
        %v4404 = vld [vmem:[#allocation7 + $0x3c] sm:$0xf]
        %v4405 = vld [vmem:[#allocation7 + $0x40] sm:$0xf]
        %v4406 = vld [vmem:[#allocation7 + $0x44] sm:$0xf]
        %v4407 = vld [vmem:[#allocation7 + $0x48] sm:$0xf]
        %v4408 = vld [vmem:[#allocation7 + $0x4c] sm:$0xf]
        %v4409 = vld [vmem:[#allocation7 + $0x50] sm:$0xf]
        %v4410 = vld [vmem:[#allocation7 + $0x54] sm:$0xf]
        %v4411 = vld [vmem:[#allocation7 + $0x58] sm:$0xf]
        %v4412 = vld [vmem:[#allocation7 + $0x5c] sm:$0xf]
        %v4413 = vld [vmem:[#allocation7 + $0x60] sm:$0xf]
        %v4414 = vld [vmem:[#allocation7 + $0x64] sm:$0xf]
        %v4415 = vld [vmem:[#allocation7 + $0x68] sm:$0xf]
        %v4416 = vld [vmem:[#allocation7 + $0x6c] sm:$0xf]
        %v4417 = vld [vmem:[#allocation7 + $0x70] sm:$0xf]
        %v4418 = vld [vmem:[#allocation7 + $0x74] sm:$0xf]
        %v4419 = vld [vmem:[#allocation7 + $0x78] sm:$0xf]
        %v4420 = vld [vmem:[#allocation7 + $0x7c] sm:$0xf]
        %v4421 = vld [vmem:[#allocation7 + $0x80] sm:$0xf]
        %v4422 = vld [vmem:[#allocation7 + $0x84] sm:$0xf]
        %v4423 = vld [vmem:[#allocation7 + $0x88] sm:$0xf]
        %v4424 = vld [vmem:[#allocation7 + $0x8c] sm:$0xf]
        %v4425 = vld [vmem:[#allocation7 + $0x90] sm:$0xf]
        %v4426 = vld [vmem:[#allocation7 + $0x94] sm:$0xf]
        %v4427 = vld [vmem:[#allocation7 + $0x98] sm:$0xf]
        %v4428 = vld [vmem:[#allocation7 + $0x9c] sm:$0xf]
        %v4429 = vld [vmem:[#allocation7 + $0xa0] sm:$0xf]
        %v4430 = vld [vmem:[#allocation7 + $0xa4] sm:$0xf]
        %v4431 = vld [vmem:[#allocation7 + $0xa8] sm:$0xf]
        %v4432 = vld [vmem:[#allocation7 + $0xac] sm:$0xf]
        %v4433 = vld [vmem:[#allocation7 + $0xb0] sm:$0xf]
        %v4434 = vld [vmem:[#allocation7 + $0xb4] sm:$0xf]
        %v4435 = vld [vmem:[#allocation7 + $0xb8] sm:$0xf]
        %v4436 = vld [vmem:[#allocation7 + $0xbc] sm:$0xf]
        %v4437 = vld [vmem:[#allocation7 + $0xc0] sm:$0xf]
        %v4438 = vld [vmem:[#allocation7 + $0xc4] sm:$0xf]
        %v4439 = vld [vmem:[#allocation7 + $0xc8] sm:$0xf]
        %v4440 = vld [vmem:[#allocation7 + $0xcc] sm:$0xf]
        %v4441 = vld [vmem:[#allocation7 + $0xd0] sm:$0xf]
        %v4442 = vld [vmem:[#allocation7 + $0xd4] sm:$0xf]
        %v4443 = vld [vmem:[#allocation7 + $0xd8] sm:$0xf]
        %v4444 = vld [vmem:[#allocation7 + $0xdc] sm:$0xf]
        %v4445 = vld [vmem:[#allocation7 + $0xe0] sm:$0xf]
        %v4446 = vld [vmem:[#allocation7 + $0xe4] sm:$0xf]
        %v4447 = vld [vmem:[#allocation7 + $0xe8] sm:$0xf]
        %v4448 = vld [vmem:[#allocation7 + $0xec] sm:$0xf]
        %v4449 = vld [vmem:[#allocation7 + $0xf0] sm:$0xf]
        %v4450 = vld [vmem:[#allocation7 + $0xf4] sm:$0xf]
        %v4451 = vld [vmem:[#allocation7 + $0xf8] sm:$0xf]
        %v4452 = vld [vmem:[#allocation7 + $0xfc] sm:$0xf]
        %v4453 = vld [vmem:[%s6] sm:$0x1]
        %v4455 = vperm.slane %v4453, 0
        %v4521 = vunpack.c.l.b16 %v4389
        %v4522 = vunpack.c.l.b16 %v4390
        %v4523 = vunpack.c.l.b16 %v4391
        %v4524 = vunpack.c.l.b16 %v4392
        %v4525 = vunpack.c.l.b16 %v4393
        %v4526 = vunpack.c.l.b16 %v4394
        %v4527 = vunpack.c.l.b16 %v4395
        %v4528 = vunpack.c.l.b16 %v4396
        %v4529 = vunpack.c.l.b16 %v4397
        %v4530 = vunpack.c.l.b16 %v4398
        %v4531 = vunpack.c.l.b16 %v4399
        %v4532 = vunpack.c.l.b16 %v4400
        %v4533 = vunpack.c.l.b16 %v4401
        %v4534 = vunpack.c.l.b16 %v4402
        %v4535 = vunpack.c.l.b16 %v4403
        %v4536 = vunpack.c.l.b16 %v4404
        %v4537 = vunpack.c.l.b16 %v4405
        %v4538 = vunpack.c.l.b16 %v4406
        %v4539 = vunpack.c.l.b16 %v4407
        %v4540 = vunpack.c.l.b16 %v4408
        %v4541 = vunpack.c.l.b16 %v4409
        %v4542 = vunpack.c.l.b16 %v4410
        %v4543 = vunpack.c.l.b16 %v4411
        %v4544 = vunpack.c.l.b16 %v4412
        %v4545 = vunpack.c.l.b16 %v4413
        %v4546 = vunpack.c.l.b16 %v4414
        %v4547 = vunpack.c.l.b16 %v4415
        %v4548 = vunpack.c.l.b16 %v4416
        %v4549 = vunpack.c.l.b16 %v4417
        %v4550 = vunpack.c.l.b16 %v4418
        %v4551 = vunpack.c.l.b16 %v4419
        %v4552 = vunpack.c.l.b16 %v4420
        %v4553 = vunpack.c.l.b16 %v4421
        %v4554 = vunpack.c.l.b16 %v4422
        %v4555 = vunpack.c.l.b16 %v4423
        %v4556 = vunpack.c.l.b16 %v4424
        %v4557 = vunpack.c.l.b16 %v4425
        %v4558 = vunpack.c.l.b16 %v4426
        %v4559 = vunpack.c.l.b16 %v4427
        %v4560 = vunpack.c.l.b16 %v4428
        %v4561 = vunpack.c.l.b16 %v4429
        %v4562 = vunpack.c.l.b16 %v4430
        %v4563 = vunpack.c.l.b16 %v4431
        %v4564 = vunpack.c.l.b16 %v4432
        %v4565 = vunpack.c.l.b16 %v4433
        %v4566 = vunpack.c.l.b16 %v4434
        %v4567 = vunpack.c.l.b16 %v4435
        %v4568 = vunpack.c.l.b16 %v4436
        %v4569 = vunpack.c.l.b16 %v4437
        %v4570 = vunpack.c.l.b16 %v4438
        %v4571 = vunpack.c.l.b16 %v4439
        %v4572 = vunpack.c.l.b16 %v4440
        %v4573 = vunpack.c.l.b16 %v4441
        %v4574 = vunpack.c.l.b16 %v4442
        %v4575 = vunpack.c.l.b16 %v4443
        %v4576 = vunpack.c.l.b16 %v4444
        %v4577 = vunpack.c.l.b16 %v4445
        %v4578 = vunpack.c.l.b16 %v4446
        %v4579 = vunpack.c.l.b16 %v4447
        %v4580 = vunpack.c.l.b16 %v4448
        %v4581 = vunpack.c.l.b16 %v4449
        %v4582 = vunpack.c.l.b16 %v4450
        %v4583 = vunpack.c.l.b16 %v4451
        %v4584 = vunpack.c.l.b16 %v4452
        %v4585 = vpack.c.b16 %v4522, %v4521
        %v4586 = vpack.c.b16 %v4524, %v4523
        %v4587 = vpack.c.b16 %v4526, %v4525
        %v4588 = vpack.c.b16 %v4528, %v4527
        %v4589 = vpack.c.b16 %v4530, %v4529
        %v4590 = vpack.c.b16 %v4532, %v4531
        %v4591 = vpack.c.b16 %v4534, %v4533
        %v4592 = vpack.c.b16 %v4536, %v4535
        %v4593 = vpack.c.b16 %v4538, %v4537
        %v4594 = vpack.c.b16 %v4540, %v4539
        %v4595 = vpack.c.b16 %v4542, %v4541
        %v4596 = vpack.c.b16 %v4544, %v4543
        %v4597 = vpack.c.b16 %v4546, %v4545
        %v4598 = vpack.c.b16 %v4548, %v4547
        %v4599 = vpack.c.b16 %v4550, %v4549
        %v4600 = vpack.c.b16 %v4552, %v4551
        %v4601 = vpack.c.b16 %v4554, %v4553
        %v4602 = vpack.c.b16 %v4556, %v4555
        %v4603 = vpack.c.b16 %v4558, %v4557
        %v4604 = vpack.c.b16 %v4560, %v4559
        %v4605 = vpack.c.b16 %v4562, %v4561
        %v4606 = vpack.c.b16 %v4564, %v4563
        %v4607 = vpack.c.b16 %v4566, %v4565
        %v4608 = vpack.c.b16 %v4568, %v4567
        %v4609 = vpack.c.b16 %v4570, %v4569
        %v4610 = vpack.c.b16 %v4572, %v4571
        %v4611 = vpack.c.b16 %v4574, %v4573
        %v4612 = vpack.c.b16 %v4576, %v4575
        %v4613 = vpack.c.b16 %v4578, %v4577
        %v4614 = vpack.c.b16 %v4580, %v4579
        %v4615 = vpack.c.b16 %v4582, %v4581
        %v4616 = vpack.c.b16 %v4584, %v4583
        %4649 = vmatpush.bf16.msra.mxu0 %v4592
        %4650 = vmatpush.bf16.msra.mxu0 %v4591
        %4651 = vmatpush.bf16.msra.mxu0 %v4590
        %4652 = vmatpush.bf16.msra.mxu0 %v4589
        %4653 = vmatpush.bf16.msra.mxu0 %v4588
        %4654 = vmatpush.bf16.msra.mxu0 %v4587
        %4655 = vmatpush.bf16.msra.mxu0 %v4586
        %4656 = vmatpush.bf16.msra.mxu0 %v4585
        %4657 = vmatmul.bf16.gmra.mxu0 %v4385
        %v4658 = vpop.f32.mrf.mxu0
        %v4659 = vadd.f32 %v4455, %v4658
        %v4660 = vpop.f32.mrf.mxu0
        %4661 = vdwg.mxu0
        %4662 = vmatpush.bf16.msra.mxu0 %v4600
        %4663 = vmatpush.bf16.msra.mxu0 %v4599
        %4664 = vmatpush.bf16.msra.mxu0 %v4598
        %4665 = vmatpush.bf16.msra.mxu0 %v4597
        %4666 = vmatpush.bf16.msra.mxu0 %v4596
        %4667 = vmatpush.bf16.msra.mxu0 %v4595
        %4668 = vmatpush.bf16.msra.mxu0 %v4594
        %4669 = vmatpush.bf16.msra.mxu0 %v4593
        %4670 = vmatmul.bf16.gmra.mxu0 %v4386
        %v4671 = vpop.f32.mrf.mxu0
        %v4672 = vadd.f32 %v4659, %v4671
        %v4673 = vpop.f32.mrf.mxu0
        %4674 = vdwg.mxu0
        %4675 = vmatpush.bf16.msra.mxu0 %v4608
        %4676 = vmatpush.bf16.msra.mxu0 %v4607
        %4677 = vmatpush.bf16.msra.mxu0 %v4606
        %4678 = vmatpush.bf16.msra.mxu0 %v4605
        %4679 = vmatpush.bf16.msra.mxu0 %v4604
        %4680 = vmatpush.bf16.msra.mxu0 %v4603
        %4681 = vmatpush.bf16.msra.mxu0 %v4602
        %4682 = vmatpush.bf16.msra.mxu0 %v4601
        %4683 = vmatmul.bf16.gmra.mxu0 %v4387
        %v4684 = vpop.f32.mrf.mxu0
        %v4685 = vadd.f32 %v4672, %v4684
        %v4686 = vpop.f32.mrf.mxu0
        %4687 = vdwg.mxu0
        %4688 = vmatpush.bf16.msra.mxu0 %v4616
        %4689 = vmatpush.bf16.msra.mxu0 %v4615
        %4690 = vmatpush.bf16.msra.mxu0 %v4614
        %4691 = vmatpush.bf16.msra.mxu0 %v4613
        %4692 = vmatpush.bf16.msra.mxu0 %v4612
        %4693 = vmatpush.bf16.msra.mxu0 %v4611
        %4694 = vmatpush.bf16.msra.mxu0 %v4610
        %4695 = vmatpush.bf16.msra.mxu0 %v4609
        %4696 = vmatmul.bf16.gmra.mxu0 %v4388
        %v4697 = vpop.f32.mrf.mxu0
        %v4698 = vadd.f32 %v4685, %v4697
        %v4699 = vpop.f32.mrf.mxu0
        %4700 = vdwg.mxu0
        %v4701 = vmul.f32 %v4698, 0.5
        %v4702 = vtanh.pop %v4701
        %v4703 = vmul.f32 %v4702, 0.5
        %v4704 = vadd.f32 %v4703, 0.5
        %v4705 = vpack.c.bf16 %v4704, %v4704
        %v4706 = vld [vmem:[%s7] sm:$0xf]
        %v4707 = vld [vmem:[%s7 + $0x4] sm:$0xf]
        %v4708 = vld [vmem:[%s7 + $0x8] sm:$0xf]
        %v4709 = vld [vmem:[%s7 + $0xc] sm:$0xf]
        %v4710 = vld [vmem:[%s7 + $0x10] sm:$0xf]
        %v4711 = vld [vmem:[%s7 + $0x14] sm:$0xf]
        %v4712 = vld [vmem:[%s7 + $0x18] sm:$0xf]
        %v4713 = vld [vmem:[%s7 + $0x1c] sm:$0xf]
        %v4714 = vld [vmem:[%s7 + $0x20] sm:$0xf]
        %v4715 = vld [vmem:[%s7 + $0x24] sm:$0xf]
        %v4716 = vld [vmem:[%s7 + $0x28] sm:$0xf]
        %v4717 = vld [vmem:[%s7 + $0x2c] sm:$0xf]
        %v4718 = vld [vmem:[%s7 + $0x30] sm:$0xf]
        %v4719 = vld [vmem:[%s7 + $0x34] sm:$0xf]
        %v4720 = vld [vmem:[%s7 + $0x38] sm:$0xf]
        %v4721 = vld [vmem:[%s7 + $0x3c] sm:$0xf]
        %v4722 = vld [vmem:[%s8] sm:$0x1]
        %v4724 = vperm.slane %v4722, 0
        %v4742 = vunpack.c.l.b16 %v4706
        %v4743 = vunpack.c.l.b16 %v4707
        %v4744 = vunpack.c.l.b16 %v4708
        %v4745 = vunpack.c.l.b16 %v4709
        %v4746 = vunpack.c.l.b16 %v4710
        %v4747 = vunpack.c.l.b16 %v4711
        %v4748 = vunpack.c.l.b16 %v4712
        %v4749 = vunpack.c.l.b16 %v4713
        %v4750 = vunpack.c.l.b16 %v4714
        %v4751 = vunpack.c.l.b16 %v4715
        %v4752 = vunpack.c.l.b16 %v4716
        %v4753 = vunpack.c.l.b16 %v4717
        %v4754 = vunpack.c.l.b16 %v4718
        %v4755 = vunpack.c.l.b16 %v4719
        %v4756 = vunpack.c.l.b16 %v4720
        %v4757 = vunpack.c.l.b16 %v4721
        %v4758 = vpack.c.b16 %v4743, %v4742
        %v4759 = vpack.c.b16 %v4745, %v4744
        %v4760 = vpack.c.b16 %v4747, %v4746
        %v4761 = vpack.c.b16 %v4749, %v4748
        %v4762 = vpack.c.b16 %v4751, %v4750
        %v4763 = vpack.c.b16 %v4753, %v4752
        %v4764 = vpack.c.b16 %v4755, %v4754
        %v4765 = vpack.c.b16 %v4757, %v4756
        %4774 = vmatpush.bf16.msra.mxu0 %v4765
        %4775 = vmatpush.bf16.msra.mxu0 %v4764
        %4776 = vmatpush.bf16.msra.mxu0 %v4763
        %4777 = vmatpush.bf16.msra.mxu0 %v4762
        %4778 = vmatpush.bf16.msra.mxu0 %v4761
        %4779 = vmatpush.bf16.msra.mxu0 %v4760
        %4780 = vmatpush.bf16.msra.mxu0 %v4759
        %4781 = vmatpush.bf16.msra.mxu0 %v4758
        %4782 = vmatmul.bf16.gmra.mxu0 %v4705
        %v4783 = vpop.f32.mrf.mxu0
        %v4784 = vadd.f32 %v4724, %v4783
        %v4785 = vpop.f32.mrf.mxu0
        %4786 = vdwg.mxu0
        %4787 = vst [vmem:[%s375] sm:$0xff] %v4784
        %s4788 = sand.u32 %s227, 1
        %s4789 = scalar_lea.sflag [#allocation4], %s4788
        %s4790 = sand.u32 %s227, 1
        %s4791 = smul.addr %s4790, 8
        %s4792 = scalar_lea.vmem [#allocation8], %s4791
        // Predicated region
        $region69: #{_forward_impl.1} parent=55 // pred_check
          %p4793 = pneg %p237
        $region70: #{_forward_impl.1} parent=55 // pred_check_branch
          %4795 = sbr.rel (%p4793) target = $region72
        $region71: #{_forward_impl.1} parent=55 // pred_region
          %4797 = vsyncadd %s4789, 0
          %s4798 = smul.addr %s25, 8
          %s4799 = scalar_lea.hbm %s9, %s4798
          %s4801 = sshll.u32 %s4792, 4
          %s4802 = int_to_ptr.vmem [resolvable:$true] %s4801
          %s4803 = sshll.u32 %s4799, 4
          %s4804 = int_to_ptr.hbm [resolvable:$true] %s4803
          %4806 = dma.vmem_to_hbm [thread:$0]  %s4802, 128, %s4804, %s4789
        $region72: #{_forward_impl.1} parent=55 // pred_fallthru
          _
      $region56: #{_forward_impl.1} parent=5 // pred_fallthru
        _
      %p4807 = scmp.le.s32.totalorder 2, %s20
      // Predicated region
      $region73: #{_forward_impl.1} parent=5 // pred_check
        %p4808 = pneg %p4807
      $region74: #{_forward_impl.1} parent=5 // pred_check_branch
        %4810 = sbr.rel (%p4808) target = $region76
      $region75: #{_forward_impl.1} parent=5 // pred_region
        %s4811 = ssub.s32 %s20, 2
        // Predicated region
        $region77: #{_forward_impl.1} parent=75 // pred_check
          %p4812 = pneg %p243
        $region78: #{_forward_impl.1} parent=75 // pred_check_branch
          %4814 = sbr.rel (%p4812) target = $region80
        $region79: #{_forward_impl.1} parent=75 // pred_region
          %s4815 = sand.u32 %s228, 1
          %s4816 = scalar_lea.sflag [#allocation4], %s4815
          %s4817 = sand.u32 %s228, 1
          %s4818 = smul.addr %s4817, 8
          %s4819 = scalar_lea.vmem [#allocation8], %s4818
          %4821 = dma.done %s4816, 128
        $region80: #{_forward_impl.1} parent=75 // pred_fallthru
          _
      $region76: #{_forward_impl.1} parent=5 // pred_fallthru
        _
    $region6: #{_forward_impl.1} parent=1 // loop_footer
      %s24 = sadd.s32 1, %s20
    $region7: #{_forward_impl.1} parent=1 // loop_footer_branch
      %19 = sbr.rel target = $region3
    $region8: #{_forward_impl.1} parent=1 // loop_exit
      _
    %4822 = vsyncpa [#allocation3], 1
    %s4823 = scalar_lea.sflag [#allocation3], 1
    %4824 = vsyncpa %s4823, 1
    %4825 = vsyncpa [#allocation6], 1
    %4826 = vsyncpa [#allocation4], 1
    %s4827 = scalar_lea.sflag [#allocation4], 1
    %4828 = vsyncpa %s4827, 1

</llo_original>
